<compile_context>
chip_gen: v7x
topology: tpu7x:2x2x1
jax: 0.10.0
libtpu: 0.0.40
codegen_flags: <defaults>
</compile_context>

<pallas_src>
import jax
import jax.numpy as jnp
from jax.experimental import pallas as pl
from jax.experimental.pallas import tpu as pltpu


# ------------------------------ configuration ------------------------------
_H = 16          # input spatial size (HxW), 1 input channel
_C1 = 8          # conv1 out channels
_C2 = 16         # conv2 out channels
_FC1 = 64
_FC2 = 32
_NCLS = 10
_LANE = 128      # TPU lane width; FC widths are zero-padded to this

# Offsets of the residue classes in the parity-reordered padded-row inputs.
_OFF1 = (0, 5, 10, 14)   # conv1: 18 padded rows ordered by (row % 4, row // 4)
_OFF2 = (0, 5)           # conv2: 10 padded rows ordered by (row % 2, row // 2)

_ROW_ORDER1 = tuple(r for q in range(4) for r in range(q, _H + 2, 4))

_VMEM = pl.BlockSpec(memory_space=pltpu.MemorySpace.VMEM)


# ------------------------------ fused kernel -------------------------------

def _mnist_fused_kernel(x1_ref, w1k_ref, b1t_ref, w2k_ref, b2t_ref,
                        w1fc_ref, b1fc_ref, w2fc_ref, b2fc_ref,
                        w3fc_ref, b3fc_ref, out_ref, x2_ref):
    """Whole MNISTNet forward for a small batch, fully VMEM-resident."""
    f32 = jnp.float32
    n_img = x1_ref.shape[0]

    # conv2's padded, parity-reordered input buffer (pad rows/cols stay zero).
    x2_ref[...] = jnp.zeros(x2_ref.shape, f32)

    for n in range(n_img):                      # tiny batch -> unrolled
        xn = x1_ref[n]                          # (18, 18), rows ordered by (r%4, r//4)

        # ---- conv1: 3 banded matmuls per output-row group (h % 4 == q) ----
        grp = []
        for q in range(4):
            acc = jnp.zeros((4, _LANE), f32)
            for ki in range(3):
                rr = q + ki
                s = _OFF1[rr % 4] + rr // 4
                acc = acc + jnp.dot(xn[s:s + 4, :], w1k_ref[ki],
                                    preferred_element_type=f32)
            grp.append(acc)                     # (4, 128), cols = (w%2, w//2, c)

        # ---- fused 2x2 max-pool + bias + relu (bias/relu commute with max) ----
        pe = jnp.maximum(grp[0], grp[1])            # pooled rows hh = 0,2,4,6
        po = jnp.maximum(grp[2], grp[3])            # pooled rows hh = 1,3,5,7
        pe = jnp.maximum(pe[:, :64], pe[:, 64:])    # width pool -> (4, 64) = (hh, w*8+c)
        po = jnp.maximum(po[:, :64], po[:, 64:])
        pe = jnp.maximum(pe + b1t_ref[...], 0.0)
        po = jnp.maximum(po + b1t_ref[...], 0.0)

        # ---- scatter into conv2's padded input, rows ordered by (r%2, r//2) ----
        x2_ref[1:5, 8:72] = po                  # padded rows 2,4,6,8
        x2_ref[5:9, 8:72] = pe                  # padded rows 1,3,5,7

        # ---- conv2: banded matmuls per output-row parity group ----
        acc2 = []
        for p in range(2):
            acc = jnp.zeros((4, _LANE), f32)
            for ki in range(3):
                rr = p + ki
                s = _OFF2[rr % 2] + rr // 2
                acc = acc + jnp.dot(x2_ref[s:s + 4, :], w2k_ref[ki],
                                    preferred_element_type=f32)
            acc2.append(acc)
        ph = jnp.maximum(acc2[0], acc2[1])          # height pool
        pw = jnp.maximum(ph[:, :64], ph[:, 64:])    # width pool -> (4, 64) = (hh, w*16+c)
        feat = jnp.maximum(pw + b2t_ref[...], 0.0)

        # ---- fc1: PyTorch NCHW flatten folded into per-row weight blocks ----
        z = jnp.zeros((1, _LANE), f32)
        for h in range(4):
            z = z + jnp.dot(feat[h:h + 1, :], w1fc_ref[h],
                            preferred_element_type=f32)
        z = jnp.maximum(z + b1fc_ref[...], 0.0)
        # ---- fc2 ----
        z = jnp.maximum(jnp.dot(z, w2fc_ref[...], preferred_element_type=f32)
                        + b2fc_ref[...], 0.0)
        # ---- fc3 (lane-padded logits, unmasked full-width store) ----
        z = jnp.dot(z, w3fc_ref[...], preferred_element_type=f32) + b3fc_ref[...]
        out_ref[n:n + 1, :] = z


# --------------------------- trace-time weight prep -------------------------

def _conv_row_weights(w_torch, w_out):
    """(Co,Ci,3,3) torch conv weight -> (3, (w_out+2)*Ci, w_out*Co) banded
    matrices Wk so that out_row(h)[w*Co+o] = sum_ki in_row(h+ki) @ Wk[ki]."""
    co, ci, kh, kw = w_torch.shape
    wp = w_out + kw - 1
    # m[ki, kj*ci + c, o] = w_torch[o, c, ki, kj]
    m = jnp.transpose(w_torch, (2, 3, 1, 0)).reshape(kh, kw * ci, co)
    cols = [jnp.pad(m, ((0, 0), (w * ci, (wp - kw - w) * ci), (0, 0)))
            for w in range(w_out)]
    banded = jnp.stack(cols, axis=2)            # (kh, wp*ci, w_out, co)
    return banded.reshape(kh, wp * ci, w_out * co)


def _pool_perm(w_out, c):
    """Column permutation (w, c) -> (w % 2, w // 2, c): 2x width pooling then
    becomes max(cols[:half], cols[half:])."""
    half = w_out // 2
    par = jnp.arange(2).reshape(2, 1, 1)
    ww = jnp.arange(half).reshape(1, half, 1)
    ch = jnp.arange(c).reshape(1, 1, c)
    return ((2 * ww + par) * c + ch).reshape(-1)


def _prepare_weights(params):
    f32 = jnp.float32
    # conv1 / conv2 banded weights with pool-ready column order
    w1k = _conv_row_weights(params["conv1_w"].astype(f32), _H)        # (3, 18, 128)
    w1k = jnp.take(w1k, _pool_perm(_H, _C1), axis=2)
    b1t = jnp.tile(params["conv1_b"].astype(f32), _H // 2).reshape(1, 64)

    w2k = _conv_row_weights(params["conv2_w"].astype(f32), _H // 2)   # (3, 80, 128)
    w2k = jnp.take(w2k, _pool_perm(_H // 2, _C2), axis=2)
    b2t = jnp.tile(params["conv2_b"].astype(f32), _H // 4).reshape(1, 64)

    # fc1: fold the NCHW flatten (index = c*16 + h*4 + w) into per-h blocks
    w1 = params["fc1_w"].astype(f32).reshape(_FC1, _C2, 4, 4)         # (o, c, h, w)
    w1 = jnp.transpose(w1, (2, 3, 1, 0)).reshape(4, 4 * _C2, _FC1)    # (h, w*16+c, o)
    w1fc = jnp.pad(w1, ((0, 0), (0, 0), (0, _LANE - _FC1)))           # (4, 64, 128)
    b1fc = jnp.pad(params["fc1_b"].astype(f32), (0, _LANE - _FC1)).reshape(1, _LANE)

    w2fc = jnp.pad(params["fc2_w"].astype(f32).T,
                   ((0, _LANE - _FC1), (0, _LANE - _FC2)))            # (128, 128)
    b2fc = jnp.pad(params["fc2_b"].astype(f32), (0, _LANE - _FC2)).reshape(1, _LANE)

    w3fc = jnp.pad(params["fc3_w"].astype(f32).T,
                   ((0, _LANE - _FC2), (0, _LANE - _NCLS)))           # (128, 128)
    b3fc = jnp.pad(params["fc3_b"].astype(f32), (0, _LANE - _NCLS)).reshape(1, _LANE)
    return w1k, b1t, w2k, b2t, w1fc, b1fc, w2fc, b2fc, w3fc, b3fc


# -------------------------------- forward ----------------------------------

def mnist_net_forward(x_nchw, params):
    """Forward pass matching MNISTNet.forward.  x: (N, 1, 16, 16) float32."""
    n = x_nchw.shape[0]
    assert x_nchw.shape[1:] == (1, _H, _H), x_nchw.shape

    # Pad spatially; reorder padded rows by (row % 4, row // 4) so the kernel's
    # conv1 row groups are contiguous static slices.
    xp = jnp.pad(x_nchw[:, 0].astype(jnp.float32), ((0, 0), (1, 1), (1, 1)))
    x1 = jnp.take(xp, jnp.array(_ROW_ORDER1, dtype=jnp.int32), axis=1)   # (N, 18, 18)

    weights = _prepare_weights(params)

    out = pl.pallas_call(
        _mnist_fused_kernel,
        out_shape=jax.ShapeDtypeStruct((n, _LANE), jnp.float32),
        in_specs=[_VMEM] * 11,
        out_specs=_VMEM,
        scratch_shapes=[pltpu.VMEM((10, 80), jnp.float32)],
    )(x1, *weights)
    return out[:, :_NCLS]

# TODO(synk): MNISTNet.get_features has an empty body (`pass`) in the
# reference, so there is nothing to translate for it.


# ----------------------------- reference & main -----------------------------

def _reference_forward(x_nchw, params):
    """Pure-JAX/XLA reference, numerically equivalent to the PyTorch module."""
    def conv(x, w, b):
        y = jax.lax.conv_general_dilated(
            x, w, window_strides=(1, 1), padding=((1, 1), (1, 1)),
            dimension_numbers=("NCHW", "OIHW", "NCHW"))
        return jax.nn.relu(y + b[None, :, None, None])

    def pool(x):
        return jax.lax.reduce_window(x, -jnp.inf, jax.lax.max,
                                     (1, 1, 2, 2), (1, 1, 2, 2), "VALID")

    y = pool(conv(x_nchw, params["conv1_w"], params["conv1_b"]))
    y = pool(conv(y, params["conv2_w"], params["conv2_b"]))
    y = y.reshape(y.shape[0], -1)
    y = jax.nn.relu(y @ params["fc1_w"].T + params["fc1_b"])
    y = jax.nn.relu(y @ params["fc2_w"].T + params["fc2_b"])
    return y @ params["fc3_w"].T + params["fc3_b"]


def init_params(key):
    """Deterministic synthetic parameters (PyTorch tensor layouts)."""
    ks = jax.random.split(key, 10)
    def nrm(k, shape, scale):
        return (scale * jax.random.normal(k, shape)).astype(jnp.float32)
    return {
        "conv1_w": nrm(ks[0], (_C1, 1, 3, 3), 0.2),
        "conv1_b": nrm(ks[1], (_C1,), 0.1),
        "conv2_w": nrm(ks[2], (_C2, _C1, 3, 3), 0.1),
        "conv2_b": nrm(ks[3], (_C2,), 0.1),
        "fc1_w":   nrm(ks[4], (_FC1, _C2 * 4 * 4), 0.05),
        "fc1_b":   nrm(ks[5], (_FC1,), 0.05),
        "fc2_w":   nrm(ks[6], (_FC2, _FC1), 0.05),
        "fc2_b":   nrm(ks[7], (_FC2,), 0.05),
        "fc3_w":   nrm(ks[8], (_NCLS, _FC2), 0.05),
        "fc3_b":   nrm(ks[9], (_NCLS,), 0.05),
    }


if __name__ == "__main__":
    key = jax.random.PRNGKey(0)
    k_x, k_p = jax.random.split(key)
    # Small input consistent with the chosen config: batch=2, 1 channel, 16x16.
    x = jax.random.normal(k_x, (2, 1, _H, _H), dtype=jnp.float32)
    params = init_params(k_p)

    logits = jax.jit(mnist_net_forward)(x, params)
    logits = jax.block_until_ready(logits)

    assert logits.shape == (2, _NCLS), logits.shape
    assert logits.dtype == jnp.float32
    assert bool(jnp.all(jnp.isfinite(logits)))

    # Cross-check against a plain-XLA reference of the same network.
    ref = _reference_forward(x, params)
    err = float(jnp.max(jnp.abs(logits - ref)))
    assert err < 2e-2, f"mismatch vs reference: max abs err = {err}"

    print("KERNEL_OK")
</pallas_src>

<mosaic_0001>
module attributes {stable_mosaic.version = 11 : i64} {
  func.func @_mnist_fused_kernel(%arg0: memref<2x18x18xf32, #tpu.memory_space<vmem>>, %arg1: memref<3x18x128xf32, #tpu.memory_space<vmem>>, %arg2: memref<1x64xf32, #tpu.memory_space<vmem>>, %arg3: memref<3x80x128xf32, #tpu.memory_space<vmem>>, %arg4: memref<1x64xf32, #tpu.memory_space<vmem>>, %arg5: memref<4x64x128xf32, #tpu.memory_space<vmem>>, %arg6: memref<1x128xf32, #tpu.memory_space<vmem>>, %arg7: memref<128x128xf32, #tpu.memory_space<vmem>>, %arg8: memref<1x128xf32, #tpu.memory_space<vmem>>, %arg9: memref<128x128xf32, #tpu.memory_space<vmem>>, %arg10: memref<1x128xf32, #tpu.memory_space<vmem>>, %arg11: memref<2x128xf32, #tpu.memory_space<vmem>>, %arg12: memref<10x80xf32, #tpu.memory_space<vmem>>) attributes {dimension_semantics = [], scalar_prefetch = 0 : i64, scratch_operands = 1 : i64, tpu.core_type = #tpu.core_type<tc>} {
    %cst = arith.constant 0.000000e+00 : f32
    %0 = vector.broadcast %cst : f32 to vector<10x80xf32>
    %c0 = arith.constant 0 : index
    %c0_0 = arith.constant 0 : index
    %1 = vector.load %arg12[%c0, %c0_0] : memref<10x80xf32, #tpu.memory_space<vmem>>, vector<10x80xf32>
    tpu.vector_store %arg12[%c0, %c0_0], %0 {strides = array<i32>} : memref<10x80xf32, #tpu.memory_space<vmem>>, vector<10x80xf32>,
    %c0_1 = arith.constant 0 : index
    %c0_2 = arith.constant 0 : index
    %c0_3 = arith.constant 0 : index
    %2 = vector.load %arg0[%c0_1, %c0_2, %c0_3] : memref<2x18x18xf32, #tpu.memory_space<vmem>>, vector<1x18x18xf32>
    %3 = vector.shape_cast %2 : vector<1x18x18xf32> to vector<18x18xf32>
    %cst_4 = arith.constant 0.000000e+00 : f32
    %4 = vector.broadcast %cst_4 : f32 to vector<4x128xf32>
    %5 = vector.extract_strided_slice %3 {offsets = [0, 0], sizes = [4, 18], strides = [1, 1]} : vector<18x18xf32> to vector<4x18xf32>
    %c0_5 = arith.constant 0 : index
    %c0_6 = arith.constant 0 : index
    %c0_7 = arith.constant 0 : index
    %6 = vector.load %arg1[%c0_5, %c0_6, %c0_7] : memref<3x18x128xf32, #tpu.memory_space<vmem>>, vector<1x18x128xf32>
    %7 = vector.shape_cast %6 : vector<1x18x128xf32> to vector<18x128xf32>
    %cst_8 = arith.constant dense<0.000000e+00> : vector<4x128xf32>
    %8 = tpu.matmul %5, %7, %cst_8 {dimension_numbers = #tpu.dot_dimension_numbers<[1], [0], [0], [1], [0, 0, 1, 1], [], []>} : vector<4x18xf32>, vector<18x128xf32>, vector<4x128xf32> -> vector<4x128xf32>
    %9 = arith.addf %4, %8 : vector<4x128xf32>
    %10 = vector.extract_strided_slice %3 {offsets = [5, 0], sizes = [4, 18], strides = [1, 1]} : vector<18x18xf32> to vector<4x18xf32>
    %c1 = arith.constant 1 : index
    %c0_9 = arith.constant 0 : index
    %c0_10 = arith.constant 0 : index
    %11 = vector.load %arg1[%c1, %c0_9, %c0_10] : memref<3x18x128xf32, #tpu.memory_space<vmem>>, vector<1x18x128xf32>
    %12 = vector.shape_cast %11 : vector<1x18x128xf32> to vector<18x128xf32>
    %cst_11 = arith.constant dense<0.000000e+00> : vector<4x128xf32>
    %13 = tpu.matmul %10, %12, %cst_11 {dimension_numbers = #tpu.dot_dimension_numbers<[1], [0], [0], [1], [0, 0, 1, 1], [], []>} : vector<4x18xf32>, vector<18x128xf32>, vector<4x128xf32> -> vector<4x128xf32>
    %14 = arith.addf %9, %13 : vector<4x128xf32>
    %15 = vector.extract_strided_slice %3 {offsets = [10, 0], sizes = [4, 18], strides = [1, 1]} : vector<18x18xf32> to vector<4x18xf32>
    %c2 = arith.constant 2 : index
    %c0_12 = arith.constant 0 : index
    %c0_13 = arith.constant 0 : index
    %16 = vector.load %arg1[%c2, %c0_12, %c0_13] : memref<3x18x128xf32, #tpu.memory_space<vmem>>, vector<1x18x128xf32>
    %17 = vector.shape_cast %16 : vector<1x18x128xf32> to vector<18x128xf32>
    %cst_14 = arith.constant dense<0.000000e+00> : vector<4x128xf32>
    %18 = tpu.matmul %15, %17, %cst_14 {dimension_numbers = #tpu.dot_dimension_numbers<[1], [0], [0], [1], [0, 0, 1, 1], [], []>} : vector<4x18xf32>, vector<18x128xf32>, vector<4x128xf32> -> vector<4x128xf32>
    %19 = arith.addf %14, %18 : vector<4x128xf32>
    %cst_15 = arith.constant 0.000000e+00 : f32
    %20 = vector.broadcast %cst_15 : f32 to vector<4x128xf32>
    %21 = vector.extract_strided_slice %3 {offsets = [5, 0], sizes = [4, 18], strides = [1, 1]} : vector<18x18xf32> to vector<4x18xf32>
    %c0_16 = arith.constant 0 : index
    %c0_17 = arith.constant 0 : index
    %c0_18 = arith.constant 0 : index
    %22 = vector.load %arg1[%c0_16, %c0_17, %c0_18] : memref<3x18x128xf32, #tpu.memory_space<vmem>>, vector<1x18x128xf32>
    %23 = vector.shape_cast %22 : vector<1x18x128xf32> to vector<18x128xf32>
    %cst_19 = arith.constant dense<0.000000e+00> : vector<4x128xf32>
    %24 = tpu.matmul %21, %23, %cst_19 {dimension_numbers = #tpu.dot_dimension_numbers<[1], [0], [0], [1], [0, 0, 1, 1], [], []>} : vector<4x18xf32>, vector<18x128xf32>, vector<4x128xf32> -> vector<4x128xf32>
    %25 = arith.addf %20, %24 : vector<4x128xf32>
    %26 = vector.extract_strided_slice %3 {offsets = [10, 0], sizes = [4, 18], strides = [1, 1]} : vector<18x18xf32> to vector<4x18xf32>
    %c1_20 = arith.constant 1 : index
    %c0_21 = arith.constant 0 : index
    %c0_22 = arith.constant 0 : index
    %27 = vector.load %arg1[%c1_20, %c0_21, %c0_22] : memref<3x18x128xf32, #tpu.memory_space<vmem>>, vector<1x18x128xf32>
    %28 = vector.shape_cast %27 : vector<1x18x128xf32> to vector<18x128xf32>
    %cst_23 = arith.constant dense<0.000000e+00> : vector<4x128xf32>
    %29 = tpu.matmul %26, %28, %cst_23 {dimension_numbers = #tpu.dot_dimension_numbers<[1], [0], [0], [1], [0, 0, 1, 1], [], []>} : vector<4x18xf32>, vector<18x128xf32>, vector<4x128xf32> -> vector<4x128xf32>
    %30 = arith.addf %25, %29 : vector<4x128xf32>
    %31 = vector.extract_strided_slice %3 {offsets = [14, 0], sizes = [4, 18], strides = [1, 1]} : vector<18x18xf32> to vector<4x18xf32>
    %c2_24 = arith.constant 2 : index
    %c0_25 = arith.constant 0 : index
    %c0_26 = arith.constant 0 : index
    %32 = vector.load %arg1[%c2_24, %c0_25, %c0_26] : memref<3x18x128xf32, #tpu.memory_space<vmem>>, vector<1x18x128xf32>
    %33 = vector.shape_cast %32 : vector<1x18x128xf32> to vector<18x128xf32>
    %cst_27 = arith.constant dense<0.000000e+00> : vector<4x128xf32>
    %34 = tpu.matmul %31, %33, %cst_27 {dimension_numbers = #tpu.dot_dimension_numbers<[1], [0], [0], [1], [0, 0, 1, 1], [], []>} : vector<4x18xf32>, vector<18x128xf32>, vector<4x128xf32> -> vector<4x128xf32>
    %35 = arith.addf %30, %34 : vector<4x128xf32>
    %cst_28 = arith.constant 0.000000e+00 : f32
    %36 = vector.broadcast %cst_28 : f32 to vector<4x128xf32>
    %37 = vector.extract_strided_slice %3 {offsets = [10, 0], sizes = [4, 18], strides = [1, 1]} : vector<18x18xf32> to vector<4x18xf32>
    %c0_29 = arith.constant 0 : index
    %c0_30 = arith.constant 0 : index
    %c0_31 = arith.constant 0 : index
    %38 = vector.load %arg1[%c0_29, %c0_30, %c0_31] : memref<3x18x128xf32, #tpu.memory_space<vmem>>, vector<1x18x128xf32>
    %39 = vector.shape_cast %38 : vector<1x18x128xf32> to vector<18x128xf32>
    %cst_32 = arith.constant dense<0.000000e+00> : vector<4x128xf32>
    %40 = tpu.matmul %37, %39, %cst_32 {dimension_numbers = #tpu.dot_dimension_numbers<[1], [0], [0], [1], [0, 0, 1, 1], [], []>} : vector<4x18xf32>, vector<18x128xf32>, vector<4x128xf32> -> vector<4x128xf32>
    %41 = arith.addf %36, %40 : vector<4x128xf32>
    %42 = vector.extract_strided_slice %3 {offsets = [14, 0], sizes = [4, 18], strides = [1, 1]} : vector<18x18xf32> to vector<4x18xf32>
    %c1_33 = arith.constant 1 : index
    %c0_34 = arith.constant 0 : index
    %c0_35 = arith.constant 0 : index
    %43 = vector.load %arg1[%c1_33, %c0_34, %c0_35] : memref<3x18x128xf32, #tpu.memory_space<vmem>>, vector<1x18x128xf32>
    %44 = vector.shape_cast %43 : vector<1x18x128xf32> to vector<18x128xf32>
    %cst_36 = arith.constant dense<0.000000e+00> : vector<4x128xf32>
    %45 = tpu.matmul %42, %44, %cst_36 {dimension_numbers = #tpu.dot_dimension_numbers<[1], [0], [0], [1], [0, 0, 1, 1], [], []>} : vector<4x18xf32>, vector<18x128xf32>, vector<4x128xf32> -> vector<4x128xf32>
    %46 = arith.addf %41, %45 : vector<4x128xf32>
    %47 = vector.extract_strided_slice %3 {offsets = [1, 0], sizes = [4, 18], strides = [1, 1]} : vector<18x18xf32> to vector<4x18xf32>
    %c2_37 = arith.constant 2 : index
    %c0_38 = arith.constant 0 : index
    %c0_39 = arith.constant 0 : index
    %48 = vector.load %arg1[%c2_37, %c0_38, %c0_39] : memref<3x18x128xf32, #tpu.memory_space<vmem>>, vector<1x18x128xf32>
    %49 = vector.shape_cast %48 : vector<1x18x128xf32> to vector<18x128xf32>
    %cst_40 = arith.constant dense<0.000000e+00> : vector<4x128xf32>
    %50 = tpu.matmul %47, %49, %cst_40 {dimension_numbers = #tpu.dot_dimension_numbers<[1], [0], [0], [1], [0, 0, 1, 1], [], []>} : vector<4x18xf32>, vector<18x128xf32>, vector<4x128xf32> -> vector<4x128xf32>
    %51 = arith.addf %46, %50 : vector<4x128xf32>
    %cst_41 = arith.constant 0.000000e+00 : f32
    %52 = vector.broadcast %cst_41 : f32 to vector<4x128xf32>
    %53 = vector.extract_strided_slice %3 {offsets = [14, 0], sizes = [4, 18], strides = [1, 1]} : vector<18x18xf32> to vector<4x18xf32>
    %c0_42 = arith.constant 0 : index
    %c0_43 = arith.constant 0 : index
    %c0_44 = arith.constant 0 : index
    %54 = vector.load %arg1[%c0_42, %c0_43, %c0_44] : memref<3x18x128xf32, #tpu.memory_space<vmem>>, vector<1x18x128xf32>
    %55 = vector.shape_cast %54 : vector<1x18x128xf32> to vector<18x128xf32>
    %cst_45 = arith.constant dense<0.000000e+00> : vector<4x128xf32>
    %56 = tpu.matmul %53, %55, %cst_45 {dimension_numbers = #tpu.dot_dimension_numbers<[1], [0], [0], [1], [0, 0, 1, 1], [], []>} : vector<4x18xf32>, vector<18x128xf32>, vector<4x128xf32> -> vector<4x128xf32>
    %57 = arith.addf %52, %56 : vector<4x128xf32>
    %58 = vector.extract_strided_slice %3 {offsets = [1, 0], sizes = [4, 18], strides = [1, 1]} : vector<18x18xf32> to vector<4x18xf32>
    %c1_46 = arith.constant 1 : index
    %c0_47 = arith.constant 0 : index
    %c0_48 = arith.constant 0 : index
    %59 = vector.load %arg1[%c1_46, %c0_47, %c0_48] : memref<3x18x128xf32, #tpu.memory_space<vmem>>, vector<1x18x128xf32>
    %60 = vector.shape_cast %59 : vector<1x18x128xf32> to vector<18x128xf32>
    %cst_49 = arith.constant dense<0.000000e+00> : vector<4x128xf32>
    %61 = tpu.matmul %58, %60, %cst_49 {dimension_numbers = #tpu.dot_dimension_numbers<[1], [0], [0], [1], [0, 0, 1, 1], [], []>} : vector<4x18xf32>, vector<18x128xf32>, vector<4x128xf32> -> vector<4x128xf32>
    %62 = arith.addf %57, %61 : vector<4x128xf32>
    %63 = vector.extract_strided_slice %3 {offsets = [6, 0], sizes = [4, 18], strides = [1, 1]} : vector<18x18xf32> to vector<4x18xf32>
    %c2_50 = arith.constant 2 : index
    %c0_51 = arith.constant 0 : index
    %c0_52 = arith.constant 0 : index
    %64 = vector.load %arg1[%c2_50, %c0_51, %c0_52] : memref<3x18x128xf32, #tpu.memory_space<vmem>>, vector<1x18x128xf32>
    %65 = vector.shape_cast %64 : vector<1x18x128xf32> to vector<18x128xf32>
    %cst_53 = arith.constant dense<0.000000e+00> : vector<4x128xf32>
    %66 = tpu.matmul %63, %65, %cst_53 {dimension_numbers = #tpu.dot_dimension_numbers<[1], [0], [0], [1], [0, 0, 1, 1], [], []>} : vector<4x18xf32>, vector<18x128xf32>, vector<4x128xf32> -> vector<4x128xf32>
    %67 = arith.addf %62, %66 : vector<4x128xf32>
    %68 = arith.maximumf %19, %35 : vector<4x128xf32>
    %69 = arith.maximumf %51, %67 : vector<4x128xf32>
    %70 = vector.extract_strided_slice %68 {offsets = [0, 0], sizes = [4, 64], strides = [1, 1]} : vector<4x128xf32> to vector<4x64xf32>
    %71 = vector.extract_strided_slice %68 {offsets = [0, 64], sizes = [4, 64], strides = [1, 1]} : vector<4x128xf32> to vector<4x64xf32>
    %72 = arith.maximumf %70, %71 : vector<4x64xf32>
    %73 = vector.extract_strided_slice %69 {offsets = [0, 0], sizes = [4, 64], strides = [1, 1]} : vector<4x128xf32> to vector<4x64xf32>
    %74 = vector.extract_strided_slice %69 {offsets = [0, 64], sizes = [4, 64], strides = [1, 1]} : vector<4x128xf32> to vector<4x64xf32>
    %75 = arith.maximumf %73, %74 : vector<4x64xf32>
    %c0_54 = arith.constant 0 : index
    %c0_55 = arith.constant 0 : index
    %76 = vector.load %arg2[%c0_54, %c0_55] : memref<1x64xf32, #tpu.memory_space<vmem>>, vector<1x64xf32>
    %77 = vector.broadcast %76 : vector<1x64xf32> to vector<4x64xf32>
    %78 = arith.addf %72, %77 : vector<4x64xf32>
    %cst_56 = arith.constant 0.000000e+00 : f32
    %79 = vector.broadcast %cst_56 : f32 to vector<4x64xf32>
    %80 = arith.maximumf %78, %79 : vector<4x64xf32>
    %c0_57 = arith.constant 0 : index
    %c0_58 = arith.constant 0 : index
    %81 = vector.load %arg2[%c0_57, %c0_58] : memref<1x64xf32, #tpu.memory_space<vmem>>, vector<1x64xf32>
    %82 = vector.broadcast %81 : vector<1x64xf32> to vector<4x64xf32>
    %83 = arith.addf %75, %82 : vector<4x64xf32>
    %cst_59 = arith.constant 0.000000e+00 : f32
    %84 = vector.broadcast %cst_59 : f32 to vector<4x64xf32>
    %85 = arith.maximumf %83, %84 : vector<4x64xf32>
    %c1_60 = arith.constant 1 : index
    %c8 = arith.constant 8 : index
    %86 = vector.load %arg12[%c1_60, %c8] : memref<10x80xf32, #tpu.memory_space<vmem>>, vector<4x64xf32>
    tpu.vector_store %arg12[%c1_60, %c8], %85 {strides = array<i32>} : memref<10x80xf32, #tpu.memory_space<vmem>>, vector<4x64xf32>,
    %c5 = arith.constant 5 : index
    %c8_61 = arith.constant 8 : index
    %87 = vector.load %arg12[%c5, %c8_61] : memref<10x80xf32, #tpu.memory_space<vmem>>, vector<4x64xf32>
    tpu.vector_store %arg12[%c5, %c8_61], %80 {strides = array<i32>} : memref<10x80xf32, #tpu.memory_space<vmem>>, vector<4x64xf32>,
    %cst_62 = arith.constant 0.000000e+00 : f32
    %88 = vector.broadcast %cst_62 : f32 to vector<4x128xf32>
    %c0_63 = arith.constant 0 : index
    %c0_64 = arith.constant 0 : index
    %89 = vector.load %arg12[%c0_63, %c0_64] : memref<10x80xf32, #tpu.memory_space<vmem>>, vector<4x80xf32>
    %c0_65 = arith.constant 0 : index
    %c0_66 = arith.constant 0 : index
    %c0_67 = arith.constant 0 : index
    %90 = vector.load %arg3[%c0_65, %c0_66, %c0_67] : memref<3x80x128xf32, #tpu.memory_space<vmem>>, vector<1x80x128xf32>
    %91 = vector.shape_cast %90 : vector<1x80x128xf32> to vector<80x128xf32>
    %cst_68 = arith.constant dense<0.000000e+00> : vector<4x128xf32>
    %92 = tpu.matmul %89, %91, %cst_68 {dimension_numbers = #tpu.dot_dimension_numbers<[1], [0], [0], [1], [0, 0, 1, 1], [], []>} : vector<4x80xf32>, vector<80x128xf32>, vector<4x128xf32> -> vector<4x128xf32>
    %93 = arith.addf %88, %92 : vector<4x128xf32>
    %c5_69 = arith.constant 5 : index
    %c0_70 = arith.constant 0 : index
    %94 = vector.load %arg12[%c5_69, %c0_70] : memref<10x80xf32, #tpu.memory_space<vmem>>, vector<4x80xf32>
    %c1_71 = arith.constant 1 : index
    %c0_72 = arith.constant 0 : index
    %c0_73 = arith.constant 0 : index
    %95 = vector.load %arg3[%c1_71, %c0_72, %c0_73] : memref<3x80x128xf32, #tpu.memory_space<vmem>>, vector<1x80x128xf32>
    %96 = vector.shape_cast %95 : vector<1x80x128xf32> to vector<80x128xf32>
    %cst_74 = arith.constant dense<0.000000e+00> : vector<4x128xf32>
    %97 = tpu.matmul %94, %96, %cst_74 {dimension_numbers = #tpu.dot_dimension_numbers<[1], [0], [0], [1], [0, 0, 1, 1], [], []>} : vector<4x80xf32>, vector<80x128xf32>, vector<4x128xf32> -> vector<4x128xf32>
    %98 = arith.addf %93, %97 : vector<4x128xf32>
    %c1_75 = arith.constant 1 : index
    %c0_76 = arith.constant 0 : index
    %99 = vector.load %arg12[%c1_75, %c0_76] : memref<10x80xf32, #tpu.memory_space<vmem>>, vector<4x80xf32>
    %c2_77 = arith.constant 2 : index
    %c0_78 = arith.constant 0 : index
    %c0_79 = arith.constant 0 : index
    %100 = vector.load %arg3[%c2_77, %c0_78, %c0_79] : memref<3x80x128xf32, #tpu.memory_space<vmem>>, vector<1x80x128xf32>
    %101 = vector.shape_cast %100 : vector<1x80x128xf32> to vector<80x128xf32>
    %cst_80 = arith.constant dense<0.000000e+00> : vector<4x128xf32>
    %102 = tpu.matmul %99, %101, %cst_80 {dimension_numbers = #tpu.dot_dimension_numbers<[1], [0], [0], [1], [0, 0, 1, 1], [], []>} : vector<4x80xf32>, vector<80x128xf32>, vector<4x128xf32> -> vector<4x128xf32>
    %103 = arith.addf %98, %102 : vector<4x128xf32>
    %cst_81 = arith.constant 0.000000e+00 : f32
    %104 = vector.broadcast %cst_81 : f32 to vector<4x128xf32>
    %c5_82 = arith.constant 5 : index
    %c0_83 = arith.constant 0 : index
    %105 = vector.load %arg12[%c5_82, %c0_83] : memref<10x80xf32, #tpu.memory_space<vmem>>, vector<4x80xf32>
    %c0_84 = arith.constant 0 : index
    %c0_85 = arith.constant 0 : index
    %c0_86 = arith.constant 0 : index
    %106 = vector.load %arg3[%c0_84, %c0_85, %c0_86] : memref<3x80x128xf32, #tpu.memory_space<vmem>>, vector<1x80x128xf32>
    %107 = vector.shape_cast %106 : vector<1x80x128xf32> to vector<80x128xf32>
    %cst_87 = arith.constant dense<0.000000e+00> : vector<4x128xf32>
    %108 = tpu.matmul %105, %107, %cst_87 {dimension_numbers = #tpu.dot_dimension_numbers<[1], [0], [0], [1], [0, 0, 1, 1], [], []>} : vector<4x80xf32>, vector<80x128xf32>, vector<4x128xf32> -> vector<4x128xf32>
    %109 = arith.addf %104, %108 : vector<4x128xf32>
    %c1_88 = arith.constant 1 : index
    %c0_89 = arith.constant 0 : index
    %110 = vector.load %arg12[%c1_88, %c0_89] : memref<10x80xf32, #tpu.memory_space<vmem>>, vector<4x80xf32>
    %c1_90 = arith.constant 1 : index
    %c0_91 = arith.constant 0 : index
    %c0_92 = arith.constant 0 : index
    %111 = vector.load %arg3[%c1_90, %c0_91, %c0_92] : memref<3x80x128xf32, #tpu.memory_space<vmem>>, vector<1x80x128xf32>
    %112 = vector.shape_cast %111 : vector<1x80x128xf32> to vector<80x128xf32>
    %cst_93 = arith.constant dense<0.000000e+00> : vector<4x128xf32>
    %113 = tpu.matmul %110, %112, %cst_93 {dimension_numbers = #tpu.dot_dimension_numbers<[1], [0], [0], [1], [0, 0, 1, 1], [], []>} : vector<4x80xf32>, vector<80x128xf32>, vector<4x128xf32> -> vector<4x128xf32>
    %114 = arith.addf %109, %113 : vector<4x128xf32>
    %c6 = arith.constant 6 : index
    %c0_94 = arith.constant 0 : index
    %115 = vector.load %arg12[%c6, %c0_94] : memref<10x80xf32, #tpu.memory_space<vmem>>, vector<4x80xf32>
    %c2_95 = arith.constant 2 : index
    %c0_96 = arith.constant 0 : index
    %c0_97 = arith.constant 0 : index
    %116 = vector.load %arg3[%c2_95, %c0_96, %c0_97] : memref<3x80x128xf32, #tpu.memory_space<vmem>>, vector<1x80x128xf32>
    %117 = vector.shape_cast %116 : vector<1x80x128xf32> to vector<80x128xf32>
    %cst_98 = arith.constant dense<0.000000e+00> : vector<4x128xf32>
    %118 = tpu.matmul %115, %117, %cst_98 {dimension_numbers = #tpu.dot_dimension_numbers<[1], [0], [0], [1], [0, 0, 1, 1], [], []>} : vector<4x80xf32>, vector<80x128xf32>, vector<4x128xf32> -> vector<4x128xf32>
    %119 = arith.addf %114, %118 : vector<4x128xf32>
    %120 = arith.maximumf %103, %119 : vector<4x128xf32>
    %121 = vector.extract_strided_slice %120 {offsets = [0, 0], sizes = [4, 64], strides = [1, 1]} : vector<4x128xf32> to vector<4x64xf32>
    %122 = vector.extract_strided_slice %120 {offsets = [0, 64], sizes = [4, 64], strides = [1, 1]} : vector<4x128xf32> to vector<4x64xf32>
    %123 = arith.maximumf %121, %122 : vector<4x64xf32>
    %c0_99 = arith.constant 0 : index
    %c0_100 = arith.constant 0 : index
    %124 = vector.load %arg4[%c0_99, %c0_100] : memref<1x64xf32, #tpu.memory_space<vmem>>, vector<1x64xf32>
    %125 = vector.broadcast %124 : vector<1x64xf32> to vector<4x64xf32>
    %126 = arith.addf %123, %125 : vector<4x64xf32>
    %cst_101 = arith.constant 0.000000e+00 : f32
    %127 = vector.broadcast %cst_101 : f32 to vector<4x64xf32>
    %128 = arith.maximumf %126, %127 : vector<4x64xf32>
    %cst_102 = arith.constant 0.000000e+00 : f32
    %129 = vector.broadcast %cst_102 : f32 to vector<1x128xf32>
    %130 = vector.extract_strided_slice %128 {offsets = [0, 0], sizes = [1, 64], strides = [1, 1]} : vector<4x64xf32> to vector<1x64xf32>
    %c0_103 = arith.constant 0 : index
    %c0_104 = arith.constant 0 : index
    %c0_105 = arith.constant 0 : index
    %131 = vector.load %arg5[%c0_103, %c0_104, %c0_105] : memref<4x64x128xf32, #tpu.memory_space<vmem>>, vector<1x64x128xf32>
    %132 = vector.shape_cast %131 : vector<1x64x128xf32> to vector<64x128xf32>
    %cst_106 = arith.constant dense<0.000000e+00> : vector<1x128xf32>
    %133 = tpu.matmul %130, %132, %cst_106 {dimension_numbers = #tpu.dot_dimension_numbers<[1], [0], [0], [1], [0, 0, 1, 1], [], []>} : vector<1x64xf32>, vector<64x128xf32>, vector<1x128xf32> -> vector<1x128xf32>
    %134 = arith.addf %129, %133 : vector<1x128xf32>
    %135 = vector.extract_strided_slice %128 {offsets = [1, 0], sizes = [1, 64], strides = [1, 1]} : vector<4x64xf32> to vector<1x64xf32>
    %c1_107 = arith.constant 1 : index
    %c0_108 = arith.constant 0 : index
    %c0_109 = arith.constant 0 : index
    %136 = vector.load %arg5[%c1_107, %c0_108, %c0_109] : memref<4x64x128xf32, #tpu.memory_space<vmem>>, vector<1x64x128xf32>
    %137 = vector.shape_cast %136 : vector<1x64x128xf32> to vector<64x128xf32>
    %cst_110 = arith.constant dense<0.000000e+00> : vector<1x128xf32>
    %138 = tpu.matmul %135, %137, %cst_110 {dimension_numbers = #tpu.dot_dimension_numbers<[1], [0], [0], [1], [0, 0, 1, 1], [], []>} : vector<1x64xf32>, vector<64x128xf32>, vector<1x128xf32> -> vector<1x128xf32>
    %139 = arith.addf %134, %138 : vector<1x128xf32>
    %140 = vector.extract_strided_slice %128 {offsets = [2, 0], sizes = [1, 64], strides = [1, 1]} : vector<4x64xf32> to vector<1x64xf32>
    %c2_111 = arith.constant 2 : index
    %c0_112 = arith.constant 0 : index
    %c0_113 = arith.constant 0 : index
    %141 = vector.load %arg5[%c2_111, %c0_112, %c0_113] : memref<4x64x128xf32, #tpu.memory_space<vmem>>, vector<1x64x128xf32>
    %142 = vector.shape_cast %141 : vector<1x64x128xf32> to vector<64x128xf32>
    %cst_114 = arith.constant dense<0.000000e+00> : vector<1x128xf32>
    %143 = tpu.matmul %140, %142, %cst_114 {dimension_numbers = #tpu.dot_dimension_numbers<[1], [0], [0], [1], [0, 0, 1, 1], [], []>} : vector<1x64xf32>, vector<64x128xf32>, vector<1x128xf32> -> vector<1x128xf32>
    %144 = arith.addf %139, %143 : vector<1x128xf32>
    %145 = vector.extract_strided_slice %128 {offsets = [3, 0], sizes = [1, 64], strides = [1, 1]} : vector<4x64xf32> to vector<1x64xf32>
    %c3 = arith.constant 3 : index
    %c0_115 = arith.constant 0 : index
    %c0_116 = arith.constant 0 : index
    %146 = vector.load %arg5[%c3, %c0_115, %c0_116] : memref<4x64x128xf32, #tpu.memory_space<vmem>>, vector<1x64x128xf32>
    %147 = vector.shape_cast %146 : vector<1x64x128xf32> to vector<64x128xf32>
    %cst_117 = arith.constant dense<0.000000e+00> : vector<1x128xf32>
    %148 = tpu.matmul %145, %147, %cst_117 {dimension_numbers = #tpu.dot_dimension_numbers<[1], [0], [0], [1], [0, 0, 1, 1], [], []>} : vector<1x64xf32>, vector<64x128xf32>, vector<1x128xf32> -> vector<1x128xf32>
    %149 = arith.addf %144, %148 : vector<1x128xf32>
    %c0_118 = arith.constant 0 : index
    %c0_119 = arith.constant 0 : index
    %150 = vector.load %arg6[%c0_118, %c0_119] : memref<1x128xf32, #tpu.memory_space<vmem>>, vector<1x128xf32>
    %151 = arith.addf %149, %150 : vector<1x128xf32>
    %cst_120 = arith.constant 0.000000e+00 : f32
    %152 = vector.broadcast %cst_120 : f32 to vector<1x128xf32>
    %153 = arith.maximumf %151, %152 : vector<1x128xf32>
    %c0_121 = arith.constant 0 : index
    %c0_122 = arith.constant 0 : index
    %154 = vector.load %arg7[%c0_121, %c0_122] : memref<128x128xf32, #tpu.memory_space<vmem>>, vector<128x128xf32>
    %cst_123 = arith.constant dense<0.000000e+00> : vector<1x128xf32>
    %155 = tpu.matmul %153, %154, %cst_123 {dimension_numbers = #tpu.dot_dimension_numbers<[1], [0], [0], [1], [0, 0, 1, 1], [], []>} : vector<1x128xf32>, vector<128x128xf32>, vector<1x128xf32> -> vector<1x128xf32>
    %c0_124 = arith.constant 0 : index
    %c0_125 = arith.constant 0 : index
    %156 = vector.load %arg8[%c0_124, %c0_125] : memref<1x128xf32, #tpu.memory_space<vmem>>, vector<1x128xf32>
    %157 = arith.addf %155, %156 : vector<1x128xf32>
    %cst_126 = arith.constant 0.000000e+00 : f32
    %158 = vector.broadcast %cst_126 : f32 to vector<1x128xf32>
    %159 = arith.maximumf %157, %158 : vector<1x128xf32>
    %c0_127 = arith.constant 0 : index
    %c0_128 = arith.constant 0 : index
    %160 = vector.load %arg9[%c0_127, %c0_128] : memref<128x128xf32, #tpu.memory_space<vmem>>, vector<128x128xf32>
    %cst_129 = arith.constant dense<0.000000e+00> : vector<1x128xf32>
    %161 = tpu.matmul %159, %160, %cst_129 {dimension_numbers = #tpu.dot_dimension_numbers<[1], [0], [0], [1], [0, 0, 1, 1], [], []>} : vector<1x128xf32>, vector<128x128xf32>, vector<1x128xf32> -> vector<1x128xf32>
    %c0_130 = arith.constant 0 : index
    %c0_131 = arith.constant 0 : index
    %162 = vector.load %arg10[%c0_130, %c0_131] : memref<1x128xf32, #tpu.memory_space<vmem>>, vector<1x128xf32>
    %163 = arith.addf %161, %162 : vector<1x128xf32>
    %c0_132 = arith.constant 0 : index
    %c0_133 = arith.constant 0 : index
    %164 = vector.load %arg11[%c0_132, %c0_133] : memref<2x128xf32, #tpu.memory_space<vmem>>, vector<1x128xf32>
    tpu.vector_store %arg11[%c0_132, %c0_133], %163 {strides = array<i32>} : memref<2x128xf32, #tpu.memory_space<vmem>>, vector<1x128xf32>,
    %c1_134 = arith.constant 1 : index
    %c0_135 = arith.constant 0 : index
    %c0_136 = arith.constant 0 : index
    %165 = vector.load %arg0[%c1_134, %c0_135, %c0_136] : memref<2x18x18xf32, #tpu.memory_space<vmem>>, vector<1x18x18xf32>
    %166 = vector.shape_cast %165 : vector<1x18x18xf32> to vector<18x18xf32>
    %cst_137 = arith.constant 0.000000e+00 : f32
    %167 = vector.broadcast %cst_137 : f32 to vector<4x128xf32>
    %168 = vector.extract_strided_slice %166 {offsets = [0, 0], sizes = [4, 18], strides = [1, 1]} : vector<18x18xf32> to vector<4x18xf32>
    %c0_138 = arith.constant 0 : index
    %c0_139 = arith.constant 0 : index
    %c0_140 = arith.constant 0 : index
    %169 = vector.load %arg1[%c0_138, %c0_139, %c0_140] : memref<3x18x128xf32, #tpu.memory_space<vmem>>, vector<1x18x128xf32>
    %170 = vector.shape_cast %169 : vector<1x18x128xf32> to vector<18x128xf32>
    %cst_141 = arith.constant dense<0.000000e+00> : vector<4x128xf32>
    %171 = tpu.matmul %168, %170, %cst_141 {dimension_numbers = #tpu.dot_dimension_numbers<[1], [0], [0], [1], [0, 0, 1, 1], [], []>} : vector<4x18xf32>, vector<18x128xf32>, vector<4x128xf32> -> vector<4x128xf32>
    %172 = arith.addf %167, %171 : vector<4x128xf32>
    %173 = vector.extract_strided_slice %166 {offsets = [5, 0], sizes = [4, 18], strides = [1, 1]} : vector<18x18xf32> to vector<4x18xf32>
    %c1_142 = arith.constant 1 : index
    %c0_143 = arith.constant 0 : index
    %c0_144 = arith.constant 0 : index
    %174 = vector.load %arg1[%c1_142, %c0_143, %c0_144] : memref<3x18x128xf32, #tpu.memory_space<vmem>>, vector<1x18x128xf32>
    %175 = vector.shape_cast %174 : vector<1x18x128xf32> to vector<18x128xf32>
    %cst_145 = arith.constant dense<0.000000e+00> : vector<4x128xf32>
    %176 = tpu.matmul %173, %175, %cst_145 {dimension_numbers = #tpu.dot_dimension_numbers<[1], [0], [0], [1], [0, 0, 1, 1], [], []>} : vector<4x18xf32>, vector<18x128xf32>, vector<4x128xf32> -> vector<4x128xf32>
    %177 = arith.addf %172, %176 : vector<4x128xf32>
    %178 = vector.extract_strided_slice %166 {offsets = [10, 0], sizes = [4, 18], strides = [1, 1]} : vector<18x18xf32> to vector<4x18xf32>
    %c2_146 = arith.constant 2 : index
    %c0_147 = arith.constant 0 : index
    %c0_148 = arith.constant 0 : index
    %179 = vector.load %arg1[%c2_146, %c0_147, %c0_148] : memref<3x18x128xf32, #tpu.memory_space<vmem>>, vector<1x18x128xf32>
    %180 = vector.shape_cast %179 : vector<1x18x128xf32> to vector<18x128xf32>
    %cst_149 = arith.constant dense<0.000000e+00> : vector<4x128xf32>
    %181 = tpu.matmul %178, %180, %cst_149 {dimension_numbers = #tpu.dot_dimension_numbers<[1], [0], [0], [1], [0, 0, 1, 1], [], []>} : vector<4x18xf32>, vector<18x128xf32>, vector<4x128xf32> -> vector<4x128xf32>
    %182 = arith.addf %177, %181 : vector<4x128xf32>
    %cst_150 = arith.constant 0.000000e+00 : f32
    %183 = vector.broadcast %cst_150 : f32 to vector<4x128xf32>
    %184 = vector.extract_strided_slice %166 {offsets = [5, 0], sizes = [4, 18], strides = [1, 1]} : vector<18x18xf32> to vector<4x18xf32>
    %c0_151 = arith.constant 0 : index
    %c0_152 = arith.constant 0 : index
    %c0_153 = arith.constant 0 : index
    %185 = vector.load %arg1[%c0_151, %c0_152, %c0_153] : memref<3x18x128xf32, #tpu.memory_space<vmem>>, vector<1x18x128xf32>
    %186 = vector.shape_cast %185 : vector<1x18x128xf32> to vector<18x128xf32>
    %cst_154 = arith.constant dense<0.000000e+00> : vector<4x128xf32>
    %187 = tpu.matmul %184, %186, %cst_154 {dimension_numbers = #tpu.dot_dimension_numbers<[1], [0], [0], [1], [0, 0, 1, 1], [], []>} : vector<4x18xf32>, vector<18x128xf32>, vector<4x128xf32> -> vector<4x128xf32>
    %188 = arith.addf %183, %187 : vector<4x128xf32>
    %189 = vector.extract_strided_slice %166 {offsets = [10, 0], sizes = [4, 18], strides = [1, 1]} : vector<18x18xf32> to vector<4x18xf32>
    %c1_155 = arith.constant 1 : index
    %c0_156 = arith.constant 0 : index
    %c0_157 = arith.constant 0 : index
    %190 = vector.load %arg1[%c1_155, %c0_156, %c0_157] : memref<3x18x128xf32, #tpu.memory_space<vmem>>, vector<1x18x128xf32>
    %191 = vector.shape_cast %190 : vector<1x18x128xf32> to vector<18x128xf32>
    %cst_158 = arith.constant dense<0.000000e+00> : vector<4x128xf32>
    %192 = tpu.matmul %189, %191, %cst_158 {dimension_numbers = #tpu.dot_dimension_numbers<[1], [0], [0], [1], [0, 0, 1, 1], [], []>} : vector<4x18xf32>, vector<18x128xf32>, vector<4x128xf32> -> vector<4x128xf32>
    %193 = arith.addf %188, %192 : vector<4x128xf32>
    %194 = vector.extract_strided_slice %166 {offsets = [14, 0], sizes = [4, 18], strides = [1, 1]} : vector<18x18xf32> to vector<4x18xf32>
    %c2_159 = arith.constant 2 : index
    %c0_160 = arith.constant 0 : index
    %c0_161 = arith.constant 0 : index
    %195 = vector.load %arg1[%c2_159, %c0_160, %c0_161] : memref<3x18x128xf32, #tpu.memory_space<vmem>>, vector<1x18x128xf32>
    %196 = vector.shape_cast %195 : vector<1x18x128xf32> to vector<18x128xf32>
    %cst_162 = arith.constant dense<0.000000e+00> : vector<4x128xf32>
    %197 = tpu.matmul %194, %196, %cst_162 {dimension_numbers = #tpu.dot_dimension_numbers<[1], [0], [0], [1], [0, 0, 1, 1], [], []>} : vector<4x18xf32>, vector<18x128xf32>, vector<4x128xf32> -> vector<4x128xf32>
    %198 = arith.addf %193, %197 : vector<4x128xf32>
    %cst_163 = arith.constant 0.000000e+00 : f32
    %199 = vector.broadcast %cst_163 : f32 to vector<4x128xf32>
    %200 = vector.extract_strided_slice %166 {offsets = [10, 0], sizes = [4, 18], strides = [1, 1]} : vector<18x18xf32> to vector<4x18xf32>
    %c0_164 = arith.constant 0 : index
    %c0_165 = arith.constant 0 : index
    %c0_166 = arith.constant 0 : index
    %201 = vector.load %arg1[%c0_164, %c0_165, %c0_166] : memref<3x18x128xf32, #tpu.memory_space<vmem>>, vector<1x18x128xf32>
    %202 = vector.shape_cast %201 : vector<1x18x128xf32> to vector<18x128xf32>
    %cst_167 = arith.constant dense<0.000000e+00> : vector<4x128xf32>
    %203 = tpu.matmul %200, %202, %cst_167 {dimension_numbers = #tpu.dot_dimension_numbers<[1], [0], [0], [1], [0, 0, 1, 1], [], []>} : vector<4x18xf32>, vector<18x128xf32>, vector<4x128xf32> -> vector<4x128xf32>
    %204 = arith.addf %199, %203 : vector<4x128xf32>
    %205 = vector.extract_strided_slice %166 {offsets = [14, 0], sizes = [4, 18], strides = [1, 1]} : vector<18x18xf32> to vector<4x18xf32>
    %c1_168 = arith.constant 1 : index
    %c0_169 = arith.constant 0 : index
    %c0_170 = arith.constant 0 : index
    %206 = vector.load %arg1[%c1_168, %c0_169, %c0_170] : memref<3x18x128xf32, #tpu.memory_space<vmem>>, vector<1x18x128xf32>
    %207 = vector.shape_cast %206 : vector<1x18x128xf32> to vector<18x128xf32>
    %cst_171 = arith.constant dense<0.000000e+00> : vector<4x128xf32>
    %208 = tpu.matmul %205, %207, %cst_171 {dimension_numbers = #tpu.dot_dimension_numbers<[1], [0], [0], [1], [0, 0, 1, 1], [], []>} : vector<4x18xf32>, vector<18x128xf32>, vector<4x128xf32> -> vector<4x128xf32>
    %209 = arith.addf %204, %208 : vector<4x128xf32>
    %210 = vector.extract_strided_slice %166 {offsets = [1, 0], sizes = [4, 18], strides = [1, 1]} : vector<18x18xf32> to vector<4x18xf32>
    %c2_172 = arith.constant 2 : index
    %c0_173 = arith.constant 0 : index
    %c0_174 = arith.constant 0 : index
    %211 = vector.load %arg1[%c2_172, %c0_173, %c0_174] : memref<3x18x128xf32, #tpu.memory_space<vmem>>, vector<1x18x128xf32>
    %212 = vector.shape_cast %211 : vector<1x18x128xf32> to vector<18x128xf32>
    %cst_175 = arith.constant dense<0.000000e+00> : vector<4x128xf32>
    %213 = tpu.matmul %210, %212, %cst_175 {dimension_numbers = #tpu.dot_dimension_numbers<[1], [0], [0], [1], [0, 0, 1, 1], [], []>} : vector<4x18xf32>, vector<18x128xf32>, vector<4x128xf32> -> vector<4x128xf32>
    %214 = arith.addf %209, %213 : vector<4x128xf32>
    %cst_176 = arith.constant 0.000000e+00 : f32
    %215 = vector.broadcast %cst_176 : f32 to vector<4x128xf32>
    %216 = vector.extract_strided_slice %166 {offsets = [14, 0], sizes = [4, 18], strides = [1, 1]} : vector<18x18xf32> to vector<4x18xf32>
    %c0_177 = arith.constant 0 : index
    %c0_178 = arith.constant 0 : index
    %c0_179 = arith.constant 0 : index
    %217 = vector.load %arg1[%c0_177, %c0_178, %c0_179] : memref<3x18x128xf32, #tpu.memory_space<vmem>>, vector<1x18x128xf32>
    %218 = vector.shape_cast %217 : vector<1x18x128xf32> to vector<18x128xf32>
    %cst_180 = arith.constant dense<0.000000e+00> : vector<4x128xf32>
    %219 = tpu.matmul %216, %218, %cst_180 {dimension_numbers = #tpu.dot_dimension_numbers<[1], [0], [0], [1], [0, 0, 1, 1], [], []>} : vector<4x18xf32>, vector<18x128xf32>, vector<4x128xf32> -> vector<4x128xf32>
    %220 = arith.addf %215, %219 : vector<4x128xf32>
    %221 = vector.extract_strided_slice %166 {offsets = [1, 0], sizes = [4, 18], strides = [1, 1]} : vector<18x18xf32> to vector<4x18xf32>
    %c1_181 = arith.constant 1 : index
    %c0_182 = arith.constant 0 : index
    %c0_183 = arith.constant 0 : index
    %222 = vector.load %arg1[%c1_181, %c0_182, %c0_183] : memref<3x18x128xf32, #tpu.memory_space<vmem>>, vector<1x18x128xf32>
    %223 = vector.shape_cast %222 : vector<1x18x128xf32> to vector<18x128xf32>
    %cst_184 = arith.constant dense<0.000000e+00> : vector<4x128xf32>
    %224 = tpu.matmul %221, %223, %cst_184 {dimension_numbers = #tpu.dot_dimension_numbers<[1], [0], [0], [1], [0, 0, 1, 1], [], []>} : vector<4x18xf32>, vector<18x128xf32>, vector<4x128xf32> -> vector<4x128xf32>
    %225 = arith.addf %220, %224 : vector<4x128xf32>
    %226 = vector.extract_strided_slice %166 {offsets = [6, 0], sizes = [4, 18], strides = [1, 1]} : vector<18x18xf32> to vector<4x18xf32>
    %c2_185 = arith.constant 2 : index
    %c0_186 = arith.constant 0 : index
    %c0_187 = arith.constant 0 : index
    %227 = vector.load %arg1[%c2_185, %c0_186, %c0_187] : memref<3x18x128xf32, #tpu.memory_space<vmem>>, vector<1x18x128xf32>
    %228 = vector.shape_cast %227 : vector<1x18x128xf32> to vector<18x128xf32>
    %cst_188 = arith.constant dense<0.000000e+00> : vector<4x128xf32>
    %229 = tpu.matmul %226, %228, %cst_188 {dimension_numbers = #tpu.dot_dimension_numbers<[1], [0], [0], [1], [0, 0, 1, 1], [], []>} : vector<4x18xf32>, vector<18x128xf32>, vector<4x128xf32> -> vector<4x128xf32>
    %230 = arith.addf %225, %229 : vector<4x128xf32>
    %231 = arith.maximumf %182, %198 : vector<4x128xf32>
    %232 = arith.maximumf %214, %230 : vector<4x128xf32>
    %233 = vector.extract_strided_slice %231 {offsets = [0, 0], sizes = [4, 64], strides = [1, 1]} : vector<4x128xf32> to vector<4x64xf32>
    %234 = vector.extract_strided_slice %231 {offsets = [0, 64], sizes = [4, 64], strides = [1, 1]} : vector<4x128xf32> to vector<4x64xf32>
    %235 = arith.maximumf %233, %234 : vector<4x64xf32>
    %236 = vector.extract_strided_slice %232 {offsets = [0, 0], sizes = [4, 64], strides = [1, 1]} : vector<4x128xf32> to vector<4x64xf32>
    %237 = vector.extract_strided_slice %232 {offsets = [0, 64], sizes = [4, 64], strides = [1, 1]} : vector<4x128xf32> to vector<4x64xf32>
    %238 = arith.maximumf %236, %237 : vector<4x64xf32>
    %c0_189 = arith.constant 0 : index
    %c0_190 = arith.constant 0 : index
    %239 = vector.load %arg2[%c0_189, %c0_190] : memref<1x64xf32, #tpu.memory_space<vmem>>, vector<1x64xf32>
    %240 = vector.broadcast %239 : vector<1x64xf32> to vector<4x64xf32>
    %241 = arith.addf %235, %240 : vector<4x64xf32>
    %cst_191 = arith.constant 0.000000e+00 : f32
    %242 = vector.broadcast %cst_191 : f32 to vector<4x64xf32>
    %243 = arith.maximumf %241, %242 : vector<4x64xf32>
    %c0_192 = arith.constant 0 : index
    %c0_193 = arith.constant 0 : index
    %244 = vector.load %arg2[%c0_192, %c0_193] : memref<1x64xf32, #tpu.memory_space<vmem>>, vector<1x64xf32>
    %245 = vector.broadcast %244 : vector<1x64xf32> to vector<4x64xf32>
    %246 = arith.addf %238, %245 : vector<4x64xf32>
    %cst_194 = arith.constant 0.000000e+00 : f32
    %247 = vector.broadcast %cst_194 : f32 to vector<4x64xf32>
    %248 = arith.maximumf %246, %247 : vector<4x64xf32>
    %c1_195 = arith.constant 1 : index
    %c8_196 = arith.constant 8 : index
    %249 = vector.load %arg12[%c1_195, %c8_196] : memref<10x80xf32, #tpu.memory_space<vmem>>, vector<4x64xf32>
    tpu.vector_store %arg12[%c1_195, %c8_196], %248 {strides = array<i32>} : memref<10x80xf32, #tpu.memory_space<vmem>>, vector<4x64xf32>,
    %c5_197 = arith.constant 5 : index
    %c8_198 = arith.constant 8 : index
    %250 = vector.load %arg12[%c5_197, %c8_198] : memref<10x80xf32, #tpu.memory_space<vmem>>, vector<4x64xf32>
    tpu.vector_store %arg12[%c5_197, %c8_198], %243 {strides = array<i32>} : memref<10x80xf32, #tpu.memory_space<vmem>>, vector<4x64xf32>,
    %cst_199 = arith.constant 0.000000e+00 : f32
    %251 = vector.broadcast %cst_199 : f32 to vector<4x128xf32>
    %c0_200 = arith.constant 0 : index
    %c0_201 = arith.constant 0 : index
    %252 = vector.load %arg12[%c0_200, %c0_201] : memref<10x80xf32, #tpu.memory_space<vmem>>, vector<4x80xf32>
    %c0_202 = arith.constant 0 : index
    %c0_203 = arith.constant 0 : index
    %c0_204 = arith.constant 0 : index
    %253 = vector.load %arg3[%c0_202, %c0_203, %c0_204] : memref<3x80x128xf32, #tpu.memory_space<vmem>>, vector<1x80x128xf32>
    %254 = vector.shape_cast %253 : vector<1x80x128xf32> to vector<80x128xf32>
    %cst_205 = arith.constant dense<0.000000e+00> : vector<4x128xf32>
    %255 = tpu.matmul %252, %254, %cst_205 {dimension_numbers = #tpu.dot_dimension_numbers<[1], [0], [0], [1], [0, 0, 1, 1], [], []>} : vector<4x80xf32>, vector<80x128xf32>, vector<4x128xf32> -> vector<4x128xf32>
    %256 = arith.addf %251, %255 : vector<4x128xf32>
    %c5_206 = arith.constant 5 : index
    %c0_207 = arith.constant 0 : index
    %257 = vector.load %arg12[%c5_206, %c0_207] : memref<10x80xf32, #tpu.memory_space<vmem>>, vector<4x80xf32>
    %c1_208 = arith.constant 1 : index
    %c0_209 = arith.constant 0 : index
    %c0_210 = arith.constant 0 : index
    %258 = vector.load %arg3[%c1_208, %c0_209, %c0_210] : memref<3x80x128xf32, #tpu.memory_space<vmem>>, vector<1x80x128xf32>
    %259 = vector.shape_cast %258 : vector<1x80x128xf32> to vector<80x128xf32>
    %cst_211 = arith.constant dense<0.000000e+00> : vector<4x128xf32>
    %260 = tpu.matmul %257, %259, %cst_211 {dimension_numbers = #tpu.dot_dimension_numbers<[1], [0], [0], [1], [0, 0, 1, 1], [], []>} : vector<4x80xf32>, vector<80x128xf32>, vector<4x128xf32> -> vector<4x128xf32>
    %261 = arith.addf %256, %260 : vector<4x128xf32>
    %c1_212 = arith.constant 1 : index
    %c0_213 = arith.constant 0 : index
    %262 = vector.load %arg12[%c1_212, %c0_213] : memref<10x80xf32, #tpu.memory_space<vmem>>, vector<4x80xf32>
    %c2_214 = arith.constant 2 : index
    %c0_215 = arith.constant 0 : index
    %c0_216 = arith.constant 0 : index
    %263 = vector.load %arg3[%c2_214, %c0_215, %c0_216] : memref<3x80x128xf32, #tpu.memory_space<vmem>>, vector<1x80x128xf32>
    %264 = vector.shape_cast %263 : vector<1x80x128xf32> to vector<80x128xf32>
    %cst_217 = arith.constant dense<0.000000e+00> : vector<4x128xf32>
    %265 = tpu.matmul %262, %264, %cst_217 {dimension_numbers = #tpu.dot_dimension_numbers<[1], [0], [0], [1], [0, 0, 1, 1], [], []>} : vector<4x80xf32>, vector<80x128xf32>, vector<4x128xf32> -> vector<4x128xf32>
    %266 = arith.addf %261, %265 : vector<4x128xf32>
    %cst_218 = arith.constant 0.000000e+00 : f32
    %267 = vector.broadcast %cst_218 : f32 to vector<4x128xf32>
    %c5_219 = arith.constant 5 : index
    %c0_220 = arith.constant 0 : index
    %268 = vector.load %arg12[%c5_219, %c0_220] : memref<10x80xf32, #tpu.memory_space<vmem>>, vector<4x80xf32>
    %c0_221 = arith.constant 0 : index
    %c0_222 = arith.constant 0 : index
    %c0_223 = arith.constant 0 : index
    %269 = vector.load %arg3[%c0_221, %c0_222, %c0_223] : memref<3x80x128xf32, #tpu.memory_space<vmem>>, vector<1x80x128xf32>
    %270 = vector.shape_cast %269 : vector<1x80x128xf32> to vector<80x128xf32>
    %cst_224 = arith.constant dense<0.000000e+00> : vector<4x128xf32>
    %271 = tpu.matmul %268, %270, %cst_224 {dimension_numbers = #tpu.dot_dimension_numbers<[1], [0], [0], [1], [0, 0, 1, 1], [], []>} : vector<4x80xf32>, vector<80x128xf32>, vector<4x128xf32> -> vector<4x128xf32>
    %272 = arith.addf %267, %271 : vector<4x128xf32>
    %c1_225 = arith.constant 1 : index
    %c0_226 = arith.constant 0 : index
    %273 = vector.load %arg12[%c1_225, %c0_226] : memref<10x80xf32, #tpu.memory_space<vmem>>, vector<4x80xf32>
    %c1_227 = arith.constant 1 : index
    %c0_228 = arith.constant 0 : index
    %c0_229 = arith.constant 0 : index
    %274 = vector.load %arg3[%c1_227, %c0_228, %c0_229] : memref<3x80x128xf32, #tpu.memory_space<vmem>>, vector<1x80x128xf32>
    %275 = vector.shape_cast %274 : vector<1x80x128xf32> to vector<80x128xf32>
    %cst_230 = arith.constant dense<0.000000e+00> : vector<4x128xf32>
    %276 = tpu.matmul %273, %275, %cst_230 {dimension_numbers = #tpu.dot_dimension_numbers<[1], [0], [0], [1], [0, 0, 1, 1], [], []>} : vector<4x80xf32>, vector<80x128xf32>, vector<4x128xf32> -> vector<4x128xf32>
    %277 = arith.addf %272, %276 : vector<4x128xf32>
    %c6_231 = arith.constant 6 : index
    %c0_232 = arith.constant 0 : index
    %278 = vector.load %arg12[%c6_231, %c0_232] : memref<10x80xf32, #tpu.memory_space<vmem>>, vector<4x80xf32>
    %c2_233 = arith.constant 2 : index
    %c0_234 = arith.constant 0 : index
    %c0_235 = arith.constant 0 : index
    %279 = vector.load %arg3[%c2_233, %c0_234, %c0_235] : memref<3x80x128xf32, #tpu.memory_space<vmem>>, vector<1x80x128xf32>
    %280 = vector.shape_cast %279 : vector<1x80x128xf32> to vector<80x128xf32>
    %cst_236 = arith.constant dense<0.000000e+00> : vector<4x128xf32>
    %281 = tpu.matmul %278, %280, %cst_236 {dimension_numbers = #tpu.dot_dimension_numbers<[1], [0], [0], [1], [0, 0, 1, 1], [], []>} : vector<4x80xf32>, vector<80x128xf32>, vector<4x128xf32> -> vector<4x128xf32>
    %282 = arith.addf %277, %281 : vector<4x128xf32>
    %283 = arith.maximumf %266, %282 : vector<4x128xf32>
    %284 = vector.extract_strided_slice %283 {offsets = [0, 0], sizes = [4, 64], strides = [1, 1]} : vector<4x128xf32> to vector<4x64xf32>
    %285 = vector.extract_strided_slice %283 {offsets = [0, 64], sizes = [4, 64], strides = [1, 1]} : vector<4x128xf32> to vector<4x64xf32>
    %286 = arith.maximumf %284, %285 : vector<4x64xf32>
    %c0_237 = arith.constant 0 : index
    %c0_238 = arith.constant 0 : index
    %287 = vector.load %arg4[%c0_237, %c0_238] : memref<1x64xf32, #tpu.memory_space<vmem>>, vector<1x64xf32>
    %288 = vector.broadcast %287 : vector<1x64xf32> to vector<4x64xf32>
    %289 = arith.addf %286, %288 : vector<4x64xf32>
    %cst_239 = arith.constant 0.000000e+00 : f32
    %290 = vector.broadcast %cst_239 : f32 to vector<4x64xf32>
    %291 = arith.maximumf %289, %290 : vector<4x64xf32>
    %cst_240 = arith.constant 0.000000e+00 : f32
    %292 = vector.broadcast %cst_240 : f32 to vector<1x128xf32>
    %293 = vector.extract_strided_slice %291 {offsets = [0, 0], sizes = [1, 64], strides = [1, 1]} : vector<4x64xf32> to vector<1x64xf32>
    %c0_241 = arith.constant 0 : index
    %c0_242 = arith.constant 0 : index
    %c0_243 = arith.constant 0 : index
    %294 = vector.load %arg5[%c0_241, %c0_242, %c0_243] : memref<4x64x128xf32, #tpu.memory_space<vmem>>, vector<1x64x128xf32>
    %295 = vector.shape_cast %294 : vector<1x64x128xf32> to vector<64x128xf32>
    %cst_244 = arith.constant dense<0.000000e+00> : vector<1x128xf32>
    %296 = tpu.matmul %293, %295, %cst_244 {dimension_numbers = #tpu.dot_dimension_numbers<[1], [0], [0], [1], [0, 0, 1, 1], [], []>} : vector<1x64xf32>, vector<64x128xf32>, vector<1x128xf32> -> vector<1x128xf32>
    %297 = arith.addf %292, %296 : vector<1x128xf32>
    %298 = vector.extract_strided_slice %291 {offsets = [1, 0], sizes = [1, 64], strides = [1, 1]} : vector<4x64xf32> to vector<1x64xf32>
    %c1_245 = arith.constant 1 : index
    %c0_246 = arith.constant 0 : index
    %c0_247 = arith.constant 0 : index
    %299 = vector.load %arg5[%c1_245, %c0_246, %c0_247] : memref<4x64x128xf32, #tpu.memory_space<vmem>>, vector<1x64x128xf32>
    %300 = vector.shape_cast %299 : vector<1x64x128xf32> to vector<64x128xf32>
    %cst_248 = arith.constant dense<0.000000e+00> : vector<1x128xf32>
    %301 = tpu.matmul %298, %300, %cst_248 {dimension_numbers = #tpu.dot_dimension_numbers<[1], [0], [0], [1], [0, 0, 1, 1], [], []>} : vector<1x64xf32>, vector<64x128xf32>, vector<1x128xf32> -> vector<1x128xf32>
    %302 = arith.addf %297, %301 : vector<1x128xf32>
    %303 = vector.extract_strided_slice %291 {offsets = [2, 0], sizes = [1, 64], strides = [1, 1]} : vector<4x64xf32> to vector<1x64xf32>
    %c2_249 = arith.constant 2 : index
    %c0_250 = arith.constant 0 : index
    %c0_251 = arith.constant 0 : index
    %304 = vector.load %arg5[%c2_249, %c0_250, %c0_251] : memref<4x64x128xf32, #tpu.memory_space<vmem>>, vector<1x64x128xf32>
    %305 = vector.shape_cast %304 : vector<1x64x128xf32> to vector<64x128xf32>
    %cst_252 = arith.constant dense<0.000000e+00> : vector<1x128xf32>
    %306 = tpu.matmul %303, %305, %cst_252 {dimension_numbers = #tpu.dot_dimension_numbers<[1], [0], [0], [1], [0, 0, 1, 1], [], []>} : vector<1x64xf32>, vector<64x128xf32>, vector<1x128xf32> -> vector<1x128xf32>
    %307 = arith.addf %302, %306 : vector<1x128xf32>
    %308 = vector.extract_strided_slice %291 {offsets = [3, 0], sizes = [1, 64], strides = [1, 1]} : vector<4x64xf32> to vector<1x64xf32>
    %c3_253 = arith.constant 3 : index
    %c0_254 = arith.constant 0 : index
    %c0_255 = arith.constant 0 : index
    %309 = vector.load %arg5[%c3_253, %c0_254, %c0_255] : memref<4x64x128xf32, #tpu.memory_space<vmem>>, vector<1x64x128xf32>
    %310 = vector.shape_cast %309 : vector<1x64x128xf32> to vector<64x128xf32>
    %cst_256 = arith.constant dense<0.000000e+00> : vector<1x128xf32>
    %311 = tpu.matmul %308, %310, %cst_256 {dimension_numbers = #tpu.dot_dimension_numbers<[1], [0], [0], [1], [0, 0, 1, 1], [], []>} : vector<1x64xf32>, vector<64x128xf32>, vector<1x128xf32> -> vector<1x128xf32>
    %312 = arith.addf %307, %311 : vector<1x128xf32>
    %c0_257 = arith.constant 0 : index
    %c0_258 = arith.constant 0 : index
    %313 = vector.load %arg6[%c0_257, %c0_258] : memref<1x128xf32, #tpu.memory_space<vmem>>, vector<1x128xf32>
    %314 = arith.addf %312, %313 : vector<1x128xf32>
    %cst_259 = arith.constant 0.000000e+00 : f32
    %315 = vector.broadcast %cst_259 : f32 to vector<1x128xf32>
    %316 = arith.maximumf %314, %315 : vector<1x128xf32>
    %c0_260 = arith.constant 0 : index
    %c0_261 = arith.constant 0 : index
    %317 = vector.load %arg7[%c0_260, %c0_261] : memref<128x128xf32, #tpu.memory_space<vmem>>, vector<128x128xf32>
    %cst_262 = arith.constant dense<0.000000e+00> : vector<1x128xf32>
    %318 = tpu.matmul %316, %317, %cst_262 {dimension_numbers = #tpu.dot_dimension_numbers<[1], [0], [0], [1], [0, 0, 1, 1], [], []>} : vector<1x128xf32>, vector<128x128xf32>, vector<1x128xf32> -> vector<1x128xf32>
    %c0_263 = arith.constant 0 : index
    %c0_264 = arith.constant 0 : index
    %319 = vector.load %arg8[%c0_263, %c0_264] : memref<1x128xf32, #tpu.memory_space<vmem>>, vector<1x128xf32>
    %320 = arith.addf %318, %319 : vector<1x128xf32>
    %cst_265 = arith.constant 0.000000e+00 : f32
    %321 = vector.broadcast %cst_265 : f32 to vector<1x128xf32>
    %322 = arith.maximumf %320, %321 : vector<1x128xf32>
    %c0_266 = arith.constant 0 : index
    %c0_267 = arith.constant 0 : index
    %323 = vector.load %arg9[%c0_266, %c0_267] : memref<128x128xf32, #tpu.memory_space<vmem>>, vector<128x128xf32>
    %cst_268 = arith.constant dense<0.000000e+00> : vector<1x128xf32>
    %324 = tpu.matmul %322, %323, %cst_268 {dimension_numbers = #tpu.dot_dimension_numbers<[1], [0], [0], [1], [0, 0, 1, 1], [], []>} : vector<1x128xf32>, vector<128x128xf32>, vector<1x128xf32> -> vector<1x128xf32>
    %c0_269 = arith.constant 0 : index
    %c0_270 = arith.constant 0 : index
    %325 = vector.load %arg10[%c0_269, %c0_270] : memref<1x128xf32, #tpu.memory_space<vmem>>, vector<1x128xf32>
    %326 = arith.addf %324, %325 : vector<1x128xf32>
    %c1_271 = arith.constant 1 : index
    %c0_272 = arith.constant 0 : index
    %327 = vector.load %arg11[%c1_271, %c0_272] : memref<2x128xf32, #tpu.memory_space<vmem>>, vector<1x128xf32>
    tpu.vector_store %arg11[%c1_271, %c0_272], %326 {strides = array<i32>} : memref<2x128xf32, #tpu.memory_space<vmem>>, vector<1x128xf32>,
    return
  }
}

</mosaic_0001>

<llo_original>
// kernel: tile.13
$region0: #{tile.13}
  #allocation0 [shape = 's32[1]{0}', space=sflag, size = 0x4, scoped, tag = 'scoped memory for tile.13']
  %s0 = inlined_call_operand.vmem [shape: f32[8], index: 0, kind: input, shape index: {}]
  %s1 = inlined_call_operand.vmem [shape: f32[8,8], index: 1, kind: output, shape index: {}]
  // Predicated region
  $region2: #{tile.13} parent=0 // pred_check
    _
  $region3: #{tile.13} parent=0 // pred_check_branch
    %3 = sbr.rel (0) target = $region5
  $region4: #{tile.13} parent=0 // pred_region
    _
  $region5: #{tile.13} parent=0 // pred_fallthru
    _
  %v4 = vld [vmem:[%s0] ss:$0 sm:$0xff]
  %5 = vst [vmem:[%s1] sm:$0xff] %v4

// kernel: tile.14
$region0: #{tile.14}
  %s0 = inlined_call_operand.vmem [shape: f32[8,8], index: 0, kind: input, shape index: {}]
  %s1 = inlined_call_operand.vmem [shape: f32[1,64], index: 1, kind: output, shape index: {}]
  $region1: #{tile.14} parent=0
    #allocation0 [shape = 'u8[4096]{0}', space=vmem, size = 0x1000, scoped, tag = 'scoped mem for output reshape']
    %v2 = vld [vmem:[%s0] sm:$0x1]
    %vm3 = vcmask 64512
    %4 = vst.msk [vmem:[#allocation0] sm:$0x1] %vm3, %v2
    %s5 = scalar_lea.vmem %s0, 7
    %v6 = vld [vmem:[%s5] sm:$0x1]
    %7 = vrot.lane.b32.xlu0 %v6, 56
    %v8 = vpop.permute.xlu0 %7
    %vm9 = vcmask 523712
    %10 = vst.msk [vmem:[#allocation0] sm:$0x1] %vm9, %v8
    %s11 = scalar_lea.vmem %s0, 6
    %v12 = vld [vmem:[%s11] sm:$0x1]
    %13 = vrot.lane.b32.xlu0 %v12, 48
    %v14 = vpop.permute.xlu0 %13
    %vm15 = vcmask 458112
    %16 = vst.msk [vmem:[#allocation0] sm:$0x1] %vm15, %v14
    %s17 = scalar_lea.vmem %s0, 5
    %v18 = vld [vmem:[%s17] sm:$0x1]
    %19 = vrot.lane.b32.xlu0 %v18, 40
    %v20 = vpop.permute.xlu0 %19
    %vm21 = vcmask 392512
    %22 = vst.msk [vmem:[#allocation0] sm:$0x1] %vm21, %v20
    %s23 = scalar_lea.vmem %s0, 4
    %v24 = vld [vmem:[%s23] sm:$0x1]
    %25 = vrot.lane.b32.xlu0 %v24, 32
    %v26 = vpop.permute.xlu0 %25
    %vm27 = vcmask 326912
    %28 = vst.msk [vmem:[#allocation0] sm:$0x1] %vm27, %v26
    %s29 = scalar_lea.vmem %s0, 3
    %v30 = vld [vmem:[%s29] sm:$0x1]
    %31 = vrot.lane.b32.xlu0 %v30, 24
    %v32 = vpop.permute.xlu0 %31
    %vm33 = vcmask 261312
    %34 = vst.msk [vmem:[#allocation0] sm:$0x1] %vm33, %v32
    %s35 = scalar_lea.vmem %s0, 2
    %v36 = vld [vmem:[%s35] sm:$0x1]
    %37 = vrot.lane.b32.xlu0 %v36, 16
    %v38 = vpop.permute.xlu0 %37
    %vm39 = vcmask 195712
    %40 = vst.msk [vmem:[#allocation0] sm:$0x1] %vm39, %v38
    %s41 = scalar_lea.vmem %s0, 1
    %v42 = vld [vmem:[%s41] sm:$0x1]
    %43 = vrot.lane.b32.xlu0 %v42, 8
    %v44 = vpop.permute.xlu0 %43
    %vm45 = vcmask 130112
    %46 = vst.msk [vmem:[#allocation0] sm:$0x1] %vm45, %v44
    %s48 = sshllo.u32 0, 1
    %v50 = vld [vmem:[#allocation0] sm:%s48]
    %s51 = sshllo.u32 0, 1
    %52 = vst [vmem:[%s1] sm:%s51] %v50

// kernel: tile.18
$region0: #{tile.18}
  #allocation0 [shape = 's32[1]{0}', space=sflag, size = 0x4, scoped, tag = 'scoped memory for tile.18']
  %s0 = inlined_call_operand.vmem [shape: f32[16], index: 0, kind: input, shape index: {}]
  %s1 = inlined_call_operand.vmem [shape: f32[4,16], index: 1, kind: output, shape index: {}]
  // Predicated region
  $region2: #{tile.18} parent=0 // pred_check
    _
  $region3: #{tile.18} parent=0 // pred_check_branch
    %3 = sbr.rel (0) target = $region5
  $region4: #{tile.18} parent=0 // pred_region
    _
  $region5: #{tile.18} parent=0 // pred_fallthru
    _
  %v4 = vld [vmem:[%s0] ss:$0 sm:$0xff]
  %5 = vst [vmem:[%s1] sm:$0xf] %v4

// kernel: tile.19
$region0: #{tile.19}
  %s0 = inlined_call_operand.vmem [shape: f32[4,16], index: 0, kind: input, shape index: {}]
  %s1 = inlined_call_operand.vmem [shape: f32[1,64], index: 1, kind: output, shape index: {}]
  $region1: #{tile.19} parent=0
    #allocation0 [shape = 'u8[4096]{0}', space=vmem, size = 0x1000, scoped, tag = 'scoped mem for output reshape']
    #allocation1 [shape = 'u8[4096]{0}', space=vmem, size = 0x1000, scoped, tag = 'scoped mem for input reshape']
    %s3 = sshllo.u32 0, 4
    %v4 = vld [vmem:[%s0] sm:%s3]
    %5 = vst [vmem:[#allocation1] sm:%s3] %v4
    %v6 = vld [vmem:[#allocation1] sm:$0x1]
    %vm7 = vcmask 130048
    %8 = vst.msk [vmem:[#allocation0] sm:$0x1] %vm7, %v6
    %s9 = scalar_lea.vmem [#allocation1], 3
    %v10 = vld [vmem:[%s9] sm:$0x1]
    %11 = vrot.lane.b32.xlu0 %v10, 48
    %v12 = vpop.permute.xlu0 %11
    %vm13 = vcmask 523648
    %14 = vst.msk [vmem:[#allocation0] sm:$0x1] %vm13, %v12
    %s15 = scalar_lea.vmem [#allocation1], 2
    %v16 = vld [vmem:[%s15] sm:$0x1]
    %17 = vrot.lane.b32.xlu0 %v16, 32
    %v18 = vpop.permute.xlu0 %17
    %vm19 = vcmask 392448
    %20 = vst.msk [vmem:[#allocation0] sm:$0x1] %vm19, %v18
    %s21 = scalar_lea.vmem [#allocation1], 1
    %v22 = vld [vmem:[%s21] sm:$0x1]
    %23 = vrot.lane.b32.xlu0 %v22, 16
    %v24 = vpop.permute.xlu0 %23
    %vm25 = vcmask 261248
    %26 = vst.msk [vmem:[#allocation0] sm:$0x1] %vm25, %v24
    %s28 = sshllo.u32 0, 1
    %v30 = vld [vmem:[#allocation0] sm:%s28]
    %s31 = sshllo.u32 0, 1
    %32 = vst [vmem:[%s1] sm:%s31] %v30

// kernel: mnist_net_forward.1
$region0: #{mnist_net_forward.1}
  #allocation0 [shape = 'u32[]', space=smem, size = 0x4, offset = 0x4, fixed_abs, tag = 'smem constant byte address 0x4 - core index']
  #allocation1 [shape = 'u32[144,128]{1,0:T(1,128)}', space=vmem, size = 0x12000, scoped, tag = 'internal scratch']
  #allocation2 [shape = 'f32[10,80]{1,0:T(8,128)}', space=vmem, size = 0x2000, scoped, tag = 'scratch operand']
  %s0 = inlined_call_operand.vmem [shape: f32[2,18,18], index: 0, kind: input, shape index: {}]
  %s1 = inlined_call_operand.vmem [shape: f32[3,18,128], index: 1, kind: input, shape index: {}]
  %s2 = inlined_call_operand.vmem [shape: f32[1,64], index: 2, kind: input, shape index: {}]
  %s3 = inlined_call_operand.vmem [shape: f32[3,80,128], index: 3, kind: input, shape index: {}]
  %s4 = inlined_call_operand.vmem [shape: f32[1,64], index: 4, kind: input, shape index: {}]
  %s5 = inlined_call_operand.vmem [shape: f32[4,64,128], index: 5, kind: input, shape index: {}]
  %s6 = inlined_call_operand.vmem [shape: f32[1,128], index: 6, kind: input, shape index: {}]
  %s7 = inlined_call_operand.vmem [shape: f32[128,128], index: 7, kind: input, shape index: {}]
  %s8 = inlined_call_operand.vmem [shape: f32[1,128], index: 8, kind: input, shape index: {}]
  %s9 = inlined_call_operand.vmem [shape: f32[128,128], index: 9, kind: input, shape index: {}]
  %s10 = inlined_call_operand.vmem [shape: f32[1,128], index: 10, kind: input, shape index: {}]
  %s11 = inlined_call_operand.hbm [shape: f32[2,128], index: 11, kind: output, shape index: {}]
  %s12 = sld [smem:[#allocation0]]
  $region54: #{mnist_net_forward.1} parent=0
    _
  %s14 = ssub.s32 1, %s12
  %s15 = scalar_select 0, %s14, %s12
  $region1: #{mnist_net_forward.1} parent=0
    #allocation3 [shape = 'u8[1024]{0}', space=vmem, size = 0x400, scoped, tag = 'output window, operand 0, single buffered']
    #allocation4 [shape = 's32[1]{0}', space=sflag, size = 0x4, scoped, tag = 'scoped memory for mnist_net_forward.1']
    %16 = vsyncpa [#allocation4], 0
    // Predicated region
    $region2: #{mnist_net_forward.1} parent=1 // pred_check
      _
    $region3: #{mnist_net_forward.1} parent=1 // pred_check_branch
      %18 = sbr.rel (0) target = $region5
    $region4: #{mnist_net_forward.1} parent=1 // pred_region
      _
    $region5: #{mnist_net_forward.1} parent=1 // pred_fallthru
      _
    // Predicated region
    $region6: #{mnist_net_forward.1} parent=1 // pred_check
      _
    $region7: #{mnist_net_forward.1} parent=1 // pred_check_branch
      %20 = sbr.rel (0) target = $region9
    $region8: #{mnist_net_forward.1} parent=1 // pred_region
      _
    $region9: #{mnist_net_forward.1} parent=1 // pred_fallthru
      _
    // Predicated region
    $region10: #{mnist_net_forward.1} parent=1 // pred_check
      _
    $region11: #{mnist_net_forward.1} parent=1 // pred_check_branch
      %22 = sbr.rel (0) target = $region13
    $region12: #{mnist_net_forward.1} parent=1 // pred_region
      _
    $region13: #{mnist_net_forward.1} parent=1 // pred_fallthru
      _
    // Predicated region
    $region14: #{mnist_net_forward.1} parent=1 // pred_check
      _
    $region15: #{mnist_net_forward.1} parent=1 // pred_check_branch
      %24 = sbr.rel (0) target = $region17
    $region16: #{mnist_net_forward.1} parent=1 // pred_region
      _
    $region17: #{mnist_net_forward.1} parent=1 // pred_fallthru
      _
    // Predicated region
    $region18: #{mnist_net_forward.1} parent=1 // pred_check
      _
    $region19: #{mnist_net_forward.1} parent=1 // pred_check_branch
      %26 = sbr.rel (0) target = $region21
    $region20: #{mnist_net_forward.1} parent=1 // pred_region
      _
    $region21: #{mnist_net_forward.1} parent=1 // pred_fallthru
      _
    // Predicated region
    $region22: #{mnist_net_forward.1} parent=1 // pred_check
      _
    $region23: #{mnist_net_forward.1} parent=1 // pred_check_branch
      %28 = sbr.rel (0) target = $region25
    $region24: #{mnist_net_forward.1} parent=1 // pred_region
      _
    $region25: #{mnist_net_forward.1} parent=1 // pred_fallthru
      _
    // Predicated region
    $region26: #{mnist_net_forward.1} parent=1 // pred_check
      _
    $region27: #{mnist_net_forward.1} parent=1 // pred_check_branch
      %30 = sbr.rel (0) target = $region29
    $region28: #{mnist_net_forward.1} parent=1 // pred_region
      _
    $region29: #{mnist_net_forward.1} parent=1 // pred_fallthru
      _
    // Predicated region
    $region30: #{mnist_net_forward.1} parent=1 // pred_check
      _
    $region31: #{mnist_net_forward.1} parent=1 // pred_check_branch
      %32 = sbr.rel (0) target = $region33
    $region32: #{mnist_net_forward.1} parent=1 // pred_region
      _
    $region33: #{mnist_net_forward.1} parent=1 // pred_fallthru
      _
    // Predicated region
    $region34: #{mnist_net_forward.1} parent=1 // pred_check
      _
    $region35: #{mnist_net_forward.1} parent=1 // pred_check_branch
      %34 = sbr.rel (0) target = $region37
    $region36: #{mnist_net_forward.1} parent=1 // pred_region
      _
    $region37: #{mnist_net_forward.1} parent=1 // pred_fallthru
      _
    // Predicated region
    $region38: #{mnist_net_forward.1} parent=1 // pred_check
      _
    $region39: #{mnist_net_forward.1} parent=1 // pred_check_branch
      %36 = sbr.rel (0) target = $region41
    $region40: #{mnist_net_forward.1} parent=1 // pred_region
      _
    $region41: #{mnist_net_forward.1} parent=1 // pred_fallthru
      _
    // Predicated region
    $region42: #{mnist_net_forward.1} parent=1 // pred_check
      _
    $region43: #{mnist_net_forward.1} parent=1 // pred_check_branch
      %38 = sbr.rel (0) target = $region45
    $region44: #{mnist_net_forward.1} parent=1 // pred_region
      _
    $region45: #{mnist_net_forward.1} parent=1 // pred_fallthru
      _
    %vm39 = vcmask 654336
    %40 = vst.msk [vmem:[#allocation2] sm:$0xff] %vm39, 0.0
    %vm41 = vcmask 648192
    %42 = vst.msk [vmem:[#allocation2 + $0x8] sm:$0x3] %vm41, 0.0
    %v43 = vld [vmem:[%s0] sm:$0xff]
    %v44 = vld [vmem:[%s0 + $0x8] sm:$0xff]
    %v45 = vld [vmem:[%s0 + $0x10] sm:$0x3]
    %v46 = vld [vmem:[%s1] sm:$0xff]
    %v47 = vld [vmem:[%s1 + $0x8] sm:$0xff]
    %v48 = vld [vmem:[%s1 + $0x10] sm:$0x3]
    %s49 = scalar_lea.vmem %s1, 24
    %v50 = vld [vmem:[%s49] sm:$0xff]
    %v51 = vld [vmem:[%s49 + $0x8] sm:$0xff]
    %v52 = vld [vmem:[%s49 + $0x10] sm:$0x3]
    %vm55 = vcmask 1042432
    %v56 = vrot.slane %v43, 5
    %v57 = vrot.slane %v44, 5
    %v58 = vsel %vm55, %v56, %v57
    %vm59 = vcmask 146432
    %v60 = vsel %vm59, %v58, 0
    %vm62 = vcmask 1041408
    %v64 = vsel %vm62, %v52, 0
    %66 = vmatprep.subr.mxu0 0.0
    %67 = vmatpush1.msra.mxu0 %v50
    %68 = vmatprep.subr.mxu0 0.0
    %69 = vmatpush1.msra.mxu0 %v51
    %70 = vmatprep.subr.mxu0 0.0
    %71 = vmatpush1.msra.mxu0 %v64
    %72 = vmatprep.subr.mxu0 0.0
    %73 = vmatpush1.msra.mxu0 0.0
    %74 = vmatprep.subr.mxu0 0.0
    %75 = vmatpush1.msra.mxu0 0.0
    %76 = vmatprep.subr.mxu0 0.0
    %77 = vmatpush1.msra.mxu0 0.0
    %78 = vmatprep.subr.mxu0 0.0
    %79 = vmatpush1.msra.mxu0 0.0
    %80 = vmatprep.subr.mxu0 0.0
    %81 = vmatpush1.msra.mxu0 0.0
    %82 = vmatprep.subr.mxu0 0.0
    %83 = vmatpush1.msra.mxu0 0.0
    %84 = vmatprep.subr.mxu0 0.0
    %85 = vmatpush1.msra.mxu0 0.0
    %86 = vmatprep.subr.mxu0 0.0
    %87 = vmatpush1.msra.mxu0 0.0
    %88 = vmatprep.subr.mxu0 0.0
    %89 = vmatpush1.msra.mxu0 0.0
    %90 = vmatprep.subr.mxu0 0.0
    %91 = vmatpush1.msra.mxu0 0.0
    %92 = vmatprep.subr.mxu0 0.0
    %93 = vmatpush1.msra.mxu0 0.0
    %94 = vmatprep.subr.mxu0 0.0
    %95 = vmatpush1.msra.mxu0 0.0
    %96 = vmatprep.subr.mxu0 0.0
    %97 = vmatpush1.msra.mxu0 0.0
    %98 = vmatprep.subr.mxu0 0.0
    %99 = vmatpush1.msra.mxu0 0.0
    %100 = vmatprep.subr.mxu0 0.0
    %101 = vmatpush1.msra.mxu0 0.0
    %102 = vmatprep.subr.mxu0 0.0
    %103 = vmatpush1.msra.mxu0 0.0
    %104 = vmatprep.subr.mxu0 0.0
    %105 = vmatpush1.msra.mxu0 0.0
    %106 = vmatprep.subr.mxu0 0.0
    %107 = vmatpush1.msra.mxu0 0.0
    %108 = vmatprep.subr.mxu0 0.0
    %109 = vmatpush1.msra.mxu0 0.0
    %110 = vmatprep.subr.mxu0 0.0
    %111 = vmatpush1.msra.mxu0 0.0
    %112 = vmatprep.subr.mxu0 0.0
    %113 = vmatpush1.msra.mxu0 0.0
    %114 = vmatprep.subr.mxu0 0.0
    %115 = vmatpush1.msra.mxu0 0.0
    %116 = vmatprep.subr.mxu0 0.0
    %117 = vmatpush1.msra.mxu0 0.0
    %118 = vmatprep.subr.mxu0 0.0
    %119 = vmatpush1.msra.mxu0 0.0
    %120 = vmatprep.subr.mxu0 0.0
    %121 = vmatpush1.msra.mxu0 0.0
    %122 = vmatprep.subr.mxu0 0.0
    %123 = vmatpush1.msra.mxu0 0.0
    %124 = vmatprep.subr.mxu0 0.0
    %125 = vmatpush1.msra.mxu0 0.0
    %126 = vmatprep.subr.mxu0 0.0
    %127 = vmatpush1.msra.mxu0 0.0
    %128 = vmatprep.subr.mxu0 0.0
    %129 = vmatpush1.msra.mxu0 0.0
    %130 = vmatprep.mubr.f32.mxu0 0.0
    %131 = vmatmul.mubr.f32.gmra.mrb[0].mxu0 %v60
    %v132 = vpop.f32.mrb[0].mxu0
    %v133 = vadd.f32 0.0, %v132
    %v134 = vpop.f32.mrb[0].mxu0
    %135 = vdwg.mxu0
    %v136 = vsel %vm59, %v43, 0
    %v139 = vsel %vm62, %v48, 0
    %141 = vmatprep.subr.mxu0 0.0
    %142 = vmatpush1.msra.mxu0 %v46
    %143 = vmatprep.subr.mxu0 0.0
    %144 = vmatpush1.msra.mxu0 %v47
    %145 = vmatprep.subr.mxu0 0.0
    %146 = vmatpush1.msra.mxu0 %v139
    %147 = vmatprep.subr.mxu0 0.0
    %148 = vmatpush1.msra.mxu0 0.0
    %149 = vmatprep.subr.mxu0 0.0
    %150 = vmatpush1.msra.mxu0 0.0
    %151 = vmatprep.subr.mxu0 0.0
    %152 = vmatpush1.msra.mxu0 0.0
    %153 = vmatprep.subr.mxu0 0.0
    %154 = vmatpush1.msra.mxu0 0.0
    %155 = vmatprep.subr.mxu0 0.0
    %156 = vmatpush1.msra.mxu0 0.0
    %157 = vmatprep.subr.mxu0 0.0
    %158 = vmatpush1.msra.mxu0 0.0
    %159 = vmatprep.subr.mxu0 0.0
    %160 = vmatpush1.msra.mxu0 0.0
    %161 = vmatprep.subr.mxu0 0.0
    %162 = vmatpush1.msra.mxu0 0.0
    %163 = vmatprep.subr.mxu0 0.0
    %164 = vmatpush1.msra.mxu0 0.0
    %165 = vmatprep.subr.mxu0 0.0
    %166 = vmatpush1.msra.mxu0 0.0
    %167 = vmatprep.subr.mxu0 0.0
    %168 = vmatpush1.msra.mxu0 0.0
    %169 = vmatprep.subr.mxu0 0.0
    %170 = vmatpush1.msra.mxu0 0.0
    %171 = vmatprep.subr.mxu0 0.0
    %172 = vmatpush1.msra.mxu0 0.0
    %173 = vmatprep.subr.mxu0 0.0
    %174 = vmatpush1.msra.mxu0 0.0
    %175 = vmatprep.subr.mxu0 0.0
    %176 = vmatpush1.msra.mxu0 0.0
    %177 = vmatprep.subr.mxu0 0.0
    %178 = vmatpush1.msra.mxu0 0.0
    %179 = vmatprep.subr.mxu0 0.0
    %180 = vmatpush1.msra.mxu0 0.0
    %181 = vmatprep.subr.mxu0 0.0
    %182 = vmatpush1.msra.mxu0 0.0
    %183 = vmatprep.subr.mxu0 0.0
    %184 = vmatpush1.msra.mxu0 0.0
    %185 = vmatprep.subr.mxu0 0.0
    %186 = vmatpush1.msra.mxu0 0.0
    %187 = vmatprep.subr.mxu0 0.0
    %188 = vmatpush1.msra.mxu0 0.0
    %189 = vmatprep.subr.mxu0 0.0
    %190 = vmatpush1.msra.mxu0 0.0
    %191 = vmatprep.subr.mxu0 0.0
    %192 = vmatpush1.msra.mxu0 0.0
    %193 = vmatprep.subr.mxu0 0.0
    %194 = vmatpush1.msra.mxu0 0.0
    %195 = vmatprep.subr.mxu0 0.0
    %196 = vmatpush1.msra.mxu0 0.0
    %197 = vmatprep.subr.mxu0 0.0
    %198 = vmatpush1.msra.mxu0 0.0
    %199 = vmatprep.subr.mxu0 0.0
    %200 = vmatpush1.msra.mxu0 0.0
    %201 = vmatprep.subr.mxu0 0.0
    %202 = vmatpush1.msra.mxu0 0.0
    %203 = vmatprep.subr.mxu0 0.0
    %204 = vmatpush1.msra.mxu0 0.0
    %205 = vmatprep.mubr.f32.mxu0 0.0
    %206 = vmatmul.mubr.f32.gmra.mrb[0].mxu0 %v136
    %v207 = vpop.f32.mrb[0].mxu0
    %v208 = vadd.f32 %v133, %v207
    %v209 = vpop.f32.mrb[0].mxu0
    %210 = vdwg.mxu0
    %s211 = scalar_lea.vmem %s1, 48
    %v212 = vld [vmem:[%s211] sm:$0xff]
    %v213 = vld [vmem:[%s211 + $0x8] sm:$0xff]
    %v214 = vld [vmem:[%s211 + $0x10] sm:$0x3]
    %v215 = vrot.slane %v44, 2
    %v216 = vsel %vm59, %v215, 0
    %v219 = vsel %vm62, %v214, 0
    %221 = vmatprep.subr.mxu0 0.0
    %222 = vmatpush1.msra.mxu0 %v212
    %223 = vmatprep.subr.mxu0 0.0
    %224 = vmatpush1.msra.mxu0 %v213
    %225 = vmatprep.subr.mxu0 0.0
    %226 = vmatpush1.msra.mxu0 %v219
    %227 = vmatprep.subr.mxu0 0.0
    %228 = vmatpush1.msra.mxu0 0.0
    %229 = vmatprep.subr.mxu0 0.0
    %230 = vmatpush1.msra.mxu0 0.0
    %231 = vmatprep.subr.mxu0 0.0
    %232 = vmatpush1.msra.mxu0 0.0
    %233 = vmatprep.subr.mxu0 0.0
    %234 = vmatpush1.msra.mxu0 0.0
    %235 = vmatprep.subr.mxu0 0.0
    %236 = vmatpush1.msra.mxu0 0.0
    %237 = vmatprep.subr.mxu0 0.0
    %238 = vmatpush1.msra.mxu0 0.0
    %239 = vmatprep.subr.mxu0 0.0
    %240 = vmatpush1.msra.mxu0 0.0
    %241 = vmatprep.subr.mxu0 0.0
    %242 = vmatpush1.msra.mxu0 0.0
    %243 = vmatprep.subr.mxu0 0.0
    %244 = vmatpush1.msra.mxu0 0.0
    %245 = vmatprep.subr.mxu0 0.0
    %246 = vmatpush1.msra.mxu0 0.0
    %247 = vmatprep.subr.mxu0 0.0
    %248 = vmatpush1.msra.mxu0 0.0
    %249 = vmatprep.subr.mxu0 0.0
    %250 = vmatpush1.msra.mxu0 0.0
    %251 = vmatprep.subr.mxu0 0.0
    %252 = vmatpush1.msra.mxu0 0.0
    %253 = vmatprep.subr.mxu0 0.0
    %254 = vmatpush1.msra.mxu0 0.0
    %255 = vmatprep.subr.mxu0 0.0
    %256 = vmatpush1.msra.mxu0 0.0
    %257 = vmatprep.subr.mxu0 0.0
    %258 = vmatpush1.msra.mxu0 0.0
    %259 = vmatprep.subr.mxu0 0.0
    %260 = vmatpush1.msra.mxu0 0.0
    %261 = vmatprep.subr.mxu0 0.0
    %262 = vmatpush1.msra.mxu0 0.0
    %263 = vmatprep.subr.mxu0 0.0
    %264 = vmatpush1.msra.mxu0 0.0
    %265 = vmatprep.subr.mxu0 0.0
    %266 = vmatpush1.msra.mxu0 0.0
    %267 = vmatprep.subr.mxu0 0.0
    %268 = vmatpush1.msra.mxu0 0.0
    %269 = vmatprep.subr.mxu0 0.0
    %270 = vmatpush1.msra.mxu0 0.0
    %271 = vmatprep.subr.mxu0 0.0
    %272 = vmatpush1.msra.mxu0 0.0
    %273 = vmatprep.subr.mxu0 0.0
    %274 = vmatpush1.msra.mxu0 0.0
    %275 = vmatprep.subr.mxu0 0.0
    %276 = vmatpush1.msra.mxu0 0.0
    %277 = vmatprep.subr.mxu0 0.0
    %278 = vmatpush1.msra.mxu0 0.0
    %279 = vmatprep.subr.mxu0 0.0
    %280 = vmatpush1.msra.mxu0 0.0
    %281 = vmatprep.subr.mxu0 0.0
    %282 = vmatpush1.msra.mxu0 0.0
    %283 = vmatprep.subr.mxu0 0.0
    %284 = vmatpush1.msra.mxu0 0.0
    %285 = vmatprep.mubr.f32.mxu0 0.0
    %286 = vmatmul.mubr.f32.gmra.mrb[0].mxu0 %v216
    %v287 = vpop.f32.mrb[0].mxu0
    %v288 = vadd.f32 0.0, %v287
    %v289 = vpop.f32.mrb[0].mxu0
    %290 = vdwg.mxu0
    %v291 = vadd.f32 %v208, %v288
    %292 = vmatprep.subr.mxu0 0.0
    %293 = vmatpush1.msra.mxu0 %v50
    %294 = vmatprep.subr.mxu0 0.0
    %295 = vmatpush1.msra.mxu0 %v51
    %296 = vmatprep.subr.mxu0 0.0
    %297 = vmatpush1.msra.mxu0 %v64
    %298 = vmatprep.subr.mxu0 0.0
    %299 = vmatpush1.msra.mxu0 0.0
    %300 = vmatprep.subr.mxu0 0.0
    %301 = vmatpush1.msra.mxu0 0.0
    %302 = vmatprep.subr.mxu0 0.0
    %303 = vmatpush1.msra.mxu0 0.0
    %304 = vmatprep.subr.mxu0 0.0
    %305 = vmatpush1.msra.mxu0 0.0
    %306 = vmatprep.subr.mxu0 0.0
    %307 = vmatpush1.msra.mxu0 0.0
    %308 = vmatprep.subr.mxu0 0.0
    %309 = vmatpush1.msra.mxu0 0.0
    %310 = vmatprep.subr.mxu0 0.0
    %311 = vmatpush1.msra.mxu0 0.0
    %312 = vmatprep.subr.mxu0 0.0
    %313 = vmatpush1.msra.mxu0 0.0
    %314 = vmatprep.subr.mxu0 0.0
    %315 = vmatpush1.msra.mxu0 0.0
    %316 = vmatprep.subr.mxu0 0.0
    %317 = vmatpush1.msra.mxu0 0.0
    %318 = vmatprep.subr.mxu0 0.0
    %319 = vmatpush1.msra.mxu0 0.0
    %320 = vmatprep.subr.mxu0 0.0
    %321 = vmatpush1.msra.mxu0 0.0
    %322 = vmatprep.subr.mxu0 0.0
    %323 = vmatpush1.msra.mxu0 0.0
    %324 = vmatprep.subr.mxu0 0.0
    %325 = vmatpush1.msra.mxu0 0.0
    %326 = vmatprep.subr.mxu0 0.0
    %327 = vmatpush1.msra.mxu0 0.0
    %328 = vmatprep.subr.mxu0 0.0
    %329 = vmatpush1.msra.mxu0 0.0
    %330 = vmatprep.subr.mxu0 0.0
    %331 = vmatpush1.msra.mxu0 0.0
    %332 = vmatprep.subr.mxu0 0.0
    %333 = vmatpush1.msra.mxu0 0.0
    %334 = vmatprep.subr.mxu0 0.0
    %335 = vmatpush1.msra.mxu0 0.0
    %336 = vmatprep.subr.mxu0 0.0
    %337 = vmatpush1.msra.mxu0 0.0
    %338 = vmatprep.subr.mxu0 0.0
    %339 = vmatpush1.msra.mxu0 0.0
    %340 = vmatprep.subr.mxu0 0.0
    %341 = vmatpush1.msra.mxu0 0.0
    %342 = vmatprep.subr.mxu0 0.0
    %343 = vmatpush1.msra.mxu0 0.0
    %344 = vmatprep.subr.mxu0 0.0
    %345 = vmatpush1.msra.mxu0 0.0
    %346 = vmatprep.subr.mxu0 0.0
    %347 = vmatpush1.msra.mxu0 0.0
    %348 = vmatprep.subr.mxu0 0.0
    %349 = vmatpush1.msra.mxu0 0.0
    %350 = vmatprep.subr.mxu0 0.0
    %351 = vmatpush1.msra.mxu0 0.0
    %352 = vmatprep.subr.mxu0 0.0
    %353 = vmatpush1.msra.mxu0 0.0
    %354 = vmatprep.subr.mxu0 0.0
    %355 = vmatpush1.msra.mxu0 0.0
    %356 = vmatprep.mubr.f32.mxu0 0.0
    %357 = vmatmul.mubr.f32.gmra.mrb[0].mxu0 %v216
    %v358 = vpop.f32.mrb[0].mxu0
    %v359 = vadd.f32 0.0, %v358
    %v360 = vpop.f32.mrb[0].mxu0
    %361 = vdwg.mxu0
    %362 = vmatprep.subr.mxu0 0.0
    %363 = vmatpush1.msra.mxu0 %v46
    %364 = vmatprep.subr.mxu0 0.0
    %365 = vmatpush1.msra.mxu0 %v47
    %366 = vmatprep.subr.mxu0 0.0
    %367 = vmatpush1.msra.mxu0 %v139
    %368 = vmatprep.subr.mxu0 0.0
    %369 = vmatpush1.msra.mxu0 0.0
    %370 = vmatprep.subr.mxu0 0.0
    %371 = vmatpush1.msra.mxu0 0.0
    %372 = vmatprep.subr.mxu0 0.0
    %373 = vmatpush1.msra.mxu0 0.0
    %374 = vmatprep.subr.mxu0 0.0
    %375 = vmatpush1.msra.mxu0 0.0
    %376 = vmatprep.subr.mxu0 0.0
    %377 = vmatpush1.msra.mxu0 0.0
    %378 = vmatprep.subr.mxu0 0.0
    %379 = vmatpush1.msra.mxu0 0.0
    %380 = vmatprep.subr.mxu0 0.0
    %381 = vmatpush1.msra.mxu0 0.0
    %382 = vmatprep.subr.mxu0 0.0
    %383 = vmatpush1.msra.mxu0 0.0
    %384 = vmatprep.subr.mxu0 0.0
    %385 = vmatpush1.msra.mxu0 0.0
    %386 = vmatprep.subr.mxu0 0.0
    %387 = vmatpush1.msra.mxu0 0.0
    %388 = vmatprep.subr.mxu0 0.0
    %389 = vmatpush1.msra.mxu0 0.0
    %390 = vmatprep.subr.mxu0 0.0
    %391 = vmatpush1.msra.mxu0 0.0
    %392 = vmatprep.subr.mxu0 0.0
    %393 = vmatpush1.msra.mxu0 0.0
    %394 = vmatprep.subr.mxu0 0.0
    %395 = vmatpush1.msra.mxu0 0.0
    %396 = vmatprep.subr.mxu0 0.0
    %397 = vmatpush1.msra.mxu0 0.0
    %398 = vmatprep.subr.mxu0 0.0
    %399 = vmatpush1.msra.mxu0 0.0
    %400 = vmatprep.subr.mxu0 0.0
    %401 = vmatpush1.msra.mxu0 0.0
    %402 = vmatprep.subr.mxu0 0.0
    %403 = vmatpush1.msra.mxu0 0.0
    %404 = vmatprep.subr.mxu0 0.0
    %405 = vmatpush1.msra.mxu0 0.0
    %406 = vmatprep.subr.mxu0 0.0
    %407 = vmatpush1.msra.mxu0 0.0
    %408 = vmatprep.subr.mxu0 0.0
    %409 = vmatpush1.msra.mxu0 0.0
    %410 = vmatprep.subr.mxu0 0.0
    %411 = vmatpush1.msra.mxu0 0.0
    %412 = vmatprep.subr.mxu0 0.0
    %413 = vmatpush1.msra.mxu0 0.0
    %414 = vmatprep.subr.mxu0 0.0
    %415 = vmatpush1.msra.mxu0 0.0
    %416 = vmatprep.subr.mxu0 0.0
    %417 = vmatpush1.msra.mxu0 0.0
    %418 = vmatprep.subr.mxu0 0.0
    %419 = vmatpush1.msra.mxu0 0.0
    %420 = vmatprep.subr.mxu0 0.0
    %421 = vmatpush1.msra.mxu0 0.0
    %422 = vmatprep.subr.mxu0 0.0
    %423 = vmatpush1.msra.mxu0 0.0
    %424 = vmatprep.subr.mxu0 0.0
    %425 = vmatpush1.msra.mxu0 0.0
    %426 = vmatprep.mubr.f32.mxu0 0.0
    %427 = vmatmul.mubr.f32.gmra.mrb[0].mxu0 %v60
    %v428 = vpop.f32.mrb[0].mxu0
    %v429 = vadd.f32 %v359, %v428
    %v430 = vpop.f32.mrb[0].mxu0
    %431 = vdwg.mxu0
    %v433 = vrot.slane %v44, 6
    %v434 = vrot.slane %v45, 6
    %v435 = vsel %vm62, %v433, %v434
    %v436 = vsel %vm59, %v435, 0
    %438 = vmatprep.subr.mxu0 0.0
    %439 = vmatpush1.msra.mxu0 %v212
    %440 = vmatprep.subr.mxu0 0.0
    %441 = vmatpush1.msra.mxu0 %v213
    %442 = vmatprep.subr.mxu0 0.0
    %443 = vmatpush1.msra.mxu0 %v219
    %444 = vmatprep.subr.mxu0 0.0
    %445 = vmatpush1.msra.mxu0 0.0
    %446 = vmatprep.subr.mxu0 0.0
    %447 = vmatpush1.msra.mxu0 0.0
    %448 = vmatprep.subr.mxu0 0.0
    %449 = vmatpush1.msra.mxu0 0.0
    %450 = vmatprep.subr.mxu0 0.0
    %451 = vmatpush1.msra.mxu0 0.0
    %452 = vmatprep.subr.mxu0 0.0
    %453 = vmatpush1.msra.mxu0 0.0
    %454 = vmatprep.subr.mxu0 0.0
    %455 = vmatpush1.msra.mxu0 0.0
    %456 = vmatprep.subr.mxu0 0.0
    %457 = vmatpush1.msra.mxu0 0.0
    %458 = vmatprep.subr.mxu0 0.0
    %459 = vmatpush1.msra.mxu0 0.0
    %460 = vmatprep.subr.mxu0 0.0
    %461 = vmatpush1.msra.mxu0 0.0
    %462 = vmatprep.subr.mxu0 0.0
    %463 = vmatpush1.msra.mxu0 0.0
    %464 = vmatprep.subr.mxu0 0.0
    %465 = vmatpush1.msra.mxu0 0.0
    %466 = vmatprep.subr.mxu0 0.0
    %467 = vmatpush1.msra.mxu0 0.0
    %468 = vmatprep.subr.mxu0 0.0
    %469 = vmatpush1.msra.mxu0 0.0
    %470 = vmatprep.subr.mxu0 0.0
    %471 = vmatpush1.msra.mxu0 0.0
    %472 = vmatprep.subr.mxu0 0.0
    %473 = vmatpush1.msra.mxu0 0.0
    %474 = vmatprep.subr.mxu0 0.0
    %475 = vmatpush1.msra.mxu0 0.0
    %476 = vmatprep.subr.mxu0 0.0
    %477 = vmatpush1.msra.mxu0 0.0
    %478 = vmatprep.subr.mxu0 0.0
    %479 = vmatpush1.msra.mxu0 0.0
    %480 = vmatprep.subr.mxu0 0.0
    %481 = vmatpush1.msra.mxu0 0.0
    %482 = vmatprep.subr.mxu0 0.0
    %483 = vmatpush1.msra.mxu0 0.0
    %484 = vmatprep.subr.mxu0 0.0
    %485 = vmatpush1.msra.mxu0 0.0
    %486 = vmatprep.subr.mxu0 0.0
    %487 = vmatpush1.msra.mxu0 0.0
    %488 = vmatprep.subr.mxu0 0.0
    %489 = vmatpush1.msra.mxu0 0.0
    %490 = vmatprep.subr.mxu0 0.0
    %491 = vmatpush1.msra.mxu0 0.0
    %492 = vmatprep.subr.mxu0 0.0
    %493 = vmatpush1.msra.mxu0 0.0
    %494 = vmatprep.subr.mxu0 0.0
    %495 = vmatpush1.msra.mxu0 0.0
    %496 = vmatprep.subr.mxu0 0.0
    %497 = vmatpush1.msra.mxu0 0.0
    %498 = vmatprep.subr.mxu0 0.0
    %499 = vmatpush1.msra.mxu0 0.0
    %500 = vmatprep.subr.mxu0 0.0
    %501 = vmatpush1.msra.mxu0 0.0
    %502 = vmatprep.mubr.f32.mxu0 0.0
    %503 = vmatmul.mubr.f32.gmra.mrb[0].mxu0 %v436
    %v504 = vpop.f32.mrb[0].mxu0
    %v505 = vadd.f32 0.0, %v504
    %v506 = vpop.f32.mrb[0].mxu0
    %507 = vdwg.mxu0
    %v508 = vadd.f32 %v429, %v505
    %509 = vmatprep.subr.mxu0 0.0
    %510 = vmatpush1.msra.mxu0 %v50
    %511 = vmatprep.subr.mxu0 0.0
    %512 = vmatpush1.msra.mxu0 %v51
    %513 = vmatprep.subr.mxu0 0.0
    %514 = vmatpush1.msra.mxu0 %v64
    %515 = vmatprep.subr.mxu0 0.0
    %516 = vmatpush1.msra.mxu0 0.0
    %517 = vmatprep.subr.mxu0 0.0
    %518 = vmatpush1.msra.mxu0 0.0
    %519 = vmatprep.subr.mxu0 0.0
    %520 = vmatpush1.msra.mxu0 0.0
    %521 = vmatprep.subr.mxu0 0.0
    %522 = vmatpush1.msra.mxu0 0.0
    %523 = vmatprep.subr.mxu0 0.0
    %524 = vmatpush1.msra.mxu0 0.0
    %525 = vmatprep.subr.mxu0 0.0
    %526 = vmatpush1.msra.mxu0 0.0
    %527 = vmatprep.subr.mxu0 0.0
    %528 = vmatpush1.msra.mxu0 0.0
    %529 = vmatprep.subr.mxu0 0.0
    %530 = vmatpush1.msra.mxu0 0.0
    %531 = vmatprep.subr.mxu0 0.0
    %532 = vmatpush1.msra.mxu0 0.0
    %533 = vmatprep.subr.mxu0 0.0
    %534 = vmatpush1.msra.mxu0 0.0
    %535 = vmatprep.subr.mxu0 0.0
    %536 = vmatpush1.msra.mxu0 0.0
    %537 = vmatprep.subr.mxu0 0.0
    %538 = vmatpush1.msra.mxu0 0.0
    %539 = vmatprep.subr.mxu0 0.0
    %540 = vmatpush1.msra.mxu0 0.0
    %541 = vmatprep.subr.mxu0 0.0
    %542 = vmatpush1.msra.mxu0 0.0
    %543 = vmatprep.subr.mxu0 0.0
    %544 = vmatpush1.msra.mxu0 0.0
    %545 = vmatprep.subr.mxu0 0.0
    %546 = vmatpush1.msra.mxu0 0.0
    %547 = vmatprep.subr.mxu0 0.0
    %548 = vmatpush1.msra.mxu0 0.0
    %549 = vmatprep.subr.mxu0 0.0
    %550 = vmatpush1.msra.mxu0 0.0
    %551 = vmatprep.subr.mxu0 0.0
    %552 = vmatpush1.msra.mxu0 0.0
    %553 = vmatprep.subr.mxu0 0.0
    %554 = vmatpush1.msra.mxu0 0.0
    %555 = vmatprep.subr.mxu0 0.0
    %556 = vmatpush1.msra.mxu0 0.0
    %557 = vmatprep.subr.mxu0 0.0
    %558 = vmatpush1.msra.mxu0 0.0
    %559 = vmatprep.subr.mxu0 0.0
    %560 = vmatpush1.msra.mxu0 0.0
    %561 = vmatprep.subr.mxu0 0.0
    %562 = vmatpush1.msra.mxu0 0.0
    %563 = vmatprep.subr.mxu0 0.0
    %564 = vmatpush1.msra.mxu0 0.0
    %565 = vmatprep.subr.mxu0 0.0
    %566 = vmatpush1.msra.mxu0 0.0
    %567 = vmatprep.subr.mxu0 0.0
    %568 = vmatpush1.msra.mxu0 0.0
    %569 = vmatprep.subr.mxu0 0.0
    %570 = vmatpush1.msra.mxu0 0.0
    %571 = vmatprep.subr.mxu0 0.0
    %572 = vmatpush1.msra.mxu0 0.0
    %573 = vmatprep.mubr.f32.mxu0 0.0
    %574 = vmatmul.mubr.f32.gmra.mrb[0].mxu0 %v436
    %v575 = vpop.f32.mrb[0].mxu0
    %v576 = vadd.f32 0.0, %v575
    %v577 = vpop.f32.mrb[0].mxu0
    %578 = vdwg.mxu0
    %579 = vmatprep.subr.mxu0 0.0
    %580 = vmatpush1.msra.mxu0 %v46
    %581 = vmatprep.subr.mxu0 0.0
    %582 = vmatpush1.msra.mxu0 %v47
    %583 = vmatprep.subr.mxu0 0.0
    %584 = vmatpush1.msra.mxu0 %v139
    %585 = vmatprep.subr.mxu0 0.0
    %586 = vmatpush1.msra.mxu0 0.0
    %587 = vmatprep.subr.mxu0 0.0
    %588 = vmatpush1.msra.mxu0 0.0
    %589 = vmatprep.subr.mxu0 0.0
    %590 = vmatpush1.msra.mxu0 0.0
    %591 = vmatprep.subr.mxu0 0.0
    %592 = vmatpush1.msra.mxu0 0.0
    %593 = vmatprep.subr.mxu0 0.0
    %594 = vmatpush1.msra.mxu0 0.0
    %595 = vmatprep.subr.mxu0 0.0
    %596 = vmatpush1.msra.mxu0 0.0
    %597 = vmatprep.subr.mxu0 0.0
    %598 = vmatpush1.msra.mxu0 0.0
    %599 = vmatprep.subr.mxu0 0.0
    %600 = vmatpush1.msra.mxu0 0.0
    %601 = vmatprep.subr.mxu0 0.0
    %602 = vmatpush1.msra.mxu0 0.0
    %603 = vmatprep.subr.mxu0 0.0
    %604 = vmatpush1.msra.mxu0 0.0
    %605 = vmatprep.subr.mxu0 0.0
    %606 = vmatpush1.msra.mxu0 0.0
    %607 = vmatprep.subr.mxu0 0.0
    %608 = vmatpush1.msra.mxu0 0.0
    %609 = vmatprep.subr.mxu0 0.0
    %610 = vmatpush1.msra.mxu0 0.0
    %611 = vmatprep.subr.mxu0 0.0
    %612 = vmatpush1.msra.mxu0 0.0
    %613 = vmatprep.subr.mxu0 0.0
    %614 = vmatpush1.msra.mxu0 0.0
    %615 = vmatprep.subr.mxu0 0.0
    %616 = vmatpush1.msra.mxu0 0.0
    %617 = vmatprep.subr.mxu0 0.0
    %618 = vmatpush1.msra.mxu0 0.0
    %619 = vmatprep.subr.mxu0 0.0
    %620 = vmatpush1.msra.mxu0 0.0
    %621 = vmatprep.subr.mxu0 0.0
    %622 = vmatpush1.msra.mxu0 0.0
    %623 = vmatprep.subr.mxu0 0.0
    %624 = vmatpush1.msra.mxu0 0.0
    %625 = vmatprep.subr.mxu0 0.0
    %626 = vmatpush1.msra.mxu0 0.0
    %627 = vmatprep.subr.mxu0 0.0
    %628 = vmatpush1.msra.mxu0 0.0
    %629 = vmatprep.subr.mxu0 0.0
    %630 = vmatpush1.msra.mxu0 0.0
    %631 = vmatprep.subr.mxu0 0.0
    %632 = vmatpush1.msra.mxu0 0.0
    %633 = vmatprep.subr.mxu0 0.0
    %634 = vmatpush1.msra.mxu0 0.0
    %635 = vmatprep.subr.mxu0 0.0
    %636 = vmatpush1.msra.mxu0 0.0
    %637 = vmatprep.subr.mxu0 0.0
    %638 = vmatpush1.msra.mxu0 0.0
    %639 = vmatprep.subr.mxu0 0.0
    %640 = vmatpush1.msra.mxu0 0.0
    %641 = vmatprep.subr.mxu0 0.0
    %642 = vmatpush1.msra.mxu0 0.0
    %643 = vmatprep.mubr.f32.mxu0 0.0
    %644 = vmatmul.mubr.f32.gmra.mrb[0].mxu0 %v216
    %v645 = vpop.f32.mrb[0].mxu0
    %v646 = vadd.f32 %v576, %v645
    %v647 = vpop.f32.mrb[0].mxu0
    %648 = vdwg.mxu0
    %v649 = vrot.slane %v43, 1
    %v650 = vsel %vm59, %v649, 0
    %652 = vmatprep.subr.mxu0 0.0
    %653 = vmatpush1.msra.mxu0 %v212
    %654 = vmatprep.subr.mxu0 0.0
    %655 = vmatpush1.msra.mxu0 %v213
    %656 = vmatprep.subr.mxu0 0.0
    %657 = vmatpush1.msra.mxu0 %v219
    %658 = vmatprep.subr.mxu0 0.0
    %659 = vmatpush1.msra.mxu0 0.0
    %660 = vmatprep.subr.mxu0 0.0
    %661 = vmatpush1.msra.mxu0 0.0
    %662 = vmatprep.subr.mxu0 0.0
    %663 = vmatpush1.msra.mxu0 0.0
    %664 = vmatprep.subr.mxu0 0.0
    %665 = vmatpush1.msra.mxu0 0.0
    %666 = vmatprep.subr.mxu0 0.0
    %667 = vmatpush1.msra.mxu0 0.0
    %668 = vmatprep.subr.mxu0 0.0
    %669 = vmatpush1.msra.mxu0 0.0
    %670 = vmatprep.subr.mxu0 0.0
    %671 = vmatpush1.msra.mxu0 0.0
    %672 = vmatprep.subr.mxu0 0.0
    %673 = vmatpush1.msra.mxu0 0.0
    %674 = vmatprep.subr.mxu0 0.0
    %675 = vmatpush1.msra.mxu0 0.0
    %676 = vmatprep.subr.mxu0 0.0
    %677 = vmatpush1.msra.mxu0 0.0
    %678 = vmatprep.subr.mxu0 0.0
    %679 = vmatpush1.msra.mxu0 0.0
    %680 = vmatprep.subr.mxu0 0.0
    %681 = vmatpush1.msra.mxu0 0.0
    %682 = vmatprep.subr.mxu0 0.0
    %683 = vmatpush1.msra.mxu0 0.0
    %684 = vmatprep.subr.mxu0 0.0
    %685 = vmatpush1.msra.mxu0 0.0
    %686 = vmatprep.subr.mxu0 0.0
    %687 = vmatpush1.msra.mxu0 0.0
    %688 = vmatprep.subr.mxu0 0.0
    %689 = vmatpush1.msra.mxu0 0.0
    %690 = vmatprep.subr.mxu0 0.0
    %691 = vmatpush1.msra.mxu0 0.0
    %692 = vmatprep.subr.mxu0 0.0
    %693 = vmatpush1.msra.mxu0 0.0
    %694 = vmatprep.subr.mxu0 0.0
    %695 = vmatpush1.msra.mxu0 0.0
    %696 = vmatprep.subr.mxu0 0.0
    %697 = vmatpush1.msra.mxu0 0.0
    %698 = vmatprep.subr.mxu0 0.0
    %699 = vmatpush1.msra.mxu0 0.0
    %700 = vmatprep.subr.mxu0 0.0
    %701 = vmatpush1.msra.mxu0 0.0
    %702 = vmatprep.subr.mxu0 0.0
    %703 = vmatpush1.msra.mxu0 0.0
    %704 = vmatprep.subr.mxu0 0.0
    %705 = vmatpush1.msra.mxu0 0.0
    %706 = vmatprep.subr.mxu0 0.0
    %707 = vmatpush1.msra.mxu0 0.0
    %708 = vmatprep.subr.mxu0 0.0
    %709 = vmatpush1.msra.mxu0 0.0
    %710 = vmatprep.subr.mxu0 0.0
    %711 = vmatpush1.msra.mxu0 0.0
    %712 = vmatprep.subr.mxu0 0.0
    %713 = vmatpush1.msra.mxu0 0.0
    %714 = vmatprep.subr.mxu0 0.0
    %715 = vmatpush1.msra.mxu0 0.0
    %716 = vmatprep.mubr.f32.mxu0 0.0
    %717 = vmatmul.mubr.f32.gmra.mrb[0].mxu0 %v650
    %v718 = vpop.f32.mrb[0].mxu0
    %v719 = vadd.f32 0.0, %v718
    %v720 = vpop.f32.mrb[0].mxu0
    %721 = vdwg.mxu0
    %v722 = vadd.f32 %v646, %v719
    %723 = vmatprep.subr.mxu0 0.0
    %724 = vmatpush1.msra.mxu0 %v50
    %725 = vmatprep.subr.mxu0 0.0
    %726 = vmatpush1.msra.mxu0 %v51
    %727 = vmatprep.subr.mxu0 0.0
    %728 = vmatpush1.msra.mxu0 %v64
    %729 = vmatprep.subr.mxu0 0.0
    %730 = vmatpush1.msra.mxu0 0.0
    %731 = vmatprep.subr.mxu0 0.0
    %732 = vmatpush1.msra.mxu0 0.0
    %733 = vmatprep.subr.mxu0 0.0
    %734 = vmatpush1.msra.mxu0 0.0
    %735 = vmatprep.subr.mxu0 0.0
    %736 = vmatpush1.msra.mxu0 0.0
    %737 = vmatprep.subr.mxu0 0.0
    %738 = vmatpush1.msra.mxu0 0.0
    %739 = vmatprep.subr.mxu0 0.0
    %740 = vmatpush1.msra.mxu0 0.0
    %741 = vmatprep.subr.mxu0 0.0
    %742 = vmatpush1.msra.mxu0 0.0
    %743 = vmatprep.subr.mxu0 0.0
    %744 = vmatpush1.msra.mxu0 0.0
    %745 = vmatprep.subr.mxu0 0.0
    %746 = vmatpush1.msra.mxu0 0.0
    %747 = vmatprep.subr.mxu0 0.0
    %748 = vmatpush1.msra.mxu0 0.0
    %749 = vmatprep.subr.mxu0 0.0
    %750 = vmatpush1.msra.mxu0 0.0
    %751 = vmatprep.subr.mxu0 0.0
    %752 = vmatpush1.msra.mxu0 0.0
    %753 = vmatprep.subr.mxu0 0.0
    %754 = vmatpush1.msra.mxu0 0.0
    %755 = vmatprep.subr.mxu0 0.0
    %756 = vmatpush1.msra.mxu0 0.0
    %757 = vmatprep.subr.mxu0 0.0
    %758 = vmatpush1.msra.mxu0 0.0
    %759 = vmatprep.subr.mxu0 0.0
    %760 = vmatpush1.msra.mxu0 0.0
    %761 = vmatprep.subr.mxu0 0.0
    %762 = vmatpush1.msra.mxu0 0.0
    %763 = vmatprep.subr.mxu0 0.0
    %764 = vmatpush1.msra.mxu0 0.0
    %765 = vmatprep.subr.mxu0 0.0
    %766 = vmatpush1.msra.mxu0 0.0
    %767 = vmatprep.subr.mxu0 0.0
    %768 = vmatpush1.msra.mxu0 0.0
    %769 = vmatprep.subr.mxu0 0.0
    %770 = vmatpush1.msra.mxu0 0.0
    %771 = vmatprep.subr.mxu0 0.0
    %772 = vmatpush1.msra.mxu0 0.0
    %773 = vmatprep.subr.mxu0 0.0
    %774 = vmatpush1.msra.mxu0 0.0
    %775 = vmatprep.subr.mxu0 0.0
    %776 = vmatpush1.msra.mxu0 0.0
    %777 = vmatprep.subr.mxu0 0.0
    %778 = vmatpush1.msra.mxu0 0.0
    %779 = vmatprep.subr.mxu0 0.0
    %780 = vmatpush1.msra.mxu0 0.0
    %781 = vmatprep.subr.mxu0 0.0
    %782 = vmatpush1.msra.mxu0 0.0
    %783 = vmatprep.subr.mxu0 0.0
    %784 = vmatpush1.msra.mxu0 0.0
    %785 = vmatprep.subr.mxu0 0.0
    %786 = vmatpush1.msra.mxu0 0.0
    %787 = vmatprep.mubr.f32.mxu0 0.0
    %788 = vmatmul.mubr.f32.gmra.mrb[0].mxu0 %v650
    %v789 = vpop.f32.mrb[0].mxu0
    %v790 = vadd.f32 0.0, %v789
    %v791 = vpop.f32.mrb[0].mxu0
    %792 = vdwg.mxu0
    %793 = vmatprep.subr.mxu0 0.0
    %794 = vmatpush1.msra.mxu0 %v46
    %795 = vmatprep.subr.mxu0 0.0
    %796 = vmatpush1.msra.mxu0 %v47
    %797 = vmatprep.subr.mxu0 0.0
    %798 = vmatpush1.msra.mxu0 %v139
    %799 = vmatprep.subr.mxu0 0.0
    %800 = vmatpush1.msra.mxu0 0.0
    %801 = vmatprep.subr.mxu0 0.0
    %802 = vmatpush1.msra.mxu0 0.0
    %803 = vmatprep.subr.mxu0 0.0
    %804 = vmatpush1.msra.mxu0 0.0
    %805 = vmatprep.subr.mxu0 0.0
    %806 = vmatpush1.msra.mxu0 0.0
    %807 = vmatprep.subr.mxu0 0.0
    %808 = vmatpush1.msra.mxu0 0.0
    %809 = vmatprep.subr.mxu0 0.0
    %810 = vmatpush1.msra.mxu0 0.0
    %811 = vmatprep.subr.mxu0 0.0
    %812 = vmatpush1.msra.mxu0 0.0
    %813 = vmatprep.subr.mxu0 0.0
    %814 = vmatpush1.msra.mxu0 0.0
    %815 = vmatprep.subr.mxu0 0.0
    %816 = vmatpush1.msra.mxu0 0.0
    %817 = vmatprep.subr.mxu0 0.0
    %818 = vmatpush1.msra.mxu0 0.0
    %819 = vmatprep.subr.mxu0 0.0
    %820 = vmatpush1.msra.mxu0 0.0
    %821 = vmatprep.subr.mxu0 0.0
    %822 = vmatpush1.msra.mxu0 0.0
    %823 = vmatprep.subr.mxu0 0.0
    %824 = vmatpush1.msra.mxu0 0.0
    %825 = vmatprep.subr.mxu0 0.0
    %826 = vmatpush1.msra.mxu0 0.0
    %827 = vmatprep.subr.mxu0 0.0
    %828 = vmatpush1.msra.mxu0 0.0
    %829 = vmatprep.subr.mxu0 0.0
    %830 = vmatpush1.msra.mxu0 0.0
    %831 = vmatprep.subr.mxu0 0.0
    %832 = vmatpush1.msra.mxu0 0.0
    %833 = vmatprep.subr.mxu0 0.0
    %834 = vmatpush1.msra.mxu0 0.0
    %835 = vmatprep.subr.mxu0 0.0
    %836 = vmatpush1.msra.mxu0 0.0
    %837 = vmatprep.subr.mxu0 0.0
    %838 = vmatpush1.msra.mxu0 0.0
    %839 = vmatprep.subr.mxu0 0.0
    %840 = vmatpush1.msra.mxu0 0.0
    %841 = vmatprep.subr.mxu0 0.0
    %842 = vmatpush1.msra.mxu0 0.0
    %843 = vmatprep.subr.mxu0 0.0
    %844 = vmatpush1.msra.mxu0 0.0
    %845 = vmatprep.subr.mxu0 0.0
    %846 = vmatpush1.msra.mxu0 0.0
    %847 = vmatprep.subr.mxu0 0.0
    %848 = vmatpush1.msra.mxu0 0.0
    %849 = vmatprep.subr.mxu0 0.0
    %850 = vmatpush1.msra.mxu0 0.0
    %851 = vmatprep.subr.mxu0 0.0
    %852 = vmatpush1.msra.mxu0 0.0
    %853 = vmatprep.subr.mxu0 0.0
    %854 = vmatpush1.msra.mxu0 0.0
    %855 = vmatprep.subr.mxu0 0.0
    %856 = vmatpush1.msra.mxu0 0.0
    %857 = vmatprep.mubr.f32.mxu0 0.0
    %858 = vmatmul.mubr.f32.gmra.mrb[0].mxu0 %v436
    %v859 = vpop.f32.mrb[0].mxu0
    %v860 = vadd.f32 %v790, %v859
    %v861 = vpop.f32.mrb[0].mxu0
    %862 = vdwg.mxu0
    %v863 = vrot.slane %v43, 6
    %v864 = vsel %vm62, %v863, %v433
    %v865 = vsel %vm59, %v864, 0
    %867 = vmatprep.subr.mxu0 0.0
    %868 = vmatpush1.msra.mxu0 %v212
    %869 = vmatprep.subr.mxu0 0.0
    %870 = vmatpush1.msra.mxu0 %v213
    %871 = vmatprep.subr.mxu0 0.0
    %872 = vmatpush1.msra.mxu0 %v219
    %873 = vmatprep.subr.mxu0 0.0
    %874 = vmatpush1.msra.mxu0 0.0
    %875 = vmatprep.subr.mxu0 0.0
    %876 = vmatpush1.msra.mxu0 0.0
    %877 = vmatprep.subr.mxu0 0.0
    %878 = vmatpush1.msra.mxu0 0.0
    %879 = vmatprep.subr.mxu0 0.0
    %880 = vmatpush1.msra.mxu0 0.0
    %881 = vmatprep.subr.mxu0 0.0
    %882 = vmatpush1.msra.mxu0 0.0
    %883 = vmatprep.subr.mxu0 0.0
    %884 = vmatpush1.msra.mxu0 0.0
    %885 = vmatprep.subr.mxu0 0.0
    %886 = vmatpush1.msra.mxu0 0.0
    %887 = vmatprep.subr.mxu0 0.0
    %888 = vmatpush1.msra.mxu0 0.0
    %889 = vmatprep.subr.mxu0 0.0
    %890 = vmatpush1.msra.mxu0 0.0
    %891 = vmatprep.subr.mxu0 0.0
    %892 = vmatpush1.msra.mxu0 0.0
    %893 = vmatprep.subr.mxu0 0.0
    %894 = vmatpush1.msra.mxu0 0.0
    %895 = vmatprep.subr.mxu0 0.0
    %896 = vmatpush1.msra.mxu0 0.0
    %897 = vmatprep.subr.mxu0 0.0
    %898 = vmatpush1.msra.mxu0 0.0
    %899 = vmatprep.subr.mxu0 0.0
    %900 = vmatpush1.msra.mxu0 0.0
    %901 = vmatprep.subr.mxu0 0.0
    %902 = vmatpush1.msra.mxu0 0.0
    %903 = vmatprep.subr.mxu0 0.0
    %904 = vmatpush1.msra.mxu0 0.0
    %905 = vmatprep.subr.mxu0 0.0
    %906 = vmatpush1.msra.mxu0 0.0
    %907 = vmatprep.subr.mxu0 0.0
    %908 = vmatpush1.msra.mxu0 0.0
    %909 = vmatprep.subr.mxu0 0.0
    %910 = vmatpush1.msra.mxu0 0.0
    %911 = vmatprep.subr.mxu0 0.0
    %912 = vmatpush1.msra.mxu0 0.0
    %913 = vmatprep.subr.mxu0 0.0
    %914 = vmatpush1.msra.mxu0 0.0
    %915 = vmatprep.subr.mxu0 0.0
    %916 = vmatpush1.msra.mxu0 0.0
    %917 = vmatprep.subr.mxu0 0.0
    %918 = vmatpush1.msra.mxu0 0.0
    %919 = vmatprep.subr.mxu0 0.0
    %920 = vmatpush1.msra.mxu0 0.0
    %921 = vmatprep.subr.mxu0 0.0
    %922 = vmatpush1.msra.mxu0 0.0
    %923 = vmatprep.subr.mxu0 0.0
    %924 = vmatpush1.msra.mxu0 0.0
    %925 = vmatprep.subr.mxu0 0.0
    %926 = vmatpush1.msra.mxu0 0.0
    %927 = vmatprep.subr.mxu0 0.0
    %928 = vmatpush1.msra.mxu0 0.0
    %929 = vmatprep.subr.mxu0 0.0
    %930 = vmatpush1.msra.mxu0 0.0
    %931 = vmatprep.mubr.f32.mxu0 0.0
    %932 = vmatmul.mubr.f32.gmra.mrb[0].mxu0 %v865
    %v933 = vpop.f32.mrb[0].mxu0
    %v934 = vadd.f32 0.0, %v933
    %v935 = vpop.f32.mrb[0].mxu0
    %936 = vdwg.mxu0
    %v937 = vadd.f32 %v860, %v934
    %v938 = vmax.f32 %v291, %v508
    %v939 = vmax.f32 %v722, %v937
    %941 = vrot.lane.b32.xlu0 %v938, 64
    %v942 = vpop.permute.xlu0 %941
    %v944 = vmax.f32 %v938, %v942
    %946 = vrot.lane.b32.xlu0 %v939, 64
    %v947 = vpop.permute.xlu0 %946
    %v949 = vmax.f32 %v939, %v947
    %v950 = vld [vmem:[%s2] sm:$0x1]
    %v952 = vlaneseq
    %v953 = vshrl.u32 %v952, 7
    %v954 = vsub.s32 0, %v953
    %v955 = vrot.slane %v950, %v954
    %v957 = vadd.f32 %v944, %v955
    %v958 = vmax.f32 %v957, 0.0
    %v959 = vadd.f32 %v949, %v955
    %v960 = vmax.f32 %v959, 0.0
    %962 = vrot.lane.b32.xlu0 %v960, 8
    %v963 = vpop.permute.xlu0 %962
    %vm965 = vcmask 584768
    %966 = vst.msk [vmem:[#allocation2 + $0x1] sm:$0xf] %vm965, %v963
    %968 = vrot.lane.b32.xlu0 %v958, 8
    %v969 = vpop.permute.xlu0 %968
    %971 = vst.msk [vmem:[#allocation2 + $0x5] sm:$0xf] %vm965, %v969
    %v972 = vld [vmem:[#allocation2] sm:$0xf]
    %v973 = vld [vmem:[%s3] sm:$0xff]
    %v974 = vld [vmem:[%s3 + $0x8] sm:$0xff]
    %v975 = vld [vmem:[%s3 + $0x10] sm:$0xff]
    %v976 = vld [vmem:[%s3 + $0x18] sm:$0xff]
    %v977 = vld [vmem:[%s3 + $0x20] sm:$0xff]
    %v978 = vld [vmem:[%s3 + $0x28] sm:$0xff]
    %v979 = vld [vmem:[%s3 + $0x30] sm:$0xff]
    %v980 = vld [vmem:[%s3 + $0x38] sm:$0xff]
    %v981 = vld [vmem:[%s3 + $0x40] sm:$0xff]
    %v982 = vld [vmem:[%s3 + $0x48] sm:$0xff]
    %v983 = vld [vmem:[#allocation2 + $0x5] sm:$0xf]
    %s984 = scalar_lea.vmem %s3, 80
    %v985 = vld [vmem:[%s984] sm:$0xff]
    %v986 = vld [vmem:[%s984 + $0x8] sm:$0xff]
    %v987 = vld [vmem:[%s984 + $0x10] sm:$0xff]
    %v988 = vld [vmem:[%s984 + $0x18] sm:$0xff]
    %v989 = vld [vmem:[%s984 + $0x20] sm:$0xff]
    %v990 = vld [vmem:[%s984 + $0x28] sm:$0xff]
    %v991 = vld [vmem:[%s984 + $0x30] sm:$0xff]
    %v992 = vld [vmem:[%s984 + $0x38] sm:$0xff]
    %v993 = vld [vmem:[%s984 + $0x40] sm:$0xff]
    %v994 = vld [vmem:[%s984 + $0x48] sm:$0xff]
    %v996 = vsel %vm39, %v983, 0
    %998 = vmatprep.subr.mxu0 0.0
    %999 = vmatpush1.msra.mxu0 %v985
    %1000 = vmatprep.subr.mxu0 0.0
    %1001 = vmatpush1.msra.mxu0 %v986
    %1002 = vmatprep.subr.mxu0 0.0
    %1003 = vmatpush1.msra.mxu0 %v987
    %1004 = vmatprep.subr.mxu0 0.0
    %1005 = vmatpush1.msra.mxu0 %v988
    %1006 = vmatprep.subr.mxu0 0.0
    %1007 = vmatpush1.msra.mxu0 %v989
    %1008 = vmatprep.subr.mxu0 0.0
    %1009 = vmatpush1.msra.mxu0 %v990
    %1010 = vmatprep.subr.mxu0 0.0
    %1011 = vmatpush1.msra.mxu0 %v991
    %1012 = vmatprep.subr.mxu0 0.0
    %1013 = vmatpush1.msra.mxu0 %v992
    %1014 = vmatprep.subr.mxu0 0.0
    %1015 = vmatpush1.msra.mxu0 %v993
    %1016 = vmatprep.subr.mxu0 0.0
    %1017 = vmatpush1.msra.mxu0 %v994
    %1018 = vmatprep.subr.mxu0 0.0
    %1019 = vmatpush1.msra.mxu0 0.0
    %1020 = vmatprep.subr.mxu0 0.0
    %1021 = vmatpush1.msra.mxu0 0.0
    %1022 = vmatprep.subr.mxu0 0.0
    %1023 = vmatpush1.msra.mxu0 0.0
    %1024 = vmatprep.subr.mxu0 0.0
    %1025 = vmatpush1.msra.mxu0 0.0
    %1026 = vmatprep.subr.mxu0 0.0
    %1027 = vmatpush1.msra.mxu0 0.0
    %1028 = vmatprep.subr.mxu0 0.0
    %1029 = vmatpush1.msra.mxu0 0.0
    %1030 = vmatprep.subr.mxu0 0.0
    %1031 = vmatpush1.msra.mxu0 0.0
    %1032 = vmatprep.subr.mxu0 0.0
    %1033 = vmatpush1.msra.mxu0 0.0
    %1034 = vmatprep.subr.mxu0 0.0
    %1035 = vmatpush1.msra.mxu0 0.0
    %1036 = vmatprep.subr.mxu0 0.0
    %1037 = vmatpush1.msra.mxu0 0.0
    %1038 = vmatprep.subr.mxu0 0.0
    %1039 = vmatpush1.msra.mxu0 0.0
    %1040 = vmatprep.subr.mxu0 0.0
    %1041 = vmatpush1.msra.mxu0 0.0
    %1042 = vmatprep.subr.mxu0 0.0
    %1043 = vmatpush1.msra.mxu0 0.0
    %1044 = vmatprep.subr.mxu0 0.0
    %1045 = vmatpush1.msra.mxu0 0.0
    %1046 = vmatprep.subr.mxu0 0.0
    %1047 = vmatpush1.msra.mxu0 0.0
    %1048 = vmatprep.subr.mxu0 0.0
    %1049 = vmatpush1.msra.mxu0 0.0
    %1050 = vmatprep.subr.mxu0 0.0
    %1051 = vmatpush1.msra.mxu0 0.0
    %1052 = vmatprep.subr.mxu0 0.0
    %1053 = vmatpush1.msra.mxu0 0.0
    %1054 = vmatprep.subr.mxu0 0.0
    %1055 = vmatpush1.msra.mxu0 0.0
    %1056 = vmatprep.subr.mxu0 0.0
    %1057 = vmatpush1.msra.mxu0 0.0
    %1058 = vmatprep.subr.mxu0 0.0
    %1059 = vmatpush1.msra.mxu0 0.0
    %1060 = vmatprep.subr.mxu0 0.0
    %1061 = vmatpush1.msra.mxu0 0.0
    %1062 = vmatprep.mubr.f32.mxu0 0.0
    %1063 = vmatmul.mubr.f32.gmra.mrb[0].mxu0 %v996
    %v1064 = vpop.f32.mrb[0].mxu0
    %v1065 = vadd.f32 0.0, %v1064
    %v1066 = vpop.f32.mrb[0].mxu0
    %1067 = vdwg.mxu0
    %v1069 = vsel %vm39, %v972, 0
    %1071 = vmatprep.subr.mxu0 0.0
    %1072 = vmatpush1.msra.mxu0 %v973
    %1073 = vmatprep.subr.mxu0 0.0
    %1074 = vmatpush1.msra.mxu0 %v974
    %1075 = vmatprep.subr.mxu0 0.0
    %1076 = vmatpush1.msra.mxu0 %v975
    %1077 = vmatprep.subr.mxu0 0.0
    %1078 = vmatpush1.msra.mxu0 %v976
    %1079 = vmatprep.subr.mxu0 0.0
    %1080 = vmatpush1.msra.mxu0 %v977
    %1081 = vmatprep.subr.mxu0 0.0
    %1082 = vmatpush1.msra.mxu0 %v978
    %1083 = vmatprep.subr.mxu0 0.0
    %1084 = vmatpush1.msra.mxu0 %v979
    %1085 = vmatprep.subr.mxu0 0.0
    %1086 = vmatpush1.msra.mxu0 %v980
    %1087 = vmatprep.subr.mxu0 0.0
    %1088 = vmatpush1.msra.mxu0 %v981
    %1089 = vmatprep.subr.mxu0 0.0
    %1090 = vmatpush1.msra.mxu0 %v982
    %1091 = vmatprep.subr.mxu0 0.0
    %1092 = vmatpush1.msra.mxu0 0.0
    %1093 = vmatprep.subr.mxu0 0.0
    %1094 = vmatpush1.msra.mxu0 0.0
    %1095 = vmatprep.subr.mxu0 0.0
    %1096 = vmatpush1.msra.mxu0 0.0
    %1097 = vmatprep.subr.mxu0 0.0
    %1098 = vmatpush1.msra.mxu0 0.0
    %1099 = vmatprep.subr.mxu0 0.0
    %1100 = vmatpush1.msra.mxu0 0.0
    %1101 = vmatprep.subr.mxu0 0.0
    %1102 = vmatpush1.msra.mxu0 0.0
    %1103 = vmatprep.subr.mxu0 0.0
    %1104 = vmatpush1.msra.mxu0 0.0
    %1105 = vmatprep.subr.mxu0 0.0
    %1106 = vmatpush1.msra.mxu0 0.0
    %1107 = vmatprep.subr.mxu0 0.0
    %1108 = vmatpush1.msra.mxu0 0.0
    %1109 = vmatprep.subr.mxu0 0.0
    %1110 = vmatpush1.msra.mxu0 0.0
    %1111 = vmatprep.subr.mxu0 0.0
    %1112 = vmatpush1.msra.mxu0 0.0
    %1113 = vmatprep.subr.mxu0 0.0
    %1114 = vmatpush1.msra.mxu0 0.0
    %1115 = vmatprep.subr.mxu0 0.0
    %1116 = vmatpush1.msra.mxu0 0.0
    %1117 = vmatprep.subr.mxu0 0.0
    %1118 = vmatpush1.msra.mxu0 0.0
    %1119 = vmatprep.subr.mxu0 0.0
    %1120 = vmatpush1.msra.mxu0 0.0
    %1121 = vmatprep.subr.mxu0 0.0
    %1122 = vmatpush1.msra.mxu0 0.0
    %1123 = vmatprep.subr.mxu0 0.0
    %1124 = vmatpush1.msra.mxu0 0.0
    %1125 = vmatprep.subr.mxu0 0.0
    %1126 = vmatpush1.msra.mxu0 0.0
    %1127 = vmatprep.subr.mxu0 0.0
    %1128 = vmatpush1.msra.mxu0 0.0
    %1129 = vmatprep.subr.mxu0 0.0
    %1130 = vmatpush1.msra.mxu0 0.0
    %1131 = vmatprep.subr.mxu0 0.0
    %1132 = vmatpush1.msra.mxu0 0.0
    %1133 = vmatprep.subr.mxu0 0.0
    %1134 = vmatpush1.msra.mxu0 0.0
    %1135 = vmatprep.mubr.f32.mxu0 0.0
    %1136 = vmatmul.mubr.f32.gmra.mrb[0].mxu0 %v1069
    %v1137 = vpop.f32.mrb[0].mxu0
    %v1138 = vadd.f32 %v1065, %v1137
    %v1139 = vpop.f32.mrb[0].mxu0
    %1140 = vdwg.mxu0
    %v1141 = vld [vmem:[#allocation2 + $0x1] sm:$0xf]
    %s1142 = scalar_lea.vmem %s3, 160
    %v1143 = vld [vmem:[%s1142] sm:$0xff]
    %v1144 = vld [vmem:[%s1142 + $0x8] sm:$0xff]
    %v1145 = vld [vmem:[%s1142 + $0x10] sm:$0xff]
    %v1146 = vld [vmem:[%s1142 + $0x18] sm:$0xff]
    %v1147 = vld [vmem:[%s1142 + $0x20] sm:$0xff]
    %v1148 = vld [vmem:[%s1142 + $0x28] sm:$0xff]
    %v1149 = vld [vmem:[%s1142 + $0x30] sm:$0xff]
    %v1150 = vld [vmem:[%s1142 + $0x38] sm:$0xff]
    %v1151 = vld [vmem:[%s1142 + $0x40] sm:$0xff]
    %v1152 = vld [vmem:[%s1142 + $0x48] sm:$0xff]
    %v1154 = vsel %vm39, %v1141, 0
    %1156 = vmatprep.subr.mxu0 0.0
    %1157 = vmatpush1.msra.mxu0 %v1143
    %1158 = vmatprep.subr.mxu0 0.0
    %1159 = vmatpush1.msra.mxu0 %v1144
    %1160 = vmatprep.subr.mxu0 0.0
    %1161 = vmatpush1.msra.mxu0 %v1145
    %1162 = vmatprep.subr.mxu0 0.0
    %1163 = vmatpush1.msra.mxu0 %v1146
    %1164 = vmatprep.subr.mxu0 0.0
    %1165 = vmatpush1.msra.mxu0 %v1147
    %1166 = vmatprep.subr.mxu0 0.0
    %1167 = vmatpush1.msra.mxu0 %v1148
    %1168 = vmatprep.subr.mxu0 0.0
    %1169 = vmatpush1.msra.mxu0 %v1149
    %1170 = vmatprep.subr.mxu0 0.0
    %1171 = vmatpush1.msra.mxu0 %v1150
    %1172 = vmatprep.subr.mxu0 0.0
    %1173 = vmatpush1.msra.mxu0 %v1151
    %1174 = vmatprep.subr.mxu0 0.0
    %1175 = vmatpush1.msra.mxu0 %v1152
    %1176 = vmatprep.subr.mxu0 0.0
    %1177 = vmatpush1.msra.mxu0 0.0
    %1178 = vmatprep.subr.mxu0 0.0
    %1179 = vmatpush1.msra.mxu0 0.0
    %1180 = vmatprep.subr.mxu0 0.0
    %1181 = vmatpush1.msra.mxu0 0.0
    %1182 = vmatprep.subr.mxu0 0.0
    %1183 = vmatpush1.msra.mxu0 0.0
    %1184 = vmatprep.subr.mxu0 0.0
    %1185 = vmatpush1.msra.mxu0 0.0
    %1186 = vmatprep.subr.mxu0 0.0
    %1187 = vmatpush1.msra.mxu0 0.0
    %1188 = vmatprep.subr.mxu0 0.0
    %1189 = vmatpush1.msra.mxu0 0.0
    %1190 = vmatprep.subr.mxu0 0.0
    %1191 = vmatpush1.msra.mxu0 0.0
    %1192 = vmatprep.subr.mxu0 0.0
    %1193 = vmatpush1.msra.mxu0 0.0
    %1194 = vmatprep.subr.mxu0 0.0
    %1195 = vmatpush1.msra.mxu0 0.0
    %1196 = vmatprep.subr.mxu0 0.0
    %1197 = vmatpush1.msra.mxu0 0.0
    %1198 = vmatprep.subr.mxu0 0.0
    %1199 = vmatpush1.msra.mxu0 0.0
    %1200 = vmatprep.subr.mxu0 0.0
    %1201 = vmatpush1.msra.mxu0 0.0
    %1202 = vmatprep.subr.mxu0 0.0
    %1203 = vmatpush1.msra.mxu0 0.0
    %1204 = vmatprep.subr.mxu0 0.0
    %1205 = vmatpush1.msra.mxu0 0.0
    %1206 = vmatprep.subr.mxu0 0.0
    %1207 = vmatpush1.msra.mxu0 0.0
    %1208 = vmatprep.subr.mxu0 0.0
    %1209 = vmatpush1.msra.mxu0 0.0
    %1210 = vmatprep.subr.mxu0 0.0
    %1211 = vmatpush1.msra.mxu0 0.0
    %1212 = vmatprep.subr.mxu0 0.0
    %1213 = vmatpush1.msra.mxu0 0.0
    %1214 = vmatprep.subr.mxu0 0.0
    %1215 = vmatpush1.msra.mxu0 0.0
    %1216 = vmatprep.subr.mxu0 0.0
    %1217 = vmatpush1.msra.mxu0 0.0
    %1218 = vmatprep.subr.mxu0 0.0
    %1219 = vmatpush1.msra.mxu0 0.0
    %1220 = vmatprep.mubr.f32.mxu0 0.0
    %1221 = vmatmul.mubr.f32.gmra.mrb[0].mxu0 %v1154
    %v1222 = vpop.f32.mrb[0].mxu0
    %v1223 = vadd.f32 0.0, %v1222
    %v1224 = vpop.f32.mrb[0].mxu0
    %1225 = vdwg.mxu0
    %v1226 = vadd.f32 %v1138, %v1223
    %1227 = vmatprep.subr.mxu0 0.0
    %1228 = vmatpush1.msra.mxu0 %v985
    %1229 = vmatprep.subr.mxu0 0.0
    %1230 = vmatpush1.msra.mxu0 %v986
    %1231 = vmatprep.subr.mxu0 0.0
    %1232 = vmatpush1.msra.mxu0 %v987
    %1233 = vmatprep.subr.mxu0 0.0
    %1234 = vmatpush1.msra.mxu0 %v988
    %1235 = vmatprep.subr.mxu0 0.0
    %1236 = vmatpush1.msra.mxu0 %v989
    %1237 = vmatprep.subr.mxu0 0.0
    %1238 = vmatpush1.msra.mxu0 %v990
    %1239 = vmatprep.subr.mxu0 0.0
    %1240 = vmatpush1.msra.mxu0 %v991
    %1241 = vmatprep.subr.mxu0 0.0
    %1242 = vmatpush1.msra.mxu0 %v992
    %1243 = vmatprep.subr.mxu0 0.0
    %1244 = vmatpush1.msra.mxu0 %v993
    %1245 = vmatprep.subr.mxu0 0.0
    %1246 = vmatpush1.msra.mxu0 %v994
    %1247 = vmatprep.subr.mxu0 0.0
    %1248 = vmatpush1.msra.mxu0 0.0
    %1249 = vmatprep.subr.mxu0 0.0
    %1250 = vmatpush1.msra.mxu0 0.0
    %1251 = vmatprep.subr.mxu0 0.0
    %1252 = vmatpush1.msra.mxu0 0.0
    %1253 = vmatprep.subr.mxu0 0.0
    %1254 = vmatpush1.msra.mxu0 0.0
    %1255 = vmatprep.subr.mxu0 0.0
    %1256 = vmatpush1.msra.mxu0 0.0
    %1257 = vmatprep.subr.mxu0 0.0
    %1258 = vmatpush1.msra.mxu0 0.0
    %1259 = vmatprep.subr.mxu0 0.0
    %1260 = vmatpush1.msra.mxu0 0.0
    %1261 = vmatprep.subr.mxu0 0.0
    %1262 = vmatpush1.msra.mxu0 0.0
    %1263 = vmatprep.subr.mxu0 0.0
    %1264 = vmatpush1.msra.mxu0 0.0
    %1265 = vmatprep.subr.mxu0 0.0
    %1266 = vmatpush1.msra.mxu0 0.0
    %1267 = vmatprep.subr.mxu0 0.0
    %1268 = vmatpush1.msra.mxu0 0.0
    %1269 = vmatprep.subr.mxu0 0.0
    %1270 = vmatpush1.msra.mxu0 0.0
    %1271 = vmatprep.subr.mxu0 0.0
    %1272 = vmatpush1.msra.mxu0 0.0
    %1273 = vmatprep.subr.mxu0 0.0
    %1274 = vmatpush1.msra.mxu0 0.0
    %1275 = vmatprep.subr.mxu0 0.0
    %1276 = vmatpush1.msra.mxu0 0.0
    %1277 = vmatprep.subr.mxu0 0.0
    %1278 = vmatpush1.msra.mxu0 0.0
    %1279 = vmatprep.subr.mxu0 0.0
    %1280 = vmatpush1.msra.mxu0 0.0
    %1281 = vmatprep.subr.mxu0 0.0
    %1282 = vmatpush1.msra.mxu0 0.0
    %1283 = vmatprep.subr.mxu0 0.0
    %1284 = vmatpush1.msra.mxu0 0.0
    %1285 = vmatprep.subr.mxu0 0.0
    %1286 = vmatpush1.msra.mxu0 0.0
    %1287 = vmatprep.subr.mxu0 0.0
    %1288 = vmatpush1.msra.mxu0 0.0
    %1289 = vmatprep.subr.mxu0 0.0
    %1290 = vmatpush1.msra.mxu0 0.0
    %1291 = vmatprep.mubr.f32.mxu0 0.0
    %1292 = vmatmul.mubr.f32.gmra.mrb[0].mxu0 %v1154
    %v1293 = vpop.f32.mrb[0].mxu0
    %v1294 = vadd.f32 0.0, %v1293
    %v1295 = vpop.f32.mrb[0].mxu0
    %1296 = vdwg.mxu0
    %1297 = vmatprep.subr.mxu0 0.0
    %1298 = vmatpush1.msra.mxu0 %v973
    %1299 = vmatprep.subr.mxu0 0.0
    %1300 = vmatpush1.msra.mxu0 %v974
    %1301 = vmatprep.subr.mxu0 0.0
    %1302 = vmatpush1.msra.mxu0 %v975
    %1303 = vmatprep.subr.mxu0 0.0
    %1304 = vmatpush1.msra.mxu0 %v976
    %1305 = vmatprep.subr.mxu0 0.0
    %1306 = vmatpush1.msra.mxu0 %v977
    %1307 = vmatprep.subr.mxu0 0.0
    %1308 = vmatpush1.msra.mxu0 %v978
    %1309 = vmatprep.subr.mxu0 0.0
    %1310 = vmatpush1.msra.mxu0 %v979
    %1311 = vmatprep.subr.mxu0 0.0
    %1312 = vmatpush1.msra.mxu0 %v980
    %1313 = vmatprep.subr.mxu0 0.0
    %1314 = vmatpush1.msra.mxu0 %v981
    %1315 = vmatprep.subr.mxu0 0.0
    %1316 = vmatpush1.msra.mxu0 %v982
    %1317 = vmatprep.subr.mxu0 0.0
    %1318 = vmatpush1.msra.mxu0 0.0
    %1319 = vmatprep.subr.mxu0 0.0
    %1320 = vmatpush1.msra.mxu0 0.0
    %1321 = vmatprep.subr.mxu0 0.0
    %1322 = vmatpush1.msra.mxu0 0.0
    %1323 = vmatprep.subr.mxu0 0.0
    %1324 = vmatpush1.msra.mxu0 0.0
    %1325 = vmatprep.subr.mxu0 0.0
    %1326 = vmatpush1.msra.mxu0 0.0
    %1327 = vmatprep.subr.mxu0 0.0
    %1328 = vmatpush1.msra.mxu0 0.0
    %1329 = vmatprep.subr.mxu0 0.0
    %1330 = vmatpush1.msra.mxu0 0.0
    %1331 = vmatprep.subr.mxu0 0.0
    %1332 = vmatpush1.msra.mxu0 0.0
    %1333 = vmatprep.subr.mxu0 0.0
    %1334 = vmatpush1.msra.mxu0 0.0
    %1335 = vmatprep.subr.mxu0 0.0
    %1336 = vmatpush1.msra.mxu0 0.0
    %1337 = vmatprep.subr.mxu0 0.0
    %1338 = vmatpush1.msra.mxu0 0.0
    %1339 = vmatprep.subr.mxu0 0.0
    %1340 = vmatpush1.msra.mxu0 0.0
    %1341 = vmatprep.subr.mxu0 0.0
    %1342 = vmatpush1.msra.mxu0 0.0
    %1343 = vmatprep.subr.mxu0 0.0
    %1344 = vmatpush1.msra.mxu0 0.0
    %1345 = vmatprep.subr.mxu0 0.0
    %1346 = vmatpush1.msra.mxu0 0.0
    %1347 = vmatprep.subr.mxu0 0.0
    %1348 = vmatpush1.msra.mxu0 0.0
    %1349 = vmatprep.subr.mxu0 0.0
    %1350 = vmatpush1.msra.mxu0 0.0
    %1351 = vmatprep.subr.mxu0 0.0
    %1352 = vmatpush1.msra.mxu0 0.0
    %1353 = vmatprep.subr.mxu0 0.0
    %1354 = vmatpush1.msra.mxu0 0.0
    %1355 = vmatprep.subr.mxu0 0.0
    %1356 = vmatpush1.msra.mxu0 0.0
    %1357 = vmatprep.subr.mxu0 0.0
    %1358 = vmatpush1.msra.mxu0 0.0
    %1359 = vmatprep.subr.mxu0 0.0
    %1360 = vmatpush1.msra.mxu0 0.0
    %1361 = vmatprep.mubr.f32.mxu0 0.0
    %1362 = vmatmul.mubr.f32.gmra.mrb[0].mxu0 %v996
    %v1363 = vpop.f32.mrb[0].mxu0
    %v1364 = vadd.f32 %v1294, %v1363
    %v1365 = vpop.f32.mrb[0].mxu0
    %1366 = vdwg.mxu0
    %v1367 = vld [vmem:[#allocation2 + $0x6] sm:$0xf]
    %v1369 = vsel %vm39, %v1367, 0
    %1371 = vmatprep.subr.mxu0 0.0
    %1372 = vmatpush1.msra.mxu0 %v1143
    %1373 = vmatprep.subr.mxu0 0.0
    %1374 = vmatpush1.msra.mxu0 %v1144
    %1375 = vmatprep.subr.mxu0 0.0
    %1376 = vmatpush1.msra.mxu0 %v1145
    %1377 = vmatprep.subr.mxu0 0.0
    %1378 = vmatpush1.msra.mxu0 %v1146
    %1379 = vmatprep.subr.mxu0 0.0
    %1380 = vmatpush1.msra.mxu0 %v1147
    %1381 = vmatprep.subr.mxu0 0.0
    %1382 = vmatpush1.msra.mxu0 %v1148
    %1383 = vmatprep.subr.mxu0 0.0
    %1384 = vmatpush1.msra.mxu0 %v1149
    %1385 = vmatprep.subr.mxu0 0.0
    %1386 = vmatpush1.msra.mxu0 %v1150
    %1387 = vmatprep.subr.mxu0 0.0
    %1388 = vmatpush1.msra.mxu0 %v1151
    %1389 = vmatprep.subr.mxu0 0.0
    %1390 = vmatpush1.msra.mxu0 %v1152
    %1391 = vmatprep.subr.mxu0 0.0
    %1392 = vmatpush1.msra.mxu0 0.0
    %1393 = vmatprep.subr.mxu0 0.0
    %1394 = vmatpush1.msra.mxu0 0.0
    %1395 = vmatprep.subr.mxu0 0.0
    %1396 = vmatpush1.msra.mxu0 0.0
    %1397 = vmatprep.subr.mxu0 0.0
    %1398 = vmatpush1.msra.mxu0 0.0
    %1399 = vmatprep.subr.mxu0 0.0
    %1400 = vmatpush1.msra.mxu0 0.0
    %1401 = vmatprep.subr.mxu0 0.0
    %1402 = vmatpush1.msra.mxu0 0.0
    %1403 = vmatprep.subr.mxu0 0.0
    %1404 = vmatpush1.msra.mxu0 0.0
    %1405 = vmatprep.subr.mxu0 0.0
    %1406 = vmatpush1.msra.mxu0 0.0
    %1407 = vmatprep.subr.mxu0 0.0
    %1408 = vmatpush1.msra.mxu0 0.0
    %1409 = vmatprep.subr.mxu0 0.0
    %1410 = vmatpush1.msra.mxu0 0.0
    %1411 = vmatprep.subr.mxu0 0.0
    %1412 = vmatpush1.msra.mxu0 0.0
    %1413 = vmatprep.subr.mxu0 0.0
    %1414 = vmatpush1.msra.mxu0 0.0
    %1415 = vmatprep.subr.mxu0 0.0
    %1416 = vmatpush1.msra.mxu0 0.0
    %1417 = vmatprep.subr.mxu0 0.0
    %1418 = vmatpush1.msra.mxu0 0.0
    %1419 = vmatprep.subr.mxu0 0.0
    %1420 = vmatpush1.msra.mxu0 0.0
    %1421 = vmatprep.subr.mxu0 0.0
    %1422 = vmatpush1.msra.mxu0 0.0
    %1423 = vmatprep.subr.mxu0 0.0
    %1424 = vmatpush1.msra.mxu0 0.0
    %1425 = vmatprep.subr.mxu0 0.0
    %1426 = vmatpush1.msra.mxu0 0.0
    %1427 = vmatprep.subr.mxu0 0.0
    %1428 = vmatpush1.msra.mxu0 0.0
    %1429 = vmatprep.subr.mxu0 0.0
    %1430 = vmatpush1.msra.mxu0 0.0
    %1431 = vmatprep.subr.mxu0 0.0
    %1432 = vmatpush1.msra.mxu0 0.0
    %1433 = vmatprep.subr.mxu0 0.0
    %1434 = vmatpush1.msra.mxu0 0.0
    %1435 = vmatprep.mubr.f32.mxu0 0.0
    %1436 = vmatmul.mubr.f32.gmra.mrb[0].mxu0 %v1369
    %v1437 = vpop.f32.mrb[0].mxu0
    %v1438 = vadd.f32 0.0, %v1437
    %v1439 = vpop.f32.mrb[0].mxu0
    %1440 = vdwg.mxu0
    %v1441 = vadd.f32 %v1364, %v1438
    %v1442 = vmax.f32 %v1226, %v1441
    %1444 = vrot.lane.b32.xlu0 %v1442, 64
    %v1445 = vpop.permute.xlu0 %1444
    %v1447 = vmax.f32 %v1442, %v1445
    %v1448 = vld [vmem:[%s4] sm:$0x1]
    %v1450 = vlaneseq
    %v1451 = vshrl.u32 %v1450, 7
    %v1452 = vsub.s32 0, %v1451
    %v1453 = vrot.slane %v1448, %v1452
    %v1455 = vadd.f32 %v1447, %v1453
    %v1456 = vmax.f32 %v1455, 0.0
    %v1457 = vld [vmem:[%s5] sm:$0xff]
    %v1458 = vld [vmem:[%s5 + $0x8] sm:$0xff]
    %v1459 = vld [vmem:[%s5 + $0x10] sm:$0xff]
    %v1460 = vld [vmem:[%s5 + $0x18] sm:$0xff]
    %v1461 = vld [vmem:[%s5 + $0x20] sm:$0xff]
    %v1462 = vld [vmem:[%s5 + $0x28] sm:$0xff]
    %v1463 = vld [vmem:[%s5 + $0x30] sm:$0xff]
    %v1464 = vld [vmem:[%s5 + $0x38] sm:$0xff]
    %s1465 = scalar_lea.vmem %s5, 64
    %v1466 = vld [vmem:[%s1465] sm:$0xff]
    %v1467 = vld [vmem:[%s1465 + $0x8] sm:$0xff]
    %v1468 = vld [vmem:[%s1465 + $0x10] sm:$0xff]
    %v1469 = vld [vmem:[%s1465 + $0x18] sm:$0xff]
    %v1470 = vld [vmem:[%s1465 + $0x20] sm:$0xff]
    %v1471 = vld [vmem:[%s1465 + $0x28] sm:$0xff]
    %v1472 = vld [vmem:[%s1465 + $0x30] sm:$0xff]
    %v1473 = vld [vmem:[%s1465 + $0x38] sm:$0xff]
    %v1475 = vrot.slane %v1456, 1
    %vm1476 = vcmask 523264
    %v1477 = vsel %vm1476, %v1475, 0
    %1479 = vmatprep.subr.mxu0 0.0
    %1480 = vmatpush1.msra.mxu0 %v1466
    %1481 = vmatprep.subr.mxu0 0.0
    %1482 = vmatpush1.msra.mxu0 %v1467
    %1483 = vmatprep.subr.mxu0 0.0
    %1484 = vmatpush1.msra.mxu0 %v1468
    %1485 = vmatprep.subr.mxu0 0.0
    %1486 = vmatpush1.msra.mxu0 %v1469
    %1487 = vmatprep.subr.mxu0 0.0
    %1488 = vmatpush1.msra.mxu0 %v1470
    %1489 = vmatprep.subr.mxu0 0.0
    %1490 = vmatpush1.msra.mxu0 %v1471
    %1491 = vmatprep.subr.mxu0 0.0
    %1492 = vmatpush1.msra.mxu0 %v1472
    %1493 = vmatprep.subr.mxu0 0.0
    %1494 = vmatpush1.msra.mxu0 %v1473
    %1495 = vmatprep.subr.mxu0 0.0
    %1496 = vmatpush1.msra.mxu0 0.0
    %1497 = vmatprep.subr.mxu0 0.0
    %1498 = vmatpush1.msra.mxu0 0.0
    %1499 = vmatprep.subr.mxu0 0.0
    %1500 = vmatpush1.msra.mxu0 0.0
    %1501 = vmatprep.subr.mxu0 0.0
    %1502 = vmatpush1.msra.mxu0 0.0
    %1503 = vmatprep.subr.mxu0 0.0
    %1504 = vmatpush1.msra.mxu0 0.0
    %1505 = vmatprep.subr.mxu0 0.0
    %1506 = vmatpush1.msra.mxu0 0.0
    %1507 = vmatprep.subr.mxu0 0.0
    %1508 = vmatpush1.msra.mxu0 0.0
    %1509 = vmatprep.subr.mxu0 0.0
    %1510 = vmatpush1.msra.mxu0 0.0
    %1511 = vmatprep.subr.mxu0 0.0
    %1512 = vmatpush1.msra.mxu0 0.0
    %1513 = vmatprep.subr.mxu0 0.0
    %1514 = vmatpush1.msra.mxu0 0.0
    %1515 = vmatprep.subr.mxu0 0.0
    %1516 = vmatpush1.msra.mxu0 0.0
    %1517 = vmatprep.subr.mxu0 0.0
    %1518 = vmatpush1.msra.mxu0 0.0
    %1519 = vmatprep.subr.mxu0 0.0
    %1520 = vmatpush1.msra.mxu0 0.0
    %1521 = vmatprep.subr.mxu0 0.0
    %1522 = vmatpush1.msra.mxu0 0.0
    %1523 = vmatprep.subr.mxu0 0.0
    %1524 = vmatpush1.msra.mxu0 0.0
    %1525 = vmatprep.subr.mxu0 0.0
    %1526 = vmatpush1.msra.mxu0 0.0
    %1527 = vmatprep.subr.mxu0 0.0
    %1528 = vmatpush1.msra.mxu0 0.0
    %1529 = vmatprep.subr.mxu0 0.0
    %1530 = vmatpush1.msra.mxu0 0.0
    %1531 = vmatprep.subr.mxu0 0.0
    %1532 = vmatpush1.msra.mxu0 0.0
    %1533 = vmatprep.subr.mxu0 0.0
    %1534 = vmatpush1.msra.mxu0 0.0
    %1535 = vmatprep.subr.mxu0 0.0
    %1536 = vmatpush1.msra.mxu0 0.0
    %1537 = vmatprep.subr.mxu0 0.0
    %1538 = vmatpush1.msra.mxu0 0.0
    %1539 = vmatprep.subr.mxu0 0.0
    %1540 = vmatpush1.msra.mxu0 0.0
    %1541 = vmatprep.subr.mxu0 0.0
    %1542 = vmatpush1.msra.mxu0 0.0
    %1543 = vmatprep.mubr.f32.mxu0 0.0
    %1544 = vmatmul.mubr.f32.gmra.mrb[0].mxu0 %v1477
    %v1545 = vpop.f32.mrb[0].mxu0
    %v1546 = vadd.f32 0.0, %v1545
    %v1547 = vpop.f32.mrb[0].mxu0
    %1548 = vdwg.mxu0
    %v1549 = vsel %vm1476, %v1456, 0
    %1551 = vmatprep.subr.mxu0 0.0
    %1552 = vmatpush1.msra.mxu0 %v1457
    %1553 = vmatprep.subr.mxu0 0.0
    %1554 = vmatpush1.msra.mxu0 %v1458
    %1555 = vmatprep.subr.mxu0 0.0
    %1556 = vmatpush1.msra.mxu0 %v1459
    %1557 = vmatprep.subr.mxu0 0.0
    %1558 = vmatpush1.msra.mxu0 %v1460
    %1559 = vmatprep.subr.mxu0 0.0
    %1560 = vmatpush1.msra.mxu0 %v1461
    %1561 = vmatprep.subr.mxu0 0.0
    %1562 = vmatpush1.msra.mxu0 %v1462
    %1563 = vmatprep.subr.mxu0 0.0
    %1564 = vmatpush1.msra.mxu0 %v1463
    %1565 = vmatprep.subr.mxu0 0.0
    %1566 = vmatpush1.msra.mxu0 %v1464
    %1567 = vmatprep.subr.mxu0 0.0
    %1568 = vmatpush1.msra.mxu0 0.0
    %1569 = vmatprep.subr.mxu0 0.0
    %1570 = vmatpush1.msra.mxu0 0.0
    %1571 = vmatprep.subr.mxu0 0.0
    %1572 = vmatpush1.msra.mxu0 0.0
    %1573 = vmatprep.subr.mxu0 0.0
    %1574 = vmatpush1.msra.mxu0 0.0
    %1575 = vmatprep.subr.mxu0 0.0
    %1576 = vmatpush1.msra.mxu0 0.0
    %1577 = vmatprep.subr.mxu0 0.0
    %1578 = vmatpush1.msra.mxu0 0.0
    %1579 = vmatprep.subr.mxu0 0.0
    %1580 = vmatpush1.msra.mxu0 0.0
    %1581 = vmatprep.subr.mxu0 0.0
    %1582 = vmatpush1.msra.mxu0 0.0
    %1583 = vmatprep.subr.mxu0 0.0
    %1584 = vmatpush1.msra.mxu0 0.0
    %1585 = vmatprep.subr.mxu0 0.0
    %1586 = vmatpush1.msra.mxu0 0.0
    %1587 = vmatprep.subr.mxu0 0.0
    %1588 = vmatpush1.msra.mxu0 0.0
    %1589 = vmatprep.subr.mxu0 0.0
    %1590 = vmatpush1.msra.mxu0 0.0
    %1591 = vmatprep.subr.mxu0 0.0
    %1592 = vmatpush1.msra.mxu0 0.0
    %1593 = vmatprep.subr.mxu0 0.0
    %1594 = vmatpush1.msra.mxu0 0.0
    %1595 = vmatprep.subr.mxu0 0.0
    %1596 = vmatpush1.msra.mxu0 0.0
    %1597 = vmatprep.subr.mxu0 0.0
    %1598 = vmatpush1.msra.mxu0 0.0
    %1599 = vmatprep.subr.mxu0 0.0
    %1600 = vmatpush1.msra.mxu0 0.0
    %1601 = vmatprep.subr.mxu0 0.0
    %1602 = vmatpush1.msra.mxu0 0.0
    %1603 = vmatprep.subr.mxu0 0.0
    %1604 = vmatpush1.msra.mxu0 0.0
    %1605 = vmatprep.subr.mxu0 0.0
    %1606 = vmatpush1.msra.mxu0 0.0
    %1607 = vmatprep.subr.mxu0 0.0
    %1608 = vmatpush1.msra.mxu0 0.0
    %1609 = vmatprep.subr.mxu0 0.0
    %1610 = vmatpush1.msra.mxu0 0.0
    %1611 = vmatprep.subr.mxu0 0.0
    %1612 = vmatpush1.msra.mxu0 0.0
    %1613 = vmatprep.subr.mxu0 0.0
    %1614 = vmatpush1.msra.mxu0 0.0
    %1615 = vmatprep.mubr.f32.mxu0 0.0
    %1616 = vmatmul.mubr.f32.gmra.mrb[0].mxu0 %v1549
    %v1617 = vpop.f32.mrb[0].mxu0
    %v1618 = vadd.f32 %v1546, %v1617
    %v1619 = vpop.f32.mrb[0].mxu0
    %1620 = vdwg.mxu0
    %s1621 = scalar_lea.vmem %s5, 128
    %v1622 = vld [vmem:[%s1621] sm:$0xff]
    %v1623 = vld [vmem:[%s1621 + $0x8] sm:$0xff]
    %v1624 = vld [vmem:[%s1621 + $0x10] sm:$0xff]
    %v1625 = vld [vmem:[%s1621 + $0x18] sm:$0xff]
    %v1626 = vld [vmem:[%s1621 + $0x20] sm:$0xff]
    %v1627 = vld [vmem:[%s1621 + $0x28] sm:$0xff]
    %v1628 = vld [vmem:[%s1621 + $0x30] sm:$0xff]
    %v1629 = vld [vmem:[%s1621 + $0x38] sm:$0xff]
    %v1630 = vrot.slane %v1456, 2
    %v1631 = vsel %vm1476, %v1630, 0
    %1633 = vmatprep.subr.mxu0 0.0
    %1634 = vmatpush1.msra.mxu0 %v1622
    %1635 = vmatprep.subr.mxu0 0.0
    %1636 = vmatpush1.msra.mxu0 %v1623
    %1637 = vmatprep.subr.mxu0 0.0
    %1638 = vmatpush1.msra.mxu0 %v1624
    %1639 = vmatprep.subr.mxu0 0.0
    %1640 = vmatpush1.msra.mxu0 %v1625
    %1641 = vmatprep.subr.mxu0 0.0
    %1642 = vmatpush1.msra.mxu0 %v1626
    %1643 = vmatprep.subr.mxu0 0.0
    %1644 = vmatpush1.msra.mxu0 %v1627
    %1645 = vmatprep.subr.mxu0 0.0
    %1646 = vmatpush1.msra.mxu0 %v1628
    %1647 = vmatprep.subr.mxu0 0.0
    %1648 = vmatpush1.msra.mxu0 %v1629
    %1649 = vmatprep.subr.mxu0 0.0
    %1650 = vmatpush1.msra.mxu0 0.0
    %1651 = vmatprep.subr.mxu0 0.0
    %1652 = vmatpush1.msra.mxu0 0.0
    %1653 = vmatprep.subr.mxu0 0.0
    %1654 = vmatpush1.msra.mxu0 0.0
    %1655 = vmatprep.subr.mxu0 0.0
    %1656 = vmatpush1.msra.mxu0 0.0
    %1657 = vmatprep.subr.mxu0 0.0
    %1658 = vmatpush1.msra.mxu0 0.0
    %1659 = vmatprep.subr.mxu0 0.0
    %1660 = vmatpush1.msra.mxu0 0.0
    %1661 = vmatprep.subr.mxu0 0.0
    %1662 = vmatpush1.msra.mxu0 0.0
    %1663 = vmatprep.subr.mxu0 0.0
    %1664 = vmatpush1.msra.mxu0 0.0
    %1665 = vmatprep.subr.mxu0 0.0
    %1666 = vmatpush1.msra.mxu0 0.0
    %1667 = vmatprep.subr.mxu0 0.0
    %1668 = vmatpush1.msra.mxu0 0.0
    %1669 = vmatprep.subr.mxu0 0.0
    %1670 = vmatpush1.msra.mxu0 0.0
    %1671 = vmatprep.subr.mxu0 0.0
    %1672 = vmatpush1.msra.mxu0 0.0
    %1673 = vmatprep.subr.mxu0 0.0
    %1674 = vmatpush1.msra.mxu0 0.0
    %1675 = vmatprep.subr.mxu0 0.0
    %1676 = vmatpush1.msra.mxu0 0.0
    %1677 = vmatprep.subr.mxu0 0.0
    %1678 = vmatpush1.msra.mxu0 0.0
    %1679 = vmatprep.subr.mxu0 0.0
    %1680 = vmatpush1.msra.mxu0 0.0
    %1681 = vmatprep.subr.mxu0 0.0
    %1682 = vmatpush1.msra.mxu0 0.0
    %1683 = vmatprep.subr.mxu0 0.0
    %1684 = vmatpush1.msra.mxu0 0.0
    %1685 = vmatprep.subr.mxu0 0.0
    %1686 = vmatpush1.msra.mxu0 0.0
    %1687 = vmatprep.subr.mxu0 0.0
    %1688 = vmatpush1.msra.mxu0 0.0
    %1689 = vmatprep.subr.mxu0 0.0
    %1690 = vmatpush1.msra.mxu0 0.0
    %1691 = vmatprep.subr.mxu0 0.0
    %1692 = vmatpush1.msra.mxu0 0.0
    %1693 = vmatprep.subr.mxu0 0.0
    %1694 = vmatpush1.msra.mxu0 0.0
    %1695 = vmatprep.subr.mxu0 0.0
    %1696 = vmatpush1.msra.mxu0 0.0
    %1697 = vmatprep.mubr.f32.mxu0 0.0
    %1698 = vmatmul.mubr.f32.gmra.mrb[0].mxu0 %v1631
    %v1699 = vpop.f32.mrb[0].mxu0
    %v1700 = vadd.f32 0.0, %v1699
    %v1701 = vpop.f32.mrb[0].mxu0
    %1702 = vdwg.mxu0
    %v1703 = vadd.f32 %v1618, %v1700
    %s1704 = scalar_lea.vmem %s5, 192
    %v1705 = vld [vmem:[%s1704] sm:$0xff]
    %v1706 = vld [vmem:[%s1704 + $0x8] sm:$0xff]
    %v1707 = vld [vmem:[%s1704 + $0x10] sm:$0xff]
    %v1708 = vld [vmem:[%s1704 + $0x18] sm:$0xff]
    %v1709 = vld [vmem:[%s1704 + $0x20] sm:$0xff]
    %v1710 = vld [vmem:[%s1704 + $0x28] sm:$0xff]
    %v1711 = vld [vmem:[%s1704 + $0x30] sm:$0xff]
    %v1712 = vld [vmem:[%s1704 + $0x38] sm:$0xff]
    %v1713 = vrot.slane %v1456, 3
    %v1714 = vsel %vm1476, %v1713, 0
    %1716 = vmatprep.subr.mxu0 0.0
    %1717 = vmatpush1.msra.mxu0 %v1705
    %1718 = vmatprep.subr.mxu0 0.0
    %1719 = vmatpush1.msra.mxu0 %v1706
    %1720 = vmatprep.subr.mxu0 0.0
    %1721 = vmatpush1.msra.mxu0 %v1707
    %1722 = vmatprep.subr.mxu0 0.0
    %1723 = vmatpush1.msra.mxu0 %v1708
    %1724 = vmatprep.subr.mxu0 0.0
    %1725 = vmatpush1.msra.mxu0 %v1709
    %1726 = vmatprep.subr.mxu0 0.0
    %1727 = vmatpush1.msra.mxu0 %v1710
    %1728 = vmatprep.subr.mxu0 0.0
    %1729 = vmatpush1.msra.mxu0 %v1711
    %1730 = vmatprep.subr.mxu0 0.0
    %1731 = vmatpush1.msra.mxu0 %v1712
    %1732 = vmatprep.subr.mxu0 0.0
    %1733 = vmatpush1.msra.mxu0 0.0
    %1734 = vmatprep.subr.mxu0 0.0
    %1735 = vmatpush1.msra.mxu0 0.0
    %1736 = vmatprep.subr.mxu0 0.0
    %1737 = vmatpush1.msra.mxu0 0.0
    %1738 = vmatprep.subr.mxu0 0.0
    %1739 = vmatpush1.msra.mxu0 0.0
    %1740 = vmatprep.subr.mxu0 0.0
    %1741 = vmatpush1.msra.mxu0 0.0
    %1742 = vmatprep.subr.mxu0 0.0
    %1743 = vmatpush1.msra.mxu0 0.0
    %1744 = vmatprep.subr.mxu0 0.0
    %1745 = vmatpush1.msra.mxu0 0.0
    %1746 = vmatprep.subr.mxu0 0.0
    %1747 = vmatpush1.msra.mxu0 0.0
    %1748 = vmatprep.subr.mxu0 0.0
    %1749 = vmatpush1.msra.mxu0 0.0
    %1750 = vmatprep.subr.mxu0 0.0
    %1751 = vmatpush1.msra.mxu0 0.0
    %1752 = vmatprep.subr.mxu0 0.0
    %1753 = vmatpush1.msra.mxu0 0.0
    %1754 = vmatprep.subr.mxu0 0.0
    %1755 = vmatpush1.msra.mxu0 0.0
    %1756 = vmatprep.subr.mxu0 0.0
    %1757 = vmatpush1.msra.mxu0 0.0
    %1758 = vmatprep.subr.mxu0 0.0
    %1759 = vmatpush1.msra.mxu0 0.0
    %1760 = vmatprep.subr.mxu0 0.0
    %1761 = vmatpush1.msra.mxu0 0.0
    %1762 = vmatprep.subr.mxu0 0.0
    %1763 = vmatpush1.msra.mxu0 0.0
    %1764 = vmatprep.subr.mxu0 0.0
    %1765 = vmatpush1.msra.mxu0 0.0
    %1766 = vmatprep.subr.mxu0 0.0
    %1767 = vmatpush1.msra.mxu0 0.0
    %1768 = vmatprep.subr.mxu0 0.0
    %1769 = vmatpush1.msra.mxu0 0.0
    %1770 = vmatprep.subr.mxu0 0.0
    %1771 = vmatpush1.msra.mxu0 0.0
    %1772 = vmatprep.subr.mxu0 0.0
    %1773 = vmatpush1.msra.mxu0 0.0
    %1774 = vmatprep.subr.mxu0 0.0
    %1775 = vmatpush1.msra.mxu0 0.0
    %1776 = vmatprep.subr.mxu0 0.0
    %1777 = vmatpush1.msra.mxu0 0.0
    %1778 = vmatprep.subr.mxu0 0.0
    %1779 = vmatpush1.msra.mxu0 0.0
    %1780 = vmatprep.mubr.f32.mxu0 0.0
    %1781 = vmatmul.mubr.f32.gmra.mrb[0].mxu0 %v1714
    %v1782 = vpop.f32.mrb[0].mxu0
    %v1783 = vadd.f32 0.0, %v1782
    %v1784 = vpop.f32.mrb[0].mxu0
    %1785 = vdwg.mxu0
    %v1786 = vadd.f32 %v1703, %v1783
    %v1787 = vld [vmem:[%s6] sm:$0x1]
    %v1788 = vadd.f32 %v1786, %v1787
    %v1789 = vmax.f32 %v1788, 0.0
    %v1790 = vld [vmem:[%s7] sm:$0xff]
    %v1791 = vld [vmem:[%s7 + $0x8] sm:$0xff]
    %v1792 = vld [vmem:[%s7 + $0x10] sm:$0xff]
    %v1793 = vld [vmem:[%s7 + $0x18] sm:$0xff]
    %v1794 = vld [vmem:[%s7 + $0x20] sm:$0xff]
    %v1795 = vld [vmem:[%s7 + $0x28] sm:$0xff]
    %v1796 = vld [vmem:[%s7 + $0x30] sm:$0xff]
    %v1797 = vld [vmem:[%s7 + $0x38] sm:$0xff]
    %v1798 = vld [vmem:[%s7 + $0x40] sm:$0xff]
    %v1799 = vld [vmem:[%s7 + $0x48] sm:$0xff]
    %v1800 = vld [vmem:[%s7 + $0x50] sm:$0xff]
    %v1801 = vld [vmem:[%s7 + $0x58] sm:$0xff]
    %v1802 = vld [vmem:[%s7 + $0x60] sm:$0xff]
    %v1803 = vld [vmem:[%s7 + $0x68] sm:$0xff]
    %v1804 = vld [vmem:[%s7 + $0x70] sm:$0xff]
    %v1805 = vld [vmem:[%s7 + $0x78] sm:$0xff]
    %v1806 = vld [vmem:[%s8] sm:$0x1]
    %1807 = vmatprep.subr.mxu0 0.0
    %1808 = vmatpush1.msra.mxu0 %v1790
    %1809 = vmatprep.subr.mxu0 0.0
    %1810 = vmatpush1.msra.mxu0 %v1791
    %1811 = vmatprep.subr.mxu0 0.0
    %1812 = vmatpush1.msra.mxu0 %v1792
    %1813 = vmatprep.subr.mxu0 0.0
    %1814 = vmatpush1.msra.mxu0 %v1793
    %1815 = vmatprep.subr.mxu0 0.0
    %1816 = vmatpush1.msra.mxu0 %v1794
    %1817 = vmatprep.subr.mxu0 0.0
    %1818 = vmatpush1.msra.mxu0 %v1795
    %1819 = vmatprep.subr.mxu0 0.0
    %1820 = vmatpush1.msra.mxu0 %v1796
    %1821 = vmatprep.subr.mxu0 0.0
    %1822 = vmatpush1.msra.mxu0 %v1797
    %1823 = vmatprep.subr.mxu0 0.0
    %1824 = vmatpush1.msra.mxu0 %v1798
    %1825 = vmatprep.subr.mxu0 0.0
    %1826 = vmatpush1.msra.mxu0 %v1799
    %1827 = vmatprep.subr.mxu0 0.0
    %1828 = vmatpush1.msra.mxu0 %v1800
    %1829 = vmatprep.subr.mxu0 0.0
    %1830 = vmatpush1.msra.mxu0 %v1801
    %1831 = vmatprep.subr.mxu0 0.0
    %1832 = vmatpush1.msra.mxu0 %v1802
    %1833 = vmatprep.subr.mxu0 0.0
    %1834 = vmatpush1.msra.mxu0 %v1803
    %1835 = vmatprep.subr.mxu0 0.0
    %1836 = vmatpush1.msra.mxu0 %v1804
    %1837 = vmatprep.subr.mxu0 0.0
    %1838 = vmatpush1.msra.mxu0 %v1805
    %1839 = vmatprep.subr.mxu0 0.0
    %1840 = vmatpush1.msra.mxu0 0.0
    %1841 = vmatprep.subr.mxu0 0.0
    %1842 = vmatpush1.msra.mxu0 0.0
    %1843 = vmatprep.subr.mxu0 0.0
    %1844 = vmatpush1.msra.mxu0 0.0
    %1845 = vmatprep.subr.mxu0 0.0
    %1846 = vmatpush1.msra.mxu0 0.0
    %1847 = vmatprep.subr.mxu0 0.0
    %1848 = vmatpush1.msra.mxu0 0.0
    %1849 = vmatprep.subr.mxu0 0.0
    %1850 = vmatpush1.msra.mxu0 0.0
    %1851 = vmatprep.subr.mxu0 0.0
    %1852 = vmatpush1.msra.mxu0 0.0
    %1853 = vmatprep.subr.mxu0 0.0
    %1854 = vmatpush1.msra.mxu0 0.0
    %1855 = vmatprep.subr.mxu0 0.0
    %1856 = vmatpush1.msra.mxu0 0.0
    %1857 = vmatprep.subr.mxu0 0.0
    %1858 = vmatpush1.msra.mxu0 0.0
    %1859 = vmatprep.subr.mxu0 0.0
    %1860 = vmatpush1.msra.mxu0 0.0
    %1861 = vmatprep.subr.mxu0 0.0
    %1862 = vmatpush1.msra.mxu0 0.0
    %1863 = vmatprep.subr.mxu0 0.0
    %1864 = vmatpush1.msra.mxu0 0.0
    %1865 = vmatprep.subr.mxu0 0.0
    %1866 = vmatpush1.msra.mxu0 0.0
    %1867 = vmatprep.subr.mxu0 0.0
    %1868 = vmatpush1.msra.mxu0 0.0
    %1869 = vmatprep.subr.mxu0 0.0
    %1870 = vmatpush1.msra.mxu0 0.0
    %1871 = vmatprep.mubr.f32.mxu0 0.0
    %1872 = vmatmul.mubr.f32.gmra.mrb[0].mxu0 %v1789
    %v1873 = vpop.f32.mrb[0].mxu0
    %v1874 = vadd.f32 %v1806, %v1873
    %v1875 = vpop.f32.mrb[0].mxu0
    %1876 = vdwg.mxu0
    %v1877 = vmax.f32 %v1874, 0.0
    %v1878 = vld [vmem:[%s9] sm:$0xff]
    %v1879 = vld [vmem:[%s9 + $0x8] sm:$0xff]
    %v1880 = vld [vmem:[%s9 + $0x10] sm:$0xff]
    %v1881 = vld [vmem:[%s9 + $0x18] sm:$0xff]
    %v1882 = vld [vmem:[%s9 + $0x20] sm:$0xff]
    %v1883 = vld [vmem:[%s9 + $0x28] sm:$0xff]
    %v1884 = vld [vmem:[%s9 + $0x30] sm:$0xff]
    %v1885 = vld [vmem:[%s9 + $0x38] sm:$0xff]
    %v1886 = vld [vmem:[%s9 + $0x40] sm:$0xff]
    %v1887 = vld [vmem:[%s9 + $0x48] sm:$0xff]
    %v1888 = vld [vmem:[%s9 + $0x50] sm:$0xff]
    %v1889 = vld [vmem:[%s9 + $0x58] sm:$0xff]
    %v1890 = vld [vmem:[%s9 + $0x60] sm:$0xff]
    %v1891 = vld [vmem:[%s9 + $0x68] sm:$0xff]
    %v1892 = vld [vmem:[%s9 + $0x70] sm:$0xff]
    %v1893 = vld [vmem:[%s9 + $0x78] sm:$0xff]
    %v1894 = vld [vmem:[%s10] sm:$0x1]
    %1895 = vmatprep.subr.mxu0 0.0
    %1896 = vmatpush1.msra.mxu0 %v1878
    %1897 = vmatprep.subr.mxu0 0.0
    %1898 = vmatpush1.msra.mxu0 %v1879
    %1899 = vmatprep.subr.mxu0 0.0
    %1900 = vmatpush1.msra.mxu0 %v1880
    %1901 = vmatprep.subr.mxu0 0.0
    %1902 = vmatpush1.msra.mxu0 %v1881
    %1903 = vmatprep.subr.mxu0 0.0
    %1904 = vmatpush1.msra.mxu0 %v1882
    %1905 = vmatprep.subr.mxu0 0.0
    %1906 = vmatpush1.msra.mxu0 %v1883
    %1907 = vmatprep.subr.mxu0 0.0
    %1908 = vmatpush1.msra.mxu0 %v1884
    %1909 = vmatprep.subr.mxu0 0.0
    %1910 = vmatpush1.msra.mxu0 %v1885
    %1911 = vmatprep.subr.mxu0 0.0
    %1912 = vmatpush1.msra.mxu0 %v1886
    %1913 = vmatprep.subr.mxu0 0.0
    %1914 = vmatpush1.msra.mxu0 %v1887
    %1915 = vmatprep.subr.mxu0 0.0
    %1916 = vmatpush1.msra.mxu0 %v1888
    %1917 = vmatprep.subr.mxu0 0.0
    %1918 = vmatpush1.msra.mxu0 %v1889
    %1919 = vmatprep.subr.mxu0 0.0
    %1920 = vmatpush1.msra.mxu0 %v1890
    %1921 = vmatprep.subr.mxu0 0.0
    %1922 = vmatpush1.msra.mxu0 %v1891
    %1923 = vmatprep.subr.mxu0 0.0
    %1924 = vmatpush1.msra.mxu0 %v1892
    %1925 = vmatprep.subr.mxu0 0.0
    %1926 = vmatpush1.msra.mxu0 %v1893
    %1927 = vmatprep.subr.mxu0 0.0
    %1928 = vmatpush1.msra.mxu0 0.0
    %1929 = vmatprep.subr.mxu0 0.0
    %1930 = vmatpush1.msra.mxu0 0.0
    %1931 = vmatprep.subr.mxu0 0.0
    %1932 = vmatpush1.msra.mxu0 0.0
    %1933 = vmatprep.subr.mxu0 0.0
    %1934 = vmatpush1.msra.mxu0 0.0
    %1935 = vmatprep.subr.mxu0 0.0
    %1936 = vmatpush1.msra.mxu0 0.0
    %1937 = vmatprep.subr.mxu0 0.0
    %1938 = vmatpush1.msra.mxu0 0.0
    %1939 = vmatprep.subr.mxu0 0.0
    %1940 = vmatpush1.msra.mxu0 0.0
    %1941 = vmatprep.subr.mxu0 0.0
    %1942 = vmatpush1.msra.mxu0 0.0
    %1943 = vmatprep.subr.mxu0 0.0
    %1944 = vmatpush1.msra.mxu0 0.0
    %1945 = vmatprep.subr.mxu0 0.0
    %1946 = vmatpush1.msra.mxu0 0.0
    %1947 = vmatprep.subr.mxu0 0.0
    %1948 = vmatpush1.msra.mxu0 0.0
    %1949 = vmatprep.subr.mxu0 0.0
    %1950 = vmatpush1.msra.mxu0 0.0
    %1951 = vmatprep.subr.mxu0 0.0
    %1952 = vmatpush1.msra.mxu0 0.0
    %1953 = vmatprep.subr.mxu0 0.0
    %1954 = vmatpush1.msra.mxu0 0.0
    %1955 = vmatprep.subr.mxu0 0.0
    %1956 = vmatpush1.msra.mxu0 0.0
    %1957 = vmatprep.subr.mxu0 0.0
    %1958 = vmatpush1.msra.mxu0 0.0
    %1959 = vmatprep.mubr.f32.mxu0 0.0
    %1960 = vmatmul.mubr.f32.gmra.mrb[0].mxu0 %v1877
    %v1961 = vpop.f32.mrb[0].mxu0
    %v1962 = vadd.f32 %v1894, %v1961
    %v1963 = vpop.f32.mrb[0].mxu0
    %1964 = vdwg.mxu0
    %1965 = vst [vmem:[#allocation3] sm:$0x1] %v1962
    %s1966 = scalar_lea.vmem %s0, 24
    %v1967 = vld [vmem:[%s1966] sm:$0xff]
    %v1968 = vld [vmem:[%s1966 + $0x8] sm:$0xff]
    %v1969 = vld [vmem:[%s1966 + $0x10] sm:$0x3]
    %v1970 = vld [vmem:[%s1] sm:$0xff]
    %v1971 = vld [vmem:[%s1 + $0x8] sm:$0xff]
    %v1972 = vld [vmem:[%s1 + $0x10] sm:$0x3]
    %v1973 = vld [vmem:[%s49] sm:$0xff]
    %v1974 = vld [vmem:[%s49 + $0x8] sm:$0xff]
    %v1975 = vld [vmem:[%s49 + $0x10] sm:$0x3]
    %v1978 = vrot.slane %v1967, 5
    %v1979 = vrot.slane %v1968, 5
    %v1980 = vsel %vm55, %v1978, %v1979
    %v1981 = vsel %vm59, %v1980, 0
    %v1984 = vsel %vm62, %v1975, 0
    %1986 = vmatprep.subr.mxu0 0.0
    %1987 = vmatpush1.msra.mxu0 %v1973
    %1988 = vmatprep.subr.mxu0 0.0
    %1989 = vmatpush1.msra.mxu0 %v1974
    %1990 = vmatprep.subr.mxu0 0.0
    %1991 = vmatpush1.msra.mxu0 %v1984
    %1992 = vmatprep.subr.mxu0 0.0
    %1993 = vmatpush1.msra.mxu0 0.0
    %1994 = vmatprep.subr.mxu0 0.0
    %1995 = vmatpush1.msra.mxu0 0.0
    %1996 = vmatprep.subr.mxu0 0.0
    %1997 = vmatpush1.msra.mxu0 0.0
    %1998 = vmatprep.subr.mxu0 0.0
    %1999 = vmatpush1.msra.mxu0 0.0
    %2000 = vmatprep.subr.mxu0 0.0
    %2001 = vmatpush1.msra.mxu0 0.0
    %2002 = vmatprep.subr.mxu0 0.0
    %2003 = vmatpush1.msra.mxu0 0.0
    %2004 = vmatprep.subr.mxu0 0.0
    %2005 = vmatpush1.msra.mxu0 0.0
    %2006 = vmatprep.subr.mxu0 0.0
    %2007 = vmatpush1.msra.mxu0 0.0
    %2008 = vmatprep.subr.mxu0 0.0
    %2009 = vmatpush1.msra.mxu0 0.0
    %2010 = vmatprep.subr.mxu0 0.0
    %2011 = vmatpush1.msra.mxu0 0.0
    %2012 = vmatprep.subr.mxu0 0.0
    %2013 = vmatpush1.msra.mxu0 0.0
    %2014 = vmatprep.subr.mxu0 0.0
    %2015 = vmatpush1.msra.mxu0 0.0
    %2016 = vmatprep.subr.mxu0 0.0
    %2017 = vmatpush1.msra.mxu0 0.0
    %2018 = vmatprep.subr.mxu0 0.0
    %2019 = vmatpush1.msra.mxu0 0.0
    %2020 = vmatprep.subr.mxu0 0.0
    %2021 = vmatpush1.msra.mxu0 0.0
    %2022 = vmatprep.subr.mxu0 0.0
    %2023 = vmatpush1.msra.mxu0 0.0
    %2024 = vmatprep.subr.mxu0 0.0
    %2025 = vmatpush1.msra.mxu0 0.0
    %2026 = vmatprep.subr.mxu0 0.0
    %2027 = vmatpush1.msra.mxu0 0.0
    %2028 = vmatprep.subr.mxu0 0.0
    %2029 = vmatpush1.msra.mxu0 0.0
    %2030 = vmatprep.subr.mxu0 0.0
    %2031 = vmatpush1.msra.mxu0 0.0
    %2032 = vmatprep.subr.mxu0 0.0
    %2033 = vmatpush1.msra.mxu0 0.0
    %2034 = vmatprep.subr.mxu0 0.0
    %2035 = vmatpush1.msra.mxu0 0.0
    %2036 = vmatprep.subr.mxu0 0.0
    %2037 = vmatpush1.msra.mxu0 0.0
    %2038 = vmatprep.subr.mxu0 0.0
    %2039 = vmatpush1.msra.mxu0 0.0
    %2040 = vmatprep.subr.mxu0 0.0
    %2041 = vmatpush1.msra.mxu0 0.0
    %2042 = vmatprep.subr.mxu0 0.0
    %2043 = vmatpush1.msra.mxu0 0.0
    %2044 = vmatprep.subr.mxu0 0.0
    %2045 = vmatpush1.msra.mxu0 0.0
    %2046 = vmatprep.subr.mxu0 0.0
    %2047 = vmatpush1.msra.mxu0 0.0
    %2048 = vmatprep.subr.mxu0 0.0
    %2049 = vmatpush1.msra.mxu0 0.0
    %2050 = vmatprep.mubr.f32.mxu0 0.0
    %2051 = vmatmul.mubr.f32.gmra.mrb[0].mxu0 %v1981
    %v2052 = vpop.f32.mrb[0].mxu0
    %v2053 = vadd.f32 0.0, %v2052
    %v2054 = vpop.f32.mrb[0].mxu0
    %2055 = vdwg.mxu0
    %v2056 = vsel %vm59, %v1967, 0
    %v2059 = vsel %vm62, %v1972, 0
    %2061 = vmatprep.subr.mxu0 0.0
    %2062 = vmatpush1.msra.mxu0 %v1970
    %2063 = vmatprep.subr.mxu0 0.0
    %2064 = vmatpush1.msra.mxu0 %v1971
    %2065 = vmatprep.subr.mxu0 0.0
    %2066 = vmatpush1.msra.mxu0 %v2059
    %2067 = vmatprep.subr.mxu0 0.0
    %2068 = vmatpush1.msra.mxu0 0.0
    %2069 = vmatprep.subr.mxu0 0.0
    %2070 = vmatpush1.msra.mxu0 0.0
    %2071 = vmatprep.subr.mxu0 0.0
    %2072 = vmatpush1.msra.mxu0 0.0
    %2073 = vmatprep.subr.mxu0 0.0
    %2074 = vmatpush1.msra.mxu0 0.0
    %2075 = vmatprep.subr.mxu0 0.0
    %2076 = vmatpush1.msra.mxu0 0.0
    %2077 = vmatprep.subr.mxu0 0.0
    %2078 = vmatpush1.msra.mxu0 0.0
    %2079 = vmatprep.subr.mxu0 0.0
    %2080 = vmatpush1.msra.mxu0 0.0
    %2081 = vmatprep.subr.mxu0 0.0
    %2082 = vmatpush1.msra.mxu0 0.0
    %2083 = vmatprep.subr.mxu0 0.0
    %2084 = vmatpush1.msra.mxu0 0.0
    %2085 = vmatprep.subr.mxu0 0.0
    %2086 = vmatpush1.msra.mxu0 0.0
    %2087 = vmatprep.subr.mxu0 0.0
    %2088 = vmatpush1.msra.mxu0 0.0
    %2089 = vmatprep.subr.mxu0 0.0
    %2090 = vmatpush1.msra.mxu0 0.0
    %2091 = vmatprep.subr.mxu0 0.0
    %2092 = vmatpush1.msra.mxu0 0.0
    %2093 = vmatprep.subr.mxu0 0.0
    %2094 = vmatpush1.msra.mxu0 0.0
    %2095 = vmatprep.subr.mxu0 0.0
    %2096 = vmatpush1.msra.mxu0 0.0
    %2097 = vmatprep.subr.mxu0 0.0
    %2098 = vmatpush1.msra.mxu0 0.0
    %2099 = vmatprep.subr.mxu0 0.0
    %2100 = vmatpush1.msra.mxu0 0.0
    %2101 = vmatprep.subr.mxu0 0.0
    %2102 = vmatpush1.msra.mxu0 0.0
    %2103 = vmatprep.subr.mxu0 0.0
    %2104 = vmatpush1.msra.mxu0 0.0
    %2105 = vmatprep.subr.mxu0 0.0
    %2106 = vmatpush1.msra.mxu0 0.0
    %2107 = vmatprep.subr.mxu0 0.0
    %2108 = vmatpush1.msra.mxu0 0.0
    %2109 = vmatprep.subr.mxu0 0.0
    %2110 = vmatpush1.msra.mxu0 0.0
    %2111 = vmatprep.subr.mxu0 0.0
    %2112 = vmatpush1.msra.mxu0 0.0
    %2113 = vmatprep.subr.mxu0 0.0
    %2114 = vmatpush1.msra.mxu0 0.0
    %2115 = vmatprep.subr.mxu0 0.0
    %2116 = vmatpush1.msra.mxu0 0.0
    %2117 = vmatprep.subr.mxu0 0.0
    %2118 = vmatpush1.msra.mxu0 0.0
    %2119 = vmatprep.subr.mxu0 0.0
    %2120 = vmatpush1.msra.mxu0 0.0
    %2121 = vmatprep.subr.mxu0 0.0
    %2122 = vmatpush1.msra.mxu0 0.0
    %2123 = vmatprep.subr.mxu0 0.0
    %2124 = vmatpush1.msra.mxu0 0.0
    %2125 = vmatprep.mubr.f32.mxu0 0.0
    %2126 = vmatmul.mubr.f32.gmra.mrb[0].mxu0 %v2056
    %v2127 = vpop.f32.mrb[0].mxu0
    %v2128 = vadd.f32 %v2053, %v2127
    %v2129 = vpop.f32.mrb[0].mxu0
    %2130 = vdwg.mxu0
    %v2131 = vld [vmem:[%s211] sm:$0xff]
    %v2132 = vld [vmem:[%s211 + $0x8] sm:$0xff]
    %v2133 = vld [vmem:[%s211 + $0x10] sm:$0x3]
    %v2134 = vrot.slane %v1968, 2
    %v2135 = vsel %vm59, %v2134, 0
    %v2138 = vsel %vm62, %v2133, 0
    %2140 = vmatprep.subr.mxu0 0.0
    %2141 = vmatpush1.msra.mxu0 %v2131
    %2142 = vmatprep.subr.mxu0 0.0
    %2143 = vmatpush1.msra.mxu0 %v2132
    %2144 = vmatprep.subr.mxu0 0.0
    %2145 = vmatpush1.msra.mxu0 %v2138
    %2146 = vmatprep.subr.mxu0 0.0
    %2147 = vmatpush1.msra.mxu0 0.0
    %2148 = vmatprep.subr.mxu0 0.0
    %2149 = vmatpush1.msra.mxu0 0.0
    %2150 = vmatprep.subr.mxu0 0.0
    %2151 = vmatpush1.msra.mxu0 0.0
    %2152 = vmatprep.subr.mxu0 0.0
    %2153 = vmatpush1.msra.mxu0 0.0
    %2154 = vmatprep.subr.mxu0 0.0
    %2155 = vmatpush1.msra.mxu0 0.0
    %2156 = vmatprep.subr.mxu0 0.0
    %2157 = vmatpush1.msra.mxu0 0.0
    %2158 = vmatprep.subr.mxu0 0.0
    %2159 = vmatpush1.msra.mxu0 0.0
    %2160 = vmatprep.subr.mxu0 0.0
    %2161 = vmatpush1.msra.mxu0 0.0
    %2162 = vmatprep.subr.mxu0 0.0
    %2163 = vmatpush1.msra.mxu0 0.0
    %2164 = vmatprep.subr.mxu0 0.0
    %2165 = vmatpush1.msra.mxu0 0.0
    %2166 = vmatprep.subr.mxu0 0.0
    %2167 = vmatpush1.msra.mxu0 0.0
    %2168 = vmatprep.subr.mxu0 0.0
    %2169 = vmatpush1.msra.mxu0 0.0
    %2170 = vmatprep.subr.mxu0 0.0
    %2171 = vmatpush1.msra.mxu0 0.0
    %2172 = vmatprep.subr.mxu0 0.0
    %2173 = vmatpush1.msra.mxu0 0.0
    %2174 = vmatprep.subr.mxu0 0.0
    %2175 = vmatpush1.msra.mxu0 0.0
    %2176 = vmatprep.subr.mxu0 0.0
    %2177 = vmatpush1.msra.mxu0 0.0
    %2178 = vmatprep.subr.mxu0 0.0
    %2179 = vmatpush1.msra.mxu0 0.0
    %2180 = vmatprep.subr.mxu0 0.0
    %2181 = vmatpush1.msra.mxu0 0.0
    %2182 = vmatprep.subr.mxu0 0.0
    %2183 = vmatpush1.msra.mxu0 0.0
    %2184 = vmatprep.subr.mxu0 0.0
    %2185 = vmatpush1.msra.mxu0 0.0
    %2186 = vmatprep.subr.mxu0 0.0
    %2187 = vmatpush1.msra.mxu0 0.0
    %2188 = vmatprep.subr.mxu0 0.0
    %2189 = vmatpush1.msra.mxu0 0.0
    %2190 = vmatprep.subr.mxu0 0.0
    %2191 = vmatpush1.msra.mxu0 0.0
    %2192 = vmatprep.subr.mxu0 0.0
    %2193 = vmatpush1.msra.mxu0 0.0
    %2194 = vmatprep.subr.mxu0 0.0
    %2195 = vmatpush1.msra.mxu0 0.0
    %2196 = vmatprep.subr.mxu0 0.0
    %2197 = vmatpush1.msra.mxu0 0.0
    %2198 = vmatprep.subr.mxu0 0.0
    %2199 = vmatpush1.msra.mxu0 0.0
    %2200 = vmatprep.subr.mxu0 0.0
    %2201 = vmatpush1.msra.mxu0 0.0
    %2202 = vmatprep.subr.mxu0 0.0
    %2203 = vmatpush1.msra.mxu0 0.0
    %2204 = vmatprep.mubr.f32.mxu0 0.0
    %2205 = vmatmul.mubr.f32.gmra.mrb[0].mxu0 %v2135
    %v2206 = vpop.f32.mrb[0].mxu0
    %v2207 = vadd.f32 0.0, %v2206
    %v2208 = vpop.f32.mrb[0].mxu0
    %2209 = vdwg.mxu0
    %v2210 = vadd.f32 %v2128, %v2207
    %2211 = vmatprep.subr.mxu0 0.0
    %2212 = vmatpush1.msra.mxu0 %v1973
    %2213 = vmatprep.subr.mxu0 0.0
    %2214 = vmatpush1.msra.mxu0 %v1974
    %2215 = vmatprep.subr.mxu0 0.0
    %2216 = vmatpush1.msra.mxu0 %v1984
    %2217 = vmatprep.subr.mxu0 0.0
    %2218 = vmatpush1.msra.mxu0 0.0
    %2219 = vmatprep.subr.mxu0 0.0
    %2220 = vmatpush1.msra.mxu0 0.0
    %2221 = vmatprep.subr.mxu0 0.0
    %2222 = vmatpush1.msra.mxu0 0.0
    %2223 = vmatprep.subr.mxu0 0.0
    %2224 = vmatpush1.msra.mxu0 0.0
    %2225 = vmatprep.subr.mxu0 0.0
    %2226 = vmatpush1.msra.mxu0 0.0
    %2227 = vmatprep.subr.mxu0 0.0
    %2228 = vmatpush1.msra.mxu0 0.0
    %2229 = vmatprep.subr.mxu0 0.0
    %2230 = vmatpush1.msra.mxu0 0.0
    %2231 = vmatprep.subr.mxu0 0.0
    %2232 = vmatpush1.msra.mxu0 0.0
    %2233 = vmatprep.subr.mxu0 0.0
    %2234 = vmatpush1.msra.mxu0 0.0
    %2235 = vmatprep.subr.mxu0 0.0
    %2236 = vmatpush1.msra.mxu0 0.0
    %2237 = vmatprep.subr.mxu0 0.0
    %2238 = vmatpush1.msra.mxu0 0.0
    %2239 = vmatprep.subr.mxu0 0.0
    %2240 = vmatpush1.msra.mxu0 0.0
    %2241 = vmatprep.subr.mxu0 0.0
    %2242 = vmatpush1.msra.mxu0 0.0
    %2243 = vmatprep.subr.mxu0 0.0
    %2244 = vmatpush1.msra.mxu0 0.0
    %2245 = vmatprep.subr.mxu0 0.0
    %2246 = vmatpush1.msra.mxu0 0.0
    %2247 = vmatprep.subr.mxu0 0.0
    %2248 = vmatpush1.msra.mxu0 0.0
    %2249 = vmatprep.subr.mxu0 0.0
    %2250 = vmatpush1.msra.mxu0 0.0
    %2251 = vmatprep.subr.mxu0 0.0
    %2252 = vmatpush1.msra.mxu0 0.0
    %2253 = vmatprep.subr.mxu0 0.0
    %2254 = vmatpush1.msra.mxu0 0.0
    %2255 = vmatprep.subr.mxu0 0.0
    %2256 = vmatpush1.msra.mxu0 0.0
    %2257 = vmatprep.subr.mxu0 0.0
    %2258 = vmatpush1.msra.mxu0 0.0
    %2259 = vmatprep.subr.mxu0 0.0
    %2260 = vmatpush1.msra.mxu0 0.0
    %2261 = vmatprep.subr.mxu0 0.0
    %2262 = vmatpush1.msra.mxu0 0.0
    %2263 = vmatprep.subr.mxu0 0.0
    %2264 = vmatpush1.msra.mxu0 0.0
    %2265 = vmatprep.subr.mxu0 0.0
    %2266 = vmatpush1.msra.mxu0 0.0
    %2267 = vmatprep.subr.mxu0 0.0
    %2268 = vmatpush1.msra.mxu0 0.0
    %2269 = vmatprep.subr.mxu0 0.0
    %2270 = vmatpush1.msra.mxu0 0.0
    %2271 = vmatprep.subr.mxu0 0.0
    %2272 = vmatpush1.msra.mxu0 0.0
    %2273 = vmatprep.subr.mxu0 0.0
    %2274 = vmatpush1.msra.mxu0 0.0
    %2275 = vmatprep.mubr.f32.mxu0 0.0
    %2276 = vmatmul.mubr.f32.gmra.mrb[0].mxu0 %v2135
    %v2277 = vpop.f32.mrb[0].mxu0
    %v2278 = vadd.f32 0.0, %v2277
    %v2279 = vpop.f32.mrb[0].mxu0
    %2280 = vdwg.mxu0
    %2281 = vmatprep.subr.mxu0 0.0
    %2282 = vmatpush1.msra.mxu0 %v1970
    %2283 = vmatprep.subr.mxu0 0.0
    %2284 = vmatpush1.msra.mxu0 %v1971
    %2285 = vmatprep.subr.mxu0 0.0
    %2286 = vmatpush1.msra.mxu0 %v2059
    %2287 = vmatprep.subr.mxu0 0.0
    %2288 = vmatpush1.msra.mxu0 0.0
    %2289 = vmatprep.subr.mxu0 0.0
    %2290 = vmatpush1.msra.mxu0 0.0
    %2291 = vmatprep.subr.mxu0 0.0
    %2292 = vmatpush1.msra.mxu0 0.0
    %2293 = vmatprep.subr.mxu0 0.0
    %2294 = vmatpush1.msra.mxu0 0.0
    %2295 = vmatprep.subr.mxu0 0.0
    %2296 = vmatpush1.msra.mxu0 0.0
    %2297 = vmatprep.subr.mxu0 0.0
    %2298 = vmatpush1.msra.mxu0 0.0
    %2299 = vmatprep.subr.mxu0 0.0
    %2300 = vmatpush1.msra.mxu0 0.0
    %2301 = vmatprep.subr.mxu0 0.0
    %2302 = vmatpush1.msra.mxu0 0.0
    %2303 = vmatprep.subr.mxu0 0.0
    %2304 = vmatpush1.msra.mxu0 0.0
    %2305 = vmatprep.subr.mxu0 0.0
    %2306 = vmatpush1.msra.mxu0 0.0
    %2307 = vmatprep.subr.mxu0 0.0
    %2308 = vmatpush1.msra.mxu0 0.0
    %2309 = vmatprep.subr.mxu0 0.0
    %2310 = vmatpush1.msra.mxu0 0.0
    %2311 = vmatprep.subr.mxu0 0.0
    %2312 = vmatpush1.msra.mxu0 0.0
    %2313 = vmatprep.subr.mxu0 0.0
    %2314 = vmatpush1.msra.mxu0 0.0
    %2315 = vmatprep.subr.mxu0 0.0
    %2316 = vmatpush1.msra.mxu0 0.0
    %2317 = vmatprep.subr.mxu0 0.0
    %2318 = vmatpush1.msra.mxu0 0.0
    %2319 = vmatprep.subr.mxu0 0.0
    %2320 = vmatpush1.msra.mxu0 0.0
    %2321 = vmatprep.subr.mxu0 0.0
    %2322 = vmatpush1.msra.mxu0 0.0
    %2323 = vmatprep.subr.mxu0 0.0
    %2324 = vmatpush1.msra.mxu0 0.0
    %2325 = vmatprep.subr.mxu0 0.0
    %2326 = vmatpush1.msra.mxu0 0.0
    %2327 = vmatprep.subr.mxu0 0.0
    %2328 = vmatpush1.msra.mxu0 0.0
    %2329 = vmatprep.subr.mxu0 0.0
    %2330 = vmatpush1.msra.mxu0 0.0
    %2331 = vmatprep.subr.mxu0 0.0
    %2332 = vmatpush1.msra.mxu0 0.0
    %2333 = vmatprep.subr.mxu0 0.0
    %2334 = vmatpush1.msra.mxu0 0.0
    %2335 = vmatprep.subr.mxu0 0.0
    %2336 = vmatpush1.msra.mxu0 0.0
    %2337 = vmatprep.subr.mxu0 0.0
    %2338 = vmatpush1.msra.mxu0 0.0
    %2339 = vmatprep.subr.mxu0 0.0
    %2340 = vmatpush1.msra.mxu0 0.0
    %2341 = vmatprep.subr.mxu0 0.0
    %2342 = vmatpush1.msra.mxu0 0.0
    %2343 = vmatprep.subr.mxu0 0.0
    %2344 = vmatpush1.msra.mxu0 0.0
    %2345 = vmatprep.mubr.f32.mxu0 0.0
    %2346 = vmatmul.mubr.f32.gmra.mrb[0].mxu0 %v1981
    %v2347 = vpop.f32.mrb[0].mxu0
    %v2348 = vadd.f32 %v2278, %v2347
    %v2349 = vpop.f32.mrb[0].mxu0
    %2350 = vdwg.mxu0
    %v2352 = vrot.slane %v1968, 6
    %v2353 = vrot.slane %v1969, 6
    %v2354 = vsel %vm62, %v2352, %v2353
    %v2355 = vsel %vm59, %v2354, 0
    %2357 = vmatprep.subr.mxu0 0.0
    %2358 = vmatpush1.msra.mxu0 %v2131
    %2359 = vmatprep.subr.mxu0 0.0
    %2360 = vmatpush1.msra.mxu0 %v2132
    %2361 = vmatprep.subr.mxu0 0.0
    %2362 = vmatpush1.msra.mxu0 %v2138
    %2363 = vmatprep.subr.mxu0 0.0
    %2364 = vmatpush1.msra.mxu0 0.0
    %2365 = vmatprep.subr.mxu0 0.0
    %2366 = vmatpush1.msra.mxu0 0.0
    %2367 = vmatprep.subr.mxu0 0.0
    %2368 = vmatpush1.msra.mxu0 0.0
    %2369 = vmatprep.subr.mxu0 0.0
    %2370 = vmatpush1.msra.mxu0 0.0
    %2371 = vmatprep.subr.mxu0 0.0
    %2372 = vmatpush1.msra.mxu0 0.0
    %2373 = vmatprep.subr.mxu0 0.0
    %2374 = vmatpush1.msra.mxu0 0.0
    %2375 = vmatprep.subr.mxu0 0.0
    %2376 = vmatpush1.msra.mxu0 0.0
    %2377 = vmatprep.subr.mxu0 0.0
    %2378 = vmatpush1.msra.mxu0 0.0
    %2379 = vmatprep.subr.mxu0 0.0
    %2380 = vmatpush1.msra.mxu0 0.0
    %2381 = vmatprep.subr.mxu0 0.0
    %2382 = vmatpush1.msra.mxu0 0.0
    %2383 = vmatprep.subr.mxu0 0.0
    %2384 = vmatpush1.msra.mxu0 0.0
    %2385 = vmatprep.subr.mxu0 0.0
    %2386 = vmatpush1.msra.mxu0 0.0
    %2387 = vmatprep.subr.mxu0 0.0
    %2388 = vmatpush1.msra.mxu0 0.0
    %2389 = vmatprep.subr.mxu0 0.0
    %2390 = vmatpush1.msra.mxu0 0.0
    %2391 = vmatprep.subr.mxu0 0.0
    %2392 = vmatpush1.msra.mxu0 0.0
    %2393 = vmatprep.subr.mxu0 0.0
    %2394 = vmatpush1.msra.mxu0 0.0
    %2395 = vmatprep.subr.mxu0 0.0
    %2396 = vmatpush1.msra.mxu0 0.0
    %2397 = vmatprep.subr.mxu0 0.0
    %2398 = vmatpush1.msra.mxu0 0.0
    %2399 = vmatprep.subr.mxu0 0.0
    %2400 = vmatpush1.msra.mxu0 0.0
    %2401 = vmatprep.subr.mxu0 0.0
    %2402 = vmatpush1.msra.mxu0 0.0
    %2403 = vmatprep.subr.mxu0 0.0
    %2404 = vmatpush1.msra.mxu0 0.0
    %2405 = vmatprep.subr.mxu0 0.0
    %2406 = vmatpush1.msra.mxu0 0.0
    %2407 = vmatprep.subr.mxu0 0.0
    %2408 = vmatpush1.msra.mxu0 0.0
    %2409 = vmatprep.subr.mxu0 0.0
    %2410 = vmatpush1.msra.mxu0 0.0
    %2411 = vmatprep.subr.mxu0 0.0
    %2412 = vmatpush1.msra.mxu0 0.0
    %2413 = vmatprep.subr.mxu0 0.0
    %2414 = vmatpush1.msra.mxu0 0.0
    %2415 = vmatprep.subr.mxu0 0.0
    %2416 = vmatpush1.msra.mxu0 0.0
    %2417 = vmatprep.subr.mxu0 0.0
    %2418 = vmatpush1.msra.mxu0 0.0
    %2419 = vmatprep.subr.mxu0 0.0
    %2420 = vmatpush1.msra.mxu0 0.0
    %2421 = vmatprep.mubr.f32.mxu0 0.0
    %2422 = vmatmul.mubr.f32.gmra.mrb[0].mxu0 %v2355
    %v2423 = vpop.f32.mrb[0].mxu0
    %v2424 = vadd.f32 0.0, %v2423
    %v2425 = vpop.f32.mrb[0].mxu0
    %2426 = vdwg.mxu0
    %v2427 = vadd.f32 %v2348, %v2424
    %2428 = vmatprep.subr.mxu0 0.0
    %2429 = vmatpush1.msra.mxu0 %v1973
    %2430 = vmatprep.subr.mxu0 0.0
    %2431 = vmatpush1.msra.mxu0 %v1974
    %2432 = vmatprep.subr.mxu0 0.0
    %2433 = vmatpush1.msra.mxu0 %v1984
    %2434 = vmatprep.subr.mxu0 0.0
    %2435 = vmatpush1.msra.mxu0 0.0
    %2436 = vmatprep.subr.mxu0 0.0
    %2437 = vmatpush1.msra.mxu0 0.0
    %2438 = vmatprep.subr.mxu0 0.0
    %2439 = vmatpush1.msra.mxu0 0.0
    %2440 = vmatprep.subr.mxu0 0.0
    %2441 = vmatpush1.msra.mxu0 0.0
    %2442 = vmatprep.subr.mxu0 0.0
    %2443 = vmatpush1.msra.mxu0 0.0
    %2444 = vmatprep.subr.mxu0 0.0
    %2445 = vmatpush1.msra.mxu0 0.0
    %2446 = vmatprep.subr.mxu0 0.0
    %2447 = vmatpush1.msra.mxu0 0.0
    %2448 = vmatprep.subr.mxu0 0.0
    %2449 = vmatpush1.msra.mxu0 0.0
    %2450 = vmatprep.subr.mxu0 0.0
    %2451 = vmatpush1.msra.mxu0 0.0
    %2452 = vmatprep.subr.mxu0 0.0
    %2453 = vmatpush1.msra.mxu0 0.0
    %2454 = vmatprep.subr.mxu0 0.0
    %2455 = vmatpush1.msra.mxu0 0.0
    %2456 = vmatprep.subr.mxu0 0.0
    %2457 = vmatpush1.msra.mxu0 0.0
    %2458 = vmatprep.subr.mxu0 0.0
    %2459 = vmatpush1.msra.mxu0 0.0
    %2460 = vmatprep.subr.mxu0 0.0
    %2461 = vmatpush1.msra.mxu0 0.0
    %2462 = vmatprep.subr.mxu0 0.0
    %2463 = vmatpush1.msra.mxu0 0.0
    %2464 = vmatprep.subr.mxu0 0.0
    %2465 = vmatpush1.msra.mxu0 0.0
    %2466 = vmatprep.subr.mxu0 0.0
    %2467 = vmatpush1.msra.mxu0 0.0
    %2468 = vmatprep.subr.mxu0 0.0
    %2469 = vmatpush1.msra.mxu0 0.0
    %2470 = vmatprep.subr.mxu0 0.0
    %2471 = vmatpush1.msra.mxu0 0.0
    %2472 = vmatprep.subr.mxu0 0.0
    %2473 = vmatpush1.msra.mxu0 0.0
    %2474 = vmatprep.subr.mxu0 0.0
    %2475 = vmatpush1.msra.mxu0 0.0
    %2476 = vmatprep.subr.mxu0 0.0
    %2477 = vmatpush1.msra.mxu0 0.0
    %2478 = vmatprep.subr.mxu0 0.0
    %2479 = vmatpush1.msra.mxu0 0.0
    %2480 = vmatprep.subr.mxu0 0.0
    %2481 = vmatpush1.msra.mxu0 0.0
    %2482 = vmatprep.subr.mxu0 0.0
    %2483 = vmatpush1.msra.mxu0 0.0
    %2484 = vmatprep.subr.mxu0 0.0
    %2485 = vmatpush1.msra.mxu0 0.0
    %2486 = vmatprep.subr.mxu0 0.0
    %2487 = vmatpush1.msra.mxu0 0.0
    %2488 = vmatprep.subr.mxu0 0.0
    %2489 = vmatpush1.msra.mxu0 0.0
    %2490 = vmatprep.subr.mxu0 0.0
    %2491 = vmatpush1.msra.mxu0 0.0
    %2492 = vmatprep.mubr.f32.mxu0 0.0
    %2493 = vmatmul.mubr.f32.gmra.mrb[0].mxu0 %v2355
    %v2494 = vpop.f32.mrb[0].mxu0
    %v2495 = vadd.f32 0.0, %v2494
    %v2496 = vpop.f32.mrb[0].mxu0
    %2497 = vdwg.mxu0
    %2498 = vmatprep.subr.mxu0 0.0
    %2499 = vmatpush1.msra.mxu0 %v1970
    %2500 = vmatprep.subr.mxu0 0.0
    %2501 = vmatpush1.msra.mxu0 %v1971
    %2502 = vmatprep.subr.mxu0 0.0
    %2503 = vmatpush1.msra.mxu0 %v2059
    %2504 = vmatprep.subr.mxu0 0.0
    %2505 = vmatpush1.msra.mxu0 0.0
    %2506 = vmatprep.subr.mxu0 0.0
    %2507 = vmatpush1.msra.mxu0 0.0
    %2508 = vmatprep.subr.mxu0 0.0
    %2509 = vmatpush1.msra.mxu0 0.0
    %2510 = vmatprep.subr.mxu0 0.0
    %2511 = vmatpush1.msra.mxu0 0.0
    %2512 = vmatprep.subr.mxu0 0.0
    %2513 = vmatpush1.msra.mxu0 0.0
    %2514 = vmatprep.subr.mxu0 0.0
    %2515 = vmatpush1.msra.mxu0 0.0
    %2516 = vmatprep.subr.mxu0 0.0
    %2517 = vmatpush1.msra.mxu0 0.0
    %2518 = vmatprep.subr.mxu0 0.0
    %2519 = vmatpush1.msra.mxu0 0.0
    %2520 = vmatprep.subr.mxu0 0.0
    %2521 = vmatpush1.msra.mxu0 0.0
    %2522 = vmatprep.subr.mxu0 0.0
    %2523 = vmatpush1.msra.mxu0 0.0
    %2524 = vmatprep.subr.mxu0 0.0
    %2525 = vmatpush1.msra.mxu0 0.0
    %2526 = vmatprep.subr.mxu0 0.0
    %2527 = vmatpush1.msra.mxu0 0.0
    %2528 = vmatprep.subr.mxu0 0.0
    %2529 = vmatpush1.msra.mxu0 0.0
    %2530 = vmatprep.subr.mxu0 0.0
    %2531 = vmatpush1.msra.mxu0 0.0
    %2532 = vmatprep.subr.mxu0 0.0
    %2533 = vmatpush1.msra.mxu0 0.0
    %2534 = vmatprep.subr.mxu0 0.0
    %2535 = vmatpush1.msra.mxu0 0.0
    %2536 = vmatprep.subr.mxu0 0.0
    %2537 = vmatpush1.msra.mxu0 0.0
    %2538 = vmatprep.subr.mxu0 0.0
    %2539 = vmatpush1.msra.mxu0 0.0
    %2540 = vmatprep.subr.mxu0 0.0
    %2541 = vmatpush1.msra.mxu0 0.0
    %2542 = vmatprep.subr.mxu0 0.0
    %2543 = vmatpush1.msra.mxu0 0.0
    %2544 = vmatprep.subr.mxu0 0.0
    %2545 = vmatpush1.msra.mxu0 0.0
    %2546 = vmatprep.subr.mxu0 0.0
    %2547 = vmatpush1.msra.mxu0 0.0
    %2548 = vmatprep.subr.mxu0 0.0
    %2549 = vmatpush1.msra.mxu0 0.0
    %2550 = vmatprep.subr.mxu0 0.0
    %2551 = vmatpush1.msra.mxu0 0.0
    %2552 = vmatprep.subr.mxu0 0.0
    %2553 = vmatpush1.msra.mxu0 0.0
    %2554 = vmatprep.subr.mxu0 0.0
    %2555 = vmatpush1.msra.mxu0 0.0
    %2556 = vmatprep.subr.mxu0 0.0
    %2557 = vmatpush1.msra.mxu0 0.0
    %2558 = vmatprep.subr.mxu0 0.0
    %2559 = vmatpush1.msra.mxu0 0.0
    %2560 = vmatprep.subr.mxu0 0.0
    %2561 = vmatpush1.msra.mxu0 0.0
    %2562 = vmatprep.mubr.f32.mxu0 0.0
    %2563 = vmatmul.mubr.f32.gmra.mrb[0].mxu0 %v2135
    %v2564 = vpop.f32.mrb[0].mxu0
    %v2565 = vadd.f32 %v2495, %v2564
    %v2566 = vpop.f32.mrb[0].mxu0
    %2567 = vdwg.mxu0
    %v2568 = vrot.slane %v1967, 1
    %v2569 = vsel %vm59, %v2568, 0
    %2571 = vmatprep.subr.mxu0 0.0
    %2572 = vmatpush1.msra.mxu0 %v2131
    %2573 = vmatprep.subr.mxu0 0.0
    %2574 = vmatpush1.msra.mxu0 %v2132
    %2575 = vmatprep.subr.mxu0 0.0
    %2576 = vmatpush1.msra.mxu0 %v2138
    %2577 = vmatprep.subr.mxu0 0.0
    %2578 = vmatpush1.msra.mxu0 0.0
    %2579 = vmatprep.subr.mxu0 0.0
    %2580 = vmatpush1.msra.mxu0 0.0
    %2581 = vmatprep.subr.mxu0 0.0
    %2582 = vmatpush1.msra.mxu0 0.0
    %2583 = vmatprep.subr.mxu0 0.0
    %2584 = vmatpush1.msra.mxu0 0.0
    %2585 = vmatprep.subr.mxu0 0.0
    %2586 = vmatpush1.msra.mxu0 0.0
    %2587 = vmatprep.subr.mxu0 0.0
    %2588 = vmatpush1.msra.mxu0 0.0
    %2589 = vmatprep.subr.mxu0 0.0
    %2590 = vmatpush1.msra.mxu0 0.0
    %2591 = vmatprep.subr.mxu0 0.0
    %2592 = vmatpush1.msra.mxu0 0.0
    %2593 = vmatprep.subr.mxu0 0.0
    %2594 = vmatpush1.msra.mxu0 0.0
    %2595 = vmatprep.subr.mxu0 0.0
    %2596 = vmatpush1.msra.mxu0 0.0
    %2597 = vmatprep.subr.mxu0 0.0
    %2598 = vmatpush1.msra.mxu0 0.0
    %2599 = vmatprep.subr.mxu0 0.0
    %2600 = vmatpush1.msra.mxu0 0.0
    %2601 = vmatprep.subr.mxu0 0.0
    %2602 = vmatpush1.msra.mxu0 0.0
    %2603 = vmatprep.subr.mxu0 0.0
    %2604 = vmatpush1.msra.mxu0 0.0
    %2605 = vmatprep.subr.mxu0 0.0
    %2606 = vmatpush1.msra.mxu0 0.0
    %2607 = vmatprep.subr.mxu0 0.0
    %2608 = vmatpush1.msra.mxu0 0.0
    %2609 = vmatprep.subr.mxu0 0.0
    %2610 = vmatpush1.msra.mxu0 0.0
    %2611 = vmatprep.subr.mxu0 0.0
    %2612 = vmatpush1.msra.mxu0 0.0
    %2613 = vmatprep.subr.mxu0 0.0
    %2614 = vmatpush1.msra.mxu0 0.0
    %2615 = vmatprep.subr.mxu0 0.0
    %2616 = vmatpush1.msra.mxu0 0.0
    %2617 = vmatprep.subr.mxu0 0.0
    %2618 = vmatpush1.msra.mxu0 0.0
    %2619 = vmatprep.subr.mxu0 0.0
    %2620 = vmatpush1.msra.mxu0 0.0
    %2621 = vmatprep.subr.mxu0 0.0
    %2622 = vmatpush1.msra.mxu0 0.0
    %2623 = vmatprep.subr.mxu0 0.0
    %2624 = vmatpush1.msra.mxu0 0.0
    %2625 = vmatprep.subr.mxu0 0.0
    %2626 = vmatpush1.msra.mxu0 0.0
    %2627 = vmatprep.subr.mxu0 0.0
    %2628 = vmatpush1.msra.mxu0 0.0
    %2629 = vmatprep.subr.mxu0 0.0
    %2630 = vmatpush1.msra.mxu0 0.0
    %2631 = vmatprep.subr.mxu0 0.0
    %2632 = vmatpush1.msra.mxu0 0.0
    %2633 = vmatprep.subr.mxu0 0.0
    %2634 = vmatpush1.msra.mxu0 0.0
    %2635 = vmatprep.mubr.f32.mxu0 0.0
    %2636 = vmatmul.mubr.f32.gmra.mrb[0].mxu0 %v2569
    %v2637 = vpop.f32.mrb[0].mxu0
    %v2638 = vadd.f32 0.0, %v2637
    %v2639 = vpop.f32.mrb[0].mxu0
    %2640 = vdwg.mxu0
    %v2641 = vadd.f32 %v2565, %v2638
    %2642 = vmatprep.subr.mxu0 0.0
    %2643 = vmatpush1.msra.mxu0 %v1973
    %2644 = vmatprep.subr.mxu0 0.0
    %2645 = vmatpush1.msra.mxu0 %v1974
    %2646 = vmatprep.subr.mxu0 0.0
    %2647 = vmatpush1.msra.mxu0 %v1984
    %2648 = vmatprep.subr.mxu0 0.0
    %2649 = vmatpush1.msra.mxu0 0.0
    %2650 = vmatprep.subr.mxu0 0.0
    %2651 = vmatpush1.msra.mxu0 0.0
    %2652 = vmatprep.subr.mxu0 0.0
    %2653 = vmatpush1.msra.mxu0 0.0
    %2654 = vmatprep.subr.mxu0 0.0
    %2655 = vmatpush1.msra.mxu0 0.0
    %2656 = vmatprep.subr.mxu0 0.0
    %2657 = vmatpush1.msra.mxu0 0.0
    %2658 = vmatprep.subr.mxu0 0.0
    %2659 = vmatpush1.msra.mxu0 0.0
    %2660 = vmatprep.subr.mxu0 0.0
    %2661 = vmatpush1.msra.mxu0 0.0
    %2662 = vmatprep.subr.mxu0 0.0
    %2663 = vmatpush1.msra.mxu0 0.0
    %2664 = vmatprep.subr.mxu0 0.0
    %2665 = vmatpush1.msra.mxu0 0.0
    %2666 = vmatprep.subr.mxu0 0.0
    %2667 = vmatpush1.msra.mxu0 0.0
    %2668 = vmatprep.subr.mxu0 0.0
    %2669 = vmatpush1.msra.mxu0 0.0
    %2670 = vmatprep.subr.mxu0 0.0
    %2671 = vmatpush1.msra.mxu0 0.0
    %2672 = vmatprep.subr.mxu0 0.0
    %2673 = vmatpush1.msra.mxu0 0.0
    %2674 = vmatprep.subr.mxu0 0.0
    %2675 = vmatpush1.msra.mxu0 0.0
    %2676 = vmatprep.subr.mxu0 0.0
    %2677 = vmatpush1.msra.mxu0 0.0
    %2678 = vmatprep.subr.mxu0 0.0
    %2679 = vmatpush1.msra.mxu0 0.0
    %2680 = vmatprep.subr.mxu0 0.0
    %2681 = vmatpush1.msra.mxu0 0.0
    %2682 = vmatprep.subr.mxu0 0.0
    %2683 = vmatpush1.msra.mxu0 0.0
    %2684 = vmatprep.subr.mxu0 0.0
    %2685 = vmatpush1.msra.mxu0 0.0
    %2686 = vmatprep.subr.mxu0 0.0
    %2687 = vmatpush1.msra.mxu0 0.0
    %2688 = vmatprep.subr.mxu0 0.0
    %2689 = vmatpush1.msra.mxu0 0.0
    %2690 = vmatprep.subr.mxu0 0.0
    %2691 = vmatpush1.msra.mxu0 0.0
    %2692 = vmatprep.subr.mxu0 0.0
    %2693 = vmatpush1.msra.mxu0 0.0
    %2694 = vmatprep.subr.mxu0 0.0
    %2695 = vmatpush1.msra.mxu0 0.0
    %2696 = vmatprep.subr.mxu0 0.0
    %2697 = vmatpush1.msra.mxu0 0.0
    %2698 = vmatprep.subr.mxu0 0.0
    %2699 = vmatpush1.msra.mxu0 0.0
    %2700 = vmatprep.subr.mxu0 0.0
    %2701 = vmatpush1.msra.mxu0 0.0
    %2702 = vmatprep.subr.mxu0 0.0
    %2703 = vmatpush1.msra.mxu0 0.0
    %2704 = vmatprep.subr.mxu0 0.0
    %2705 = vmatpush1.msra.mxu0 0.0
    %2706 = vmatprep.mubr.f32.mxu0 0.0
    %2707 = vmatmul.mubr.f32.gmra.mrb[0].mxu0 %v2569
    %v2708 = vpop.f32.mrb[0].mxu0
    %v2709 = vadd.f32 0.0, %v2708
    %v2710 = vpop.f32.mrb[0].mxu0
    %2711 = vdwg.mxu0
    %2712 = vmatprep.subr.mxu0 0.0
    %2713 = vmatpush1.msra.mxu0 %v1970
    %2714 = vmatprep.subr.mxu0 0.0
    %2715 = vmatpush1.msra.mxu0 %v1971
    %2716 = vmatprep.subr.mxu0 0.0
    %2717 = vmatpush1.msra.mxu0 %v2059
    %2718 = vmatprep.subr.mxu0 0.0
    %2719 = vmatpush1.msra.mxu0 0.0
    %2720 = vmatprep.subr.mxu0 0.0
    %2721 = vmatpush1.msra.mxu0 0.0
    %2722 = vmatprep.subr.mxu0 0.0
    %2723 = vmatpush1.msra.mxu0 0.0
    %2724 = vmatprep.subr.mxu0 0.0
    %2725 = vmatpush1.msra.mxu0 0.0
    %2726 = vmatprep.subr.mxu0 0.0
    %2727 = vmatpush1.msra.mxu0 0.0
    %2728 = vmatprep.subr.mxu0 0.0
    %2729 = vmatpush1.msra.mxu0 0.0
    %2730 = vmatprep.subr.mxu0 0.0
    %2731 = vmatpush1.msra.mxu0 0.0
    %2732 = vmatprep.subr.mxu0 0.0
    %2733 = vmatpush1.msra.mxu0 0.0
    %2734 = vmatprep.subr.mxu0 0.0
    %2735 = vmatpush1.msra.mxu0 0.0
    %2736 = vmatprep.subr.mxu0 0.0
    %2737 = vmatpush1.msra.mxu0 0.0
    %2738 = vmatprep.subr.mxu0 0.0
    %2739 = vmatpush1.msra.mxu0 0.0
    %2740 = vmatprep.subr.mxu0 0.0
    %2741 = vmatpush1.msra.mxu0 0.0
    %2742 = vmatprep.subr.mxu0 0.0
    %2743 = vmatpush1.msra.mxu0 0.0
    %2744 = vmatprep.subr.mxu0 0.0
    %2745 = vmatpush1.msra.mxu0 0.0
    %2746 = vmatprep.subr.mxu0 0.0
    %2747 = vmatpush1.msra.mxu0 0.0
    %2748 = vmatprep.subr.mxu0 0.0
    %2749 = vmatpush1.msra.mxu0 0.0
    %2750 = vmatprep.subr.mxu0 0.0
    %2751 = vmatpush1.msra.mxu0 0.0
    %2752 = vmatprep.subr.mxu0 0.0
    %2753 = vmatpush1.msra.mxu0 0.0
    %2754 = vmatprep.subr.mxu0 0.0
    %2755 = vmatpush1.msra.mxu0 0.0
    %2756 = vmatprep.subr.mxu0 0.0
    %2757 = vmatpush1.msra.mxu0 0.0
    %2758 = vmatprep.subr.mxu0 0.0
    %2759 = vmatpush1.msra.mxu0 0.0
    %2760 = vmatprep.subr.mxu0 0.0
    %2761 = vmatpush1.msra.mxu0 0.0
    %2762 = vmatprep.subr.mxu0 0.0
    %2763 = vmatpush1.msra.mxu0 0.0
    %2764 = vmatprep.subr.mxu0 0.0
    %2765 = vmatpush1.msra.mxu0 0.0
    %2766 = vmatprep.subr.mxu0 0.0
    %2767 = vmatpush1.msra.mxu0 0.0
    %2768 = vmatprep.subr.mxu0 0.0
    %2769 = vmatpush1.msra.mxu0 0.0
    %2770 = vmatprep.subr.mxu0 0.0
    %2771 = vmatpush1.msra.mxu0 0.0
    %2772 = vmatprep.subr.mxu0 0.0
    %2773 = vmatpush1.msra.mxu0 0.0
    %2774 = vmatprep.subr.mxu0 0.0
    %2775 = vmatpush1.msra.mxu0 0.0
    %2776 = vmatprep.mubr.f32.mxu0 0.0
    %2777 = vmatmul.mubr.f32.gmra.mrb[0].mxu0 %v2355
    %v2778 = vpop.f32.mrb[0].mxu0
    %v2779 = vadd.f32 %v2709, %v2778
    %v2780 = vpop.f32.mrb[0].mxu0
    %2781 = vdwg.mxu0
    %v2782 = vrot.slane %v1967, 6
    %v2783 = vsel %vm62, %v2782, %v2352
    %v2784 = vsel %vm59, %v2783, 0
    %2786 = vmatprep.subr.mxu0 0.0
    %2787 = vmatpush1.msra.mxu0 %v2131
    %2788 = vmatprep.subr.mxu0 0.0
    %2789 = vmatpush1.msra.mxu0 %v2132
    %2790 = vmatprep.subr.mxu0 0.0
    %2791 = vmatpush1.msra.mxu0 %v2138
    %2792 = vmatprep.subr.mxu0 0.0
    %2793 = vmatpush1.msra.mxu0 0.0
    %2794 = vmatprep.subr.mxu0 0.0
    %2795 = vmatpush1.msra.mxu0 0.0
    %2796 = vmatprep.subr.mxu0 0.0
    %2797 = vmatpush1.msra.mxu0 0.0
    %2798 = vmatprep.subr.mxu0 0.0
    %2799 = vmatpush1.msra.mxu0 0.0
    %2800 = vmatprep.subr.mxu0 0.0
    %2801 = vmatpush1.msra.mxu0 0.0
    %2802 = vmatprep.subr.mxu0 0.0
    %2803 = vmatpush1.msra.mxu0 0.0
    %2804 = vmatprep.subr.mxu0 0.0
    %2805 = vmatpush1.msra.mxu0 0.0
    %2806 = vmatprep.subr.mxu0 0.0
    %2807 = vmatpush1.msra.mxu0 0.0
    %2808 = vmatprep.subr.mxu0 0.0
    %2809 = vmatpush1.msra.mxu0 0.0
    %2810 = vmatprep.subr.mxu0 0.0
    %2811 = vmatpush1.msra.mxu0 0.0
    %2812 = vmatprep.subr.mxu0 0.0
    %2813 = vmatpush1.msra.mxu0 0.0
    %2814 = vmatprep.subr.mxu0 0.0
    %2815 = vmatpush1.msra.mxu0 0.0
    %2816 = vmatprep.subr.mxu0 0.0
    %2817 = vmatpush1.msra.mxu0 0.0
    %2818 = vmatprep.subr.mxu0 0.0
    %2819 = vmatpush1.msra.mxu0 0.0
    %2820 = vmatprep.subr.mxu0 0.0
    %2821 = vmatpush1.msra.mxu0 0.0
    %2822 = vmatprep.subr.mxu0 0.0
    %2823 = vmatpush1.msra.mxu0 0.0
    %2824 = vmatprep.subr.mxu0 0.0
    %2825 = vmatpush1.msra.mxu0 0.0
    %2826 = vmatprep.subr.mxu0 0.0
    %2827 = vmatpush1.msra.mxu0 0.0
    %2828 = vmatprep.subr.mxu0 0.0
    %2829 = vmatpush1.msra.mxu0 0.0
    %2830 = vmatprep.subr.mxu0 0.0
    %2831 = vmatpush1.msra.mxu0 0.0
    %2832 = vmatprep.subr.mxu0 0.0
    %2833 = vmatpush1.msra.mxu0 0.0
    %2834 = vmatprep.subr.mxu0 0.0
    %2835 = vmatpush1.msra.mxu0 0.0
    %2836 = vmatprep.subr.mxu0 0.0
    %2837 = vmatpush1.msra.mxu0 0.0
    %2838 = vmatprep.subr.mxu0 0.0
    %2839 = vmatpush1.msra.mxu0 0.0
    %2840 = vmatprep.subr.mxu0 0.0
    %2841 = vmatpush1.msra.mxu0 0.0
    %2842 = vmatprep.subr.mxu0 0.0
    %2843 = vmatpush1.msra.mxu0 0.0
    %2844 = vmatprep.subr.mxu0 0.0
    %2845 = vmatpush1.msra.mxu0 0.0
    %2846 = vmatprep.subr.mxu0 0.0
    %2847 = vmatpush1.msra.mxu0 0.0
    %2848 = vmatprep.subr.mxu0 0.0
    %2849 = vmatpush1.msra.mxu0 0.0
    %2850 = vmatprep.mubr.f32.mxu0 0.0
    %2851 = vmatmul.mubr.f32.gmra.mrb[0].mxu0 %v2784
    %v2852 = vpop.f32.mrb[0].mxu0
    %v2853 = vadd.f32 0.0, %v2852
    %v2854 = vpop.f32.mrb[0].mxu0
    %2855 = vdwg.mxu0
    %v2856 = vadd.f32 %v2779, %v2853
    %v2857 = vmax.f32 %v2210, %v2427
    %v2858 = vmax.f32 %v2641, %v2856
    %2860 = vrot.lane.b32.xlu0 %v2857, 64
    %v2861 = vpop.permute.xlu0 %2860
    %v2863 = vmax.f32 %v2857, %v2861
    %2865 = vrot.lane.b32.xlu0 %v2858, 64
    %v2866 = vpop.permute.xlu0 %2865
    %v2868 = vmax.f32 %v2858, %v2866
    %v2869 = vld [vmem:[%s2] sm:$0x1]
    %v2871 = vlaneseq
    %v2872 = vshrl.u32 %v2871, 7
    %v2873 = vsub.s32 0, %v2872
    %v2874 = vrot.slane %v2869, %v2873
    %v2876 = vadd.f32 %v2863, %v2874
    %v2877 = vmax.f32 %v2876, 0.0
    %v2878 = vadd.f32 %v2868, %v2874
    %v2879 = vmax.f32 %v2878, 0.0
    %2881 = vrot.lane.b32.xlu0 %v2879, 8
    %v2882 = vpop.permute.xlu0 %2881
    %2884 = vst.msk [vmem:[#allocation2 + $0x1] sm:$0xf] %vm965, %v2882
    %2886 = vrot.lane.b32.xlu0 %v2877, 8
    %v2887 = vpop.permute.xlu0 %2886
    %2889 = vst.msk [vmem:[#allocation2 + $0x5] sm:$0xf] %vm965, %v2887
    %v2890 = vld [vmem:[#allocation2] sm:$0xf]
    %v2891 = vld [vmem:[%s3] sm:$0xff]
    %v2892 = vld [vmem:[%s3 + $0x8] sm:$0xff]
    %v2893 = vld [vmem:[%s3 + $0x10] sm:$0xff]
    %v2894 = vld [vmem:[%s3 + $0x18] sm:$0xff]
    %v2895 = vld [vmem:[%s3 + $0x20] sm:$0xff]
    %v2896 = vld [vmem:[%s3 + $0x28] sm:$0xff]
    %v2897 = vld [vmem:[%s3 + $0x30] sm:$0xff]
    %v2898 = vld [vmem:[%s3 + $0x38] sm:$0xff]
    %v2899 = vld [vmem:[%s3 + $0x40] sm:$0xff]
    %v2900 = vld [vmem:[%s3 + $0x48] sm:$0xff]
    %v2901 = vld [vmem:[#allocation2 + $0x5] sm:$0xf]
    %v2902 = vld [vmem:[%s984] sm:$0xff]
    %v2903 = vld [vmem:[%s984 + $0x8] sm:$0xff]
    %v2904 = vld [vmem:[%s984 + $0x10] sm:$0xff]
    %v2905 = vld [vmem:[%s984 + $0x18] sm:$0xff]
    %v2906 = vld [vmem:[%s984 + $0x20] sm:$0xff]
    %v2907 = vld [vmem:[%s984 + $0x28] sm:$0xff]
    %v2908 = vld [vmem:[%s984 + $0x30] sm:$0xff]
    %v2909 = vld [vmem:[%s984 + $0x38] sm:$0xff]
    %v2910 = vld [vmem:[%s984 + $0x40] sm:$0xff]
    %v2911 = vld [vmem:[%s984 + $0x48] sm:$0xff]
    %v2913 = vsel %vm39, %v2901, 0
    %2915 = vmatprep.subr.mxu0 0.0
    %2916 = vmatpush1.msra.mxu0 %v2902
    %2917 = vmatprep.subr.mxu0 0.0
    %2918 = vmatpush1.msra.mxu0 %v2903
    %2919 = vmatprep.subr.mxu0 0.0
    %2920 = vmatpush1.msra.mxu0 %v2904
    %2921 = vmatprep.subr.mxu0 0.0
    %2922 = vmatpush1.msra.mxu0 %v2905
    %2923 = vmatprep.subr.mxu0 0.0
    %2924 = vmatpush1.msra.mxu0 %v2906
    %2925 = vmatprep.subr.mxu0 0.0
    %2926 = vmatpush1.msra.mxu0 %v2907
    %2927 = vmatprep.subr.mxu0 0.0
    %2928 = vmatpush1.msra.mxu0 %v2908
    %2929 = vmatprep.subr.mxu0 0.0
    %2930 = vmatpush1.msra.mxu0 %v2909
    %2931 = vmatprep.subr.mxu0 0.0
    %2932 = vmatpush1.msra.mxu0 %v2910
    %2933 = vmatprep.subr.mxu0 0.0
    %2934 = vmatpush1.msra.mxu0 %v2911
    %2935 = vmatprep.subr.mxu0 0.0
    %2936 = vmatpush1.msra.mxu0 0.0
    %2937 = vmatprep.subr.mxu0 0.0
    %2938 = vmatpush1.msra.mxu0 0.0
    %2939 = vmatprep.subr.mxu0 0.0
    %2940 = vmatpush1.msra.mxu0 0.0
    %2941 = vmatprep.subr.mxu0 0.0
    %2942 = vmatpush1.msra.mxu0 0.0
    %2943 = vmatprep.subr.mxu0 0.0
    %2944 = vmatpush1.msra.mxu0 0.0
    %2945 = vmatprep.subr.mxu0 0.0
    %2946 = vmatpush1.msra.mxu0 0.0
    %2947 = vmatprep.subr.mxu0 0.0
    %2948 = vmatpush1.msra.mxu0 0.0
    %2949 = vmatprep.subr.mxu0 0.0
    %2950 = vmatpush1.msra.mxu0 0.0
    %2951 = vmatprep.subr.mxu0 0.0
    %2952 = vmatpush1.msra.mxu0 0.0
    %2953 = vmatprep.subr.mxu0 0.0
    %2954 = vmatpush1.msra.mxu0 0.0
    %2955 = vmatprep.subr.mxu0 0.0
    %2956 = vmatpush1.msra.mxu0 0.0
    %2957 = vmatprep.subr.mxu0 0.0
    %2958 = vmatpush1.msra.mxu0 0.0
    %2959 = vmatprep.subr.mxu0 0.0
    %2960 = vmatpush1.msra.mxu0 0.0
    %2961 = vmatprep.subr.mxu0 0.0
    %2962 = vmatpush1.msra.mxu0 0.0
    %2963 = vmatprep.subr.mxu0 0.0
    %2964 = vmatpush1.msra.mxu0 0.0
    %2965 = vmatprep.subr.mxu0 0.0
    %2966 = vmatpush1.msra.mxu0 0.0
    %2967 = vmatprep.subr.mxu0 0.0
    %2968 = vmatpush1.msra.mxu0 0.0
    %2969 = vmatprep.subr.mxu0 0.0
    %2970 = vmatpush1.msra.mxu0 0.0
    %2971 = vmatprep.subr.mxu0 0.0
    %2972 = vmatpush1.msra.mxu0 0.0
    %2973 = vmatprep.subr.mxu0 0.0
    %2974 = vmatpush1.msra.mxu0 0.0
    %2975 = vmatprep.subr.mxu0 0.0
    %2976 = vmatpush1.msra.mxu0 0.0
    %2977 = vmatprep.subr.mxu0 0.0
    %2978 = vmatpush1.msra.mxu0 0.0
    %2979 = vmatprep.mubr.f32.mxu0 0.0
    %2980 = vmatmul.mubr.f32.gmra.mrb[0].mxu0 %v2913
    %v2981 = vpop.f32.mrb[0].mxu0
    %v2982 = vadd.f32 0.0, %v2981
    %v2983 = vpop.f32.mrb[0].mxu0
    %2984 = vdwg.mxu0
    %v2986 = vsel %vm39, %v2890, 0
    %2988 = vmatprep.subr.mxu0 0.0
    %2989 = vmatpush1.msra.mxu0 %v2891
    %2990 = vmatprep.subr.mxu0 0.0
    %2991 = vmatpush1.msra.mxu0 %v2892
    %2992 = vmatprep.subr.mxu0 0.0
    %2993 = vmatpush1.msra.mxu0 %v2893
    %2994 = vmatprep.subr.mxu0 0.0
    %2995 = vmatpush1.msra.mxu0 %v2894
    %2996 = vmatprep.subr.mxu0 0.0
    %2997 = vmatpush1.msra.mxu0 %v2895
    %2998 = vmatprep.subr.mxu0 0.0
    %2999 = vmatpush1.msra.mxu0 %v2896
    %3000 = vmatprep.subr.mxu0 0.0
    %3001 = vmatpush1.msra.mxu0 %v2897
    %3002 = vmatprep.subr.mxu0 0.0
    %3003 = vmatpush1.msra.mxu0 %v2898
    %3004 = vmatprep.subr.mxu0 0.0
    %3005 = vmatpush1.msra.mxu0 %v2899
    %3006 = vmatprep.subr.mxu0 0.0
    %3007 = vmatpush1.msra.mxu0 %v2900
    %3008 = vmatprep.subr.mxu0 0.0
    %3009 = vmatpush1.msra.mxu0 0.0
    %3010 = vmatprep.subr.mxu0 0.0
    %3011 = vmatpush1.msra.mxu0 0.0
    %3012 = vmatprep.subr.mxu0 0.0
    %3013 = vmatpush1.msra.mxu0 0.0
    %3014 = vmatprep.subr.mxu0 0.0
    %3015 = vmatpush1.msra.mxu0 0.0
    %3016 = vmatprep.subr.mxu0 0.0
    %3017 = vmatpush1.msra.mxu0 0.0
    %3018 = vmatprep.subr.mxu0 0.0
    %3019 = vmatpush1.msra.mxu0 0.0
    %3020 = vmatprep.subr.mxu0 0.0
    %3021 = vmatpush1.msra.mxu0 0.0
    %3022 = vmatprep.subr.mxu0 0.0
    %3023 = vmatpush1.msra.mxu0 0.0
    %3024 = vmatprep.subr.mxu0 0.0
    %3025 = vmatpush1.msra.mxu0 0.0
    %3026 = vmatprep.subr.mxu0 0.0
    %3027 = vmatpush1.msra.mxu0 0.0
    %3028 = vmatprep.subr.mxu0 0.0
    %3029 = vmatpush1.msra.mxu0 0.0
    %3030 = vmatprep.subr.mxu0 0.0
    %3031 = vmatpush1.msra.mxu0 0.0
    %3032 = vmatprep.subr.mxu0 0.0
    %3033 = vmatpush1.msra.mxu0 0.0
    %3034 = vmatprep.subr.mxu0 0.0
    %3035 = vmatpush1.msra.mxu0 0.0
    %3036 = vmatprep.subr.mxu0 0.0
    %3037 = vmatpush1.msra.mxu0 0.0
    %3038 = vmatprep.subr.mxu0 0.0
    %3039 = vmatpush1.msra.mxu0 0.0
    %3040 = vmatprep.subr.mxu0 0.0
    %3041 = vmatpush1.msra.mxu0 0.0
    %3042 = vmatprep.subr.mxu0 0.0
    %3043 = vmatpush1.msra.mxu0 0.0
    %3044 = vmatprep.subr.mxu0 0.0
    %3045 = vmatpush1.msra.mxu0 0.0
    %3046 = vmatprep.subr.mxu0 0.0
    %3047 = vmatpush1.msra.mxu0 0.0
    %3048 = vmatprep.subr.mxu0 0.0
    %3049 = vmatpush1.msra.mxu0 0.0
    %3050 = vmatprep.subr.mxu0 0.0
    %3051 = vmatpush1.msra.mxu0 0.0
    %3052 = vmatprep.mubr.f32.mxu0 0.0
    %3053 = vmatmul.mubr.f32.gmra.mrb[0].mxu0 %v2986
    %v3054 = vpop.f32.mrb[0].mxu0
    %v3055 = vadd.f32 %v2982, %v3054
    %v3056 = vpop.f32.mrb[0].mxu0
    %3057 = vdwg.mxu0
    %v3058 = vld [vmem:[#allocation2 + $0x1] sm:$0xf]
    %v3059 = vld [vmem:[%s1142] sm:$0xff]
    %v3060 = vld [vmem:[%s1142 + $0x8] sm:$0xff]
    %v3061 = vld [vmem:[%s1142 + $0x10] sm:$0xff]
    %v3062 = vld [vmem:[%s1142 + $0x18] sm:$0xff]
    %v3063 = vld [vmem:[%s1142 + $0x20] sm:$0xff]
    %v3064 = vld [vmem:[%s1142 + $0x28] sm:$0xff]
    %v3065 = vld [vmem:[%s1142 + $0x30] sm:$0xff]
    %v3066 = vld [vmem:[%s1142 + $0x38] sm:$0xff]
    %v3067 = vld [vmem:[%s1142 + $0x40] sm:$0xff]
    %v3068 = vld [vmem:[%s1142 + $0x48] sm:$0xff]
    %v3070 = vsel %vm39, %v3058, 0
    %3072 = vmatprep.subr.mxu0 0.0
    %3073 = vmatpush1.msra.mxu0 %v3059
    %3074 = vmatprep.subr.mxu0 0.0
    %3075 = vmatpush1.msra.mxu0 %v3060
    %3076 = vmatprep.subr.mxu0 0.0
    %3077 = vmatpush1.msra.mxu0 %v3061
    %3078 = vmatprep.subr.mxu0 0.0
    %3079 = vmatpush1.msra.mxu0 %v3062
    %3080 = vmatprep.subr.mxu0 0.0
    %3081 = vmatpush1.msra.mxu0 %v3063
    %3082 = vmatprep.subr.mxu0 0.0
    %3083 = vmatpush1.msra.mxu0 %v3064
    %3084 = vmatprep.subr.mxu0 0.0
    %3085 = vmatpush1.msra.mxu0 %v3065
    %3086 = vmatprep.subr.mxu0 0.0
    %3087 = vmatpush1.msra.mxu0 %v3066
    %3088 = vmatprep.subr.mxu0 0.0
    %3089 = vmatpush1.msra.mxu0 %v3067
    %3090 = vmatprep.subr.mxu0 0.0
    %3091 = vmatpush1.msra.mxu0 %v3068
    %3092 = vmatprep.subr.mxu0 0.0
    %3093 = vmatpush1.msra.mxu0 0.0
    %3094 = vmatprep.subr.mxu0 0.0
    %3095 = vmatpush1.msra.mxu0 0.0
    %3096 = vmatprep.subr.mxu0 0.0
    %3097 = vmatpush1.msra.mxu0 0.0
    %3098 = vmatprep.subr.mxu0 0.0
    %3099 = vmatpush1.msra.mxu0 0.0
    %3100 = vmatprep.subr.mxu0 0.0
    %3101 = vmatpush1.msra.mxu0 0.0
    %3102 = vmatprep.subr.mxu0 0.0
    %3103 = vmatpush1.msra.mxu0 0.0
    %3104 = vmatprep.subr.mxu0 0.0
    %3105 = vmatpush1.msra.mxu0 0.0
    %3106 = vmatprep.subr.mxu0 0.0
    %3107 = vmatpush1.msra.mxu0 0.0
    %3108 = vmatprep.subr.mxu0 0.0
    %3109 = vmatpush1.msra.mxu0 0.0
    %3110 = vmatprep.subr.mxu0 0.0
    %3111 = vmatpush1.msra.mxu0 0.0
    %3112 = vmatprep.subr.mxu0 0.0
    %3113 = vmatpush1.msra.mxu0 0.0
    %3114 = vmatprep.subr.mxu0 0.0
    %3115 = vmatpush1.msra.mxu0 0.0
    %3116 = vmatprep.subr.mxu0 0.0
    %3117 = vmatpush1.msra.mxu0 0.0
    %3118 = vmatprep.subr.mxu0 0.0
    %3119 = vmatpush1.msra.mxu0 0.0
    %3120 = vmatprep.subr.mxu0 0.0
    %3121 = vmatpush1.msra.mxu0 0.0
    %3122 = vmatprep.subr.mxu0 0.0
    %3123 = vmatpush1.msra.mxu0 0.0
    %3124 = vmatprep.subr.mxu0 0.0
    %3125 = vmatpush1.msra.mxu0 0.0
    %3126 = vmatprep.subr.mxu0 0.0
    %3127 = vmatpush1.msra.mxu0 0.0
    %3128 = vmatprep.subr.mxu0 0.0
    %3129 = vmatpush1.msra.mxu0 0.0
    %3130 = vmatprep.subr.mxu0 0.0
    %3131 = vmatpush1.msra.mxu0 0.0
    %3132 = vmatprep.subr.mxu0 0.0
    %3133 = vmatpush1.msra.mxu0 0.0
    %3134 = vmatprep.subr.mxu0 0.0
    %3135 = vmatpush1.msra.mxu0 0.0
    %3136 = vmatprep.mubr.f32.mxu0 0.0
    %3137 = vmatmul.mubr.f32.gmra.mrb[0].mxu0 %v3070
    %v3138 = vpop.f32.mrb[0].mxu0
    %v3139 = vadd.f32 0.0, %v3138
    %v3140 = vpop.f32.mrb[0].mxu0
    %3141 = vdwg.mxu0
    %v3142 = vadd.f32 %v3055, %v3139
    %3143 = vmatprep.subr.mxu0 0.0
    %3144 = vmatpush1.msra.mxu0 %v2902
    %3145 = vmatprep.subr.mxu0 0.0
    %3146 = vmatpush1.msra.mxu0 %v2903
    %3147 = vmatprep.subr.mxu0 0.0
    %3148 = vmatpush1.msra.mxu0 %v2904
    %3149 = vmatprep.subr.mxu0 0.0
    %3150 = vmatpush1.msra.mxu0 %v2905
    %3151 = vmatprep.subr.mxu0 0.0
    %3152 = vmatpush1.msra.mxu0 %v2906
    %3153 = vmatprep.subr.mxu0 0.0
    %3154 = vmatpush1.msra.mxu0 %v2907
    %3155 = vmatprep.subr.mxu0 0.0
    %3156 = vmatpush1.msra.mxu0 %v2908
    %3157 = vmatprep.subr.mxu0 0.0
    %3158 = vmatpush1.msra.mxu0 %v2909
    %3159 = vmatprep.subr.mxu0 0.0
    %3160 = vmatpush1.msra.mxu0 %v2910
    %3161 = vmatprep.subr.mxu0 0.0
    %3162 = vmatpush1.msra.mxu0 %v2911
    %3163 = vmatprep.subr.mxu0 0.0
    %3164 = vmatpush1.msra.mxu0 0.0
    %3165 = vmatprep.subr.mxu0 0.0
    %3166 = vmatpush1.msra.mxu0 0.0
    %3167 = vmatprep.subr.mxu0 0.0
    %3168 = vmatpush1.msra.mxu0 0.0
    %3169 = vmatprep.subr.mxu0 0.0
    %3170 = vmatpush1.msra.mxu0 0.0
    %3171 = vmatprep.subr.mxu0 0.0
    %3172 = vmatpush1.msra.mxu0 0.0
    %3173 = vmatprep.subr.mxu0 0.0
    %3174 = vmatpush1.msra.mxu0 0.0
    %3175 = vmatprep.subr.mxu0 0.0
    %3176 = vmatpush1.msra.mxu0 0.0
    %3177 = vmatprep.subr.mxu0 0.0
    %3178 = vmatpush1.msra.mxu0 0.0
    %3179 = vmatprep.subr.mxu0 0.0
    %3180 = vmatpush1.msra.mxu0 0.0
    %3181 = vmatprep.subr.mxu0 0.0
    %3182 = vmatpush1.msra.mxu0 0.0
    %3183 = vmatprep.subr.mxu0 0.0
    %3184 = vmatpush1.msra.mxu0 0.0
    %3185 = vmatprep.subr.mxu0 0.0
    %3186 = vmatpush1.msra.mxu0 0.0
    %3187 = vmatprep.subr.mxu0 0.0
    %3188 = vmatpush1.msra.mxu0 0.0
    %3189 = vmatprep.subr.mxu0 0.0
    %3190 = vmatpush1.msra.mxu0 0.0
    %3191 = vmatprep.subr.mxu0 0.0
    %3192 = vmatpush1.msra.mxu0 0.0
    %3193 = vmatprep.subr.mxu0 0.0
    %3194 = vmatpush1.msra.mxu0 0.0
    %3195 = vmatprep.subr.mxu0 0.0
    %3196 = vmatpush1.msra.mxu0 0.0
    %3197 = vmatprep.subr.mxu0 0.0
    %3198 = vmatpush1.msra.mxu0 0.0
    %3199 = vmatprep.subr.mxu0 0.0
    %3200 = vmatpush1.msra.mxu0 0.0
    %3201 = vmatprep.subr.mxu0 0.0
    %3202 = vmatpush1.msra.mxu0 0.0
    %3203 = vmatprep.subr.mxu0 0.0
    %3204 = vmatpush1.msra.mxu0 0.0
    %3205 = vmatprep.subr.mxu0 0.0
    %3206 = vmatpush1.msra.mxu0 0.0
    %3207 = vmatprep.mubr.f32.mxu0 0.0
    %3208 = vmatmul.mubr.f32.gmra.mrb[0].mxu0 %v3070
    %v3209 = vpop.f32.mrb[0].mxu0
    %v3210 = vadd.f32 0.0, %v3209
    %v3211 = vpop.f32.mrb[0].mxu0
    %3212 = vdwg.mxu0
    %3213 = vmatprep.subr.mxu0 0.0
    %3214 = vmatpush1.msra.mxu0 %v2891
    %3215 = vmatprep.subr.mxu0 0.0
    %3216 = vmatpush1.msra.mxu0 %v2892
    %3217 = vmatprep.subr.mxu0 0.0
    %3218 = vmatpush1.msra.mxu0 %v2893
    %3219 = vmatprep.subr.mxu0 0.0
    %3220 = vmatpush1.msra.mxu0 %v2894
    %3221 = vmatprep.subr.mxu0 0.0
    %3222 = vmatpush1.msra.mxu0 %v2895
    %3223 = vmatprep.subr.mxu0 0.0
    %3224 = vmatpush1.msra.mxu0 %v2896
    %3225 = vmatprep.subr.mxu0 0.0
    %3226 = vmatpush1.msra.mxu0 %v2897
    %3227 = vmatprep.subr.mxu0 0.0
    %3228 = vmatpush1.msra.mxu0 %v2898
    %3229 = vmatprep.subr.mxu0 0.0
    %3230 = vmatpush1.msra.mxu0 %v2899
    %3231 = vmatprep.subr.mxu0 0.0
    %3232 = vmatpush1.msra.mxu0 %v2900
    %3233 = vmatprep.subr.mxu0 0.0
    %3234 = vmatpush1.msra.mxu0 0.0
    %3235 = vmatprep.subr.mxu0 0.0
    %3236 = vmatpush1.msra.mxu0 0.0
    %3237 = vmatprep.subr.mxu0 0.0
    %3238 = vmatpush1.msra.mxu0 0.0
    %3239 = vmatprep.subr.mxu0 0.0
    %3240 = vmatpush1.msra.mxu0 0.0
    %3241 = vmatprep.subr.mxu0 0.0
    %3242 = vmatpush1.msra.mxu0 0.0
    %3243 = vmatprep.subr.mxu0 0.0
    %3244 = vmatpush1.msra.mxu0 0.0
    %3245 = vmatprep.subr.mxu0 0.0
    %3246 = vmatpush1.msra.mxu0 0.0
    %3247 = vmatprep.subr.mxu0 0.0
    %3248 = vmatpush1.msra.mxu0 0.0
    %3249 = vmatprep.subr.mxu0 0.0
    %3250 = vmatpush1.msra.mxu0 0.0
    %3251 = vmatprep.subr.mxu0 0.0
    %3252 = vmatpush1.msra.mxu0 0.0
    %3253 = vmatprep.subr.mxu0 0.0
    %3254 = vmatpush1.msra.mxu0 0.0
    %3255 = vmatprep.subr.mxu0 0.0
    %3256 = vmatpush1.msra.mxu0 0.0
    %3257 = vmatprep.subr.mxu0 0.0
    %3258 = vmatpush1.msra.mxu0 0.0
    %3259 = vmatprep.subr.mxu0 0.0
    %3260 = vmatpush1.msra.mxu0 0.0
    %3261 = vmatprep.subr.mxu0 0.0
    %3262 = vmatpush1.msra.mxu0 0.0
    %3263 = vmatprep.subr.mxu0 0.0
    %3264 = vmatpush1.msra.mxu0 0.0
    %3265 = vmatprep.subr.mxu0 0.0
    %3266 = vmatpush1.msra.mxu0 0.0
    %3267 = vmatprep.subr.mxu0 0.0
    %3268 = vmatpush1.msra.mxu0 0.0
    %3269 = vmatprep.subr.mxu0 0.0
    %3270 = vmatpush1.msra.mxu0 0.0
    %3271 = vmatprep.subr.mxu0 0.0
    %3272 = vmatpush1.msra.mxu0 0.0
    %3273 = vmatprep.subr.mxu0 0.0
    %3274 = vmatpush1.msra.mxu0 0.0
    %3275 = vmatprep.subr.mxu0 0.0
    %3276 = vmatpush1.msra.mxu0 0.0
    %3277 = vmatprep.mubr.f32.mxu0 0.0
    %3278 = vmatmul.mubr.f32.gmra.mrb[0].mxu0 %v2913
    %v3279 = vpop.f32.mrb[0].mxu0
    %v3280 = vadd.f32 %v3210, %v3279
    %v3281 = vpop.f32.mrb[0].mxu0
    %3282 = vdwg.mxu0
    %v3283 = vld [vmem:[#allocation2 + $0x6] sm:$0xf]
    %v3285 = vsel %vm39, %v3283, 0
    %3287 = vmatprep.subr.mxu0 0.0
    %3288 = vmatpush1.msra.mxu0 %v3059
    %3289 = vmatprep.subr.mxu0 0.0
    %3290 = vmatpush1.msra.mxu0 %v3060
    %3291 = vmatprep.subr.mxu0 0.0
    %3292 = vmatpush1.msra.mxu0 %v3061
    %3293 = vmatprep.subr.mxu0 0.0
    %3294 = vmatpush1.msra.mxu0 %v3062
    %3295 = vmatprep.subr.mxu0 0.0
    %3296 = vmatpush1.msra.mxu0 %v3063
    %3297 = vmatprep.subr.mxu0 0.0
    %3298 = vmatpush1.msra.mxu0 %v3064
    %3299 = vmatprep.subr.mxu0 0.0
    %3300 = vmatpush1.msra.mxu0 %v3065
    %3301 = vmatprep.subr.mxu0 0.0
    %3302 = vmatpush1.msra.mxu0 %v3066
    %3303 = vmatprep.subr.mxu0 0.0
    %3304 = vmatpush1.msra.mxu0 %v3067
    %3305 = vmatprep.subr.mxu0 0.0
    %3306 = vmatpush1.msra.mxu0 %v3068
    %3307 = vmatprep.subr.mxu0 0.0
    %3308 = vmatpush1.msra.mxu0 0.0
    %3309 = vmatprep.subr.mxu0 0.0
    %3310 = vmatpush1.msra.mxu0 0.0
    %3311 = vmatprep.subr.mxu0 0.0
    %3312 = vmatpush1.msra.mxu0 0.0
    %3313 = vmatprep.subr.mxu0 0.0
    %3314 = vmatpush1.msra.mxu0 0.0
    %3315 = vmatprep.subr.mxu0 0.0
    %3316 = vmatpush1.msra.mxu0 0.0
    %3317 = vmatprep.subr.mxu0 0.0
    %3318 = vmatpush1.msra.mxu0 0.0
    %3319 = vmatprep.subr.mxu0 0.0
    %3320 = vmatpush1.msra.mxu0 0.0
    %3321 = vmatprep.subr.mxu0 0.0
    %3322 = vmatpush1.msra.mxu0 0.0
    %3323 = vmatprep.subr.mxu0 0.0
    %3324 = vmatpush1.msra.mxu0 0.0
    %3325 = vmatprep.subr.mxu0 0.0
    %3326 = vmatpush1.msra.mxu0 0.0
    %3327 = vmatprep.subr.mxu0 0.0
    %3328 = vmatpush1.msra.mxu0 0.0
    %3329 = vmatprep.subr.mxu0 0.0
    %3330 = vmatpush1.msra.mxu0 0.0
    %3331 = vmatprep.subr.mxu0 0.0
    %3332 = vmatpush1.msra.mxu0 0.0
    %3333 = vmatprep.subr.mxu0 0.0
    %3334 = vmatpush1.msra.mxu0 0.0
    %3335 = vmatprep.subr.mxu0 0.0
    %3336 = vmatpush1.msra.mxu0 0.0
    %3337 = vmatprep.subr.mxu0 0.0
    %3338 = vmatpush1.msra.mxu0 0.0
    %3339 = vmatprep.subr.mxu0 0.0
    %3340 = vmatpush1.msra.mxu0 0.0
    %3341 = vmatprep.subr.mxu0 0.0
    %3342 = vmatpush1.msra.mxu0 0.0
    %3343 = vmatprep.subr.mxu0 0.0
    %3344 = vmatpush1.msra.mxu0 0.0
    %3345 = vmatprep.subr.mxu0 0.0
    %3346 = vmatpush1.msra.mxu0 0.0
    %3347 = vmatprep.subr.mxu0 0.0
    %3348 = vmatpush1.msra.mxu0 0.0
    %3349 = vmatprep.subr.mxu0 0.0
    %3350 = vmatpush1.msra.mxu0 0.0
    %3351 = vmatprep.mubr.f32.mxu0 0.0
    %3352 = vmatmul.mubr.f32.gmra.mrb[0].mxu0 %v3285
    %v3353 = vpop.f32.mrb[0].mxu0
    %v3354 = vadd.f32 0.0, %v3353
    %v3355 = vpop.f32.mrb[0].mxu0
    %3356 = vdwg.mxu0
    %v3357 = vadd.f32 %v3280, %v3354
    %v3358 = vmax.f32 %v3142, %v3357
    %3360 = vrot.lane.b32.xlu0 %v3358, 64
    %v3361 = vpop.permute.xlu0 %3360
    %v3363 = vmax.f32 %v3358, %v3361
    %v3364 = vld [vmem:[%s4] sm:$0x1]
    %v3366 = vlaneseq
    %v3367 = vshrl.u32 %v3366, 7
    %v3368 = vsub.s32 0, %v3367
    %v3369 = vrot.slane %v3364, %v3368
    %v3371 = vadd.f32 %v3363, %v3369
    %v3372 = vmax.f32 %v3371, 0.0
    %v3373 = vld [vmem:[%s5] sm:$0xff]
    %v3374 = vld [vmem:[%s5 + $0x8] sm:$0xff]
    %v3375 = vld [vmem:[%s5 + $0x10] sm:$0xff]
    %v3376 = vld [vmem:[%s5 + $0x18] sm:$0xff]
    %v3377 = vld [vmem:[%s5 + $0x20] sm:$0xff]
    %v3378 = vld [vmem:[%s5 + $0x28] sm:$0xff]
    %v3379 = vld [vmem:[%s5 + $0x30] sm:$0xff]
    %v3380 = vld [vmem:[%s5 + $0x38] sm:$0xff]
    %v3381 = vld [vmem:[%s1465] sm:$0xff]
    %v3382 = vld [vmem:[%s1465 + $0x8] sm:$0xff]
    %v3383 = vld [vmem:[%s1465 + $0x10] sm:$0xff]
    %v3384 = vld [vmem:[%s1465 + $0x18] sm:$0xff]
    %v3385 = vld [vmem:[%s1465 + $0x20] sm:$0xff]
    %v3386 = vld [vmem:[%s1465 + $0x28] sm:$0xff]
    %v3387 = vld [vmem:[%s1465 + $0x30] sm:$0xff]
    %v3388 = vld [vmem:[%s1465 + $0x38] sm:$0xff]
    %v3390 = vrot.slane %v3372, 1
    %v3391 = vsel %vm1476, %v3390, 0
    %3393 = vmatprep.subr.mxu0 0.0
    %3394 = vmatpush1.msra.mxu0 %v3381
    %3395 = vmatprep.subr.mxu0 0.0
    %3396 = vmatpush1.msra.mxu0 %v3382
    %3397 = vmatprep.subr.mxu0 0.0
    %3398 = vmatpush1.msra.mxu0 %v3383
    %3399 = vmatprep.subr.mxu0 0.0
    %3400 = vmatpush1.msra.mxu0 %v3384
    %3401 = vmatprep.subr.mxu0 0.0
    %3402 = vmatpush1.msra.mxu0 %v3385
    %3403 = vmatprep.subr.mxu0 0.0
    %3404 = vmatpush1.msra.mxu0 %v3386
    %3405 = vmatprep.subr.mxu0 0.0
    %3406 = vmatpush1.msra.mxu0 %v3387
    %3407 = vmatprep.subr.mxu0 0.0
    %3408 = vmatpush1.msra.mxu0 %v3388
    %3409 = vmatprep.subr.mxu0 0.0
    %3410 = vmatpush1.msra.mxu0 0.0
    %3411 = vmatprep.subr.mxu0 0.0
    %3412 = vmatpush1.msra.mxu0 0.0
    %3413 = vmatprep.subr.mxu0 0.0
    %3414 = vmatpush1.msra.mxu0 0.0
    %3415 = vmatprep.subr.mxu0 0.0
    %3416 = vmatpush1.msra.mxu0 0.0
    %3417 = vmatprep.subr.mxu0 0.0
    %3418 = vmatpush1.msra.mxu0 0.0
    %3419 = vmatprep.subr.mxu0 0.0
    %3420 = vmatpush1.msra.mxu0 0.0
    %3421 = vmatprep.subr.mxu0 0.0
    %3422 = vmatpush1.msra.mxu0 0.0
    %3423 = vmatprep.subr.mxu0 0.0
    %3424 = vmatpush1.msra.mxu0 0.0
    %3425 = vmatprep.subr.mxu0 0.0
    %3426 = vmatpush1.msra.mxu0 0.0
    %3427 = vmatprep.subr.mxu0 0.0
    %3428 = vmatpush1.msra.mxu0 0.0
    %3429 = vmatprep.subr.mxu0 0.0
    %3430 = vmatpush1.msra.mxu0 0.0
    %3431 = vmatprep.subr.mxu0 0.0
    %3432 = vmatpush1.msra.mxu0 0.0
    %3433 = vmatprep.subr.mxu0 0.0
    %3434 = vmatpush1.msra.mxu0 0.0
    %3435 = vmatprep.subr.mxu0 0.0
    %3436 = vmatpush1.msra.mxu0 0.0
    %3437 = vmatprep.subr.mxu0 0.0
    %3438 = vmatpush1.msra.mxu0 0.0
    %3439 = vmatprep.subr.mxu0 0.0
    %3440 = vmatpush1.msra.mxu0 0.0
    %3441 = vmatprep.subr.mxu0 0.0
    %3442 = vmatpush1.msra.mxu0 0.0
    %3443 = vmatprep.subr.mxu0 0.0
    %3444 = vmatpush1.msra.mxu0 0.0
    %3445 = vmatprep.subr.mxu0 0.0
    %3446 = vmatpush1.msra.mxu0 0.0
    %3447 = vmatprep.subr.mxu0 0.0
    %3448 = vmatpush1.msra.mxu0 0.0
    %3449 = vmatprep.subr.mxu0 0.0
    %3450 = vmatpush1.msra.mxu0 0.0
    %3451 = vmatprep.subr.mxu0 0.0
    %3452 = vmatpush1.msra.mxu0 0.0
    %3453 = vmatprep.subr.mxu0 0.0
    %3454 = vmatpush1.msra.mxu0 0.0
    %3455 = vmatprep.subr.mxu0 0.0
    %3456 = vmatpush1.msra.mxu0 0.0
    %3457 = vmatprep.mubr.f32.mxu0 0.0
    %3458 = vmatmul.mubr.f32.gmra.mrb[0].mxu0 %v3391
    %v3459 = vpop.f32.mrb[0].mxu0
    %v3460 = vadd.f32 0.0, %v3459
    %v3461 = vpop.f32.mrb[0].mxu0
    %3462 = vdwg.mxu0
    %v3463 = vsel %vm1476, %v3372, 0
    %3465 = vmatprep.subr.mxu0 0.0
    %3466 = vmatpush1.msra.mxu0 %v3373
    %3467 = vmatprep.subr.mxu0 0.0
    %3468 = vmatpush1.msra.mxu0 %v3374
    %3469 = vmatprep.subr.mxu0 0.0
    %3470 = vmatpush1.msra.mxu0 %v3375
    %3471 = vmatprep.subr.mxu0 0.0
    %3472 = vmatpush1.msra.mxu0 %v3376
    %3473 = vmatprep.subr.mxu0 0.0
    %3474 = vmatpush1.msra.mxu0 %v3377
    %3475 = vmatprep.subr.mxu0 0.0
    %3476 = vmatpush1.msra.mxu0 %v3378
    %3477 = vmatprep.subr.mxu0 0.0
    %3478 = vmatpush1.msra.mxu0 %v3379
    %3479 = vmatprep.subr.mxu0 0.0
    %3480 = vmatpush1.msra.mxu0 %v3380
    %3481 = vmatprep.subr.mxu0 0.0
    %3482 = vmatpush1.msra.mxu0 0.0
    %3483 = vmatprep.subr.mxu0 0.0
    %3484 = vmatpush1.msra.mxu0 0.0
    %3485 = vmatprep.subr.mxu0 0.0
    %3486 = vmatpush1.msra.mxu0 0.0
    %3487 = vmatprep.subr.mxu0 0.0
    %3488 = vmatpush1.msra.mxu0 0.0
    %3489 = vmatprep.subr.mxu0 0.0
    %3490 = vmatpush1.msra.mxu0 0.0
    %3491 = vmatprep.subr.mxu0 0.0
    %3492 = vmatpush1.msra.mxu0 0.0
    %3493 = vmatprep.subr.mxu0 0.0
    %3494 = vmatpush1.msra.mxu0 0.0
    %3495 = vmatprep.subr.mxu0 0.0
    %3496 = vmatpush1.msra.mxu0 0.0
    %3497 = vmatprep.subr.mxu0 0.0
    %3498 = vmatpush1.msra.mxu0 0.0
    %3499 = vmatprep.subr.mxu0 0.0
    %3500 = vmatpush1.msra.mxu0 0.0
    %3501 = vmatprep.subr.mxu0 0.0
    %3502 = vmatpush1.msra.mxu0 0.0
    %3503 = vmatprep.subr.mxu0 0.0
    %3504 = vmatpush1.msra.mxu0 0.0
    %3505 = vmatprep.subr.mxu0 0.0
    %3506 = vmatpush1.msra.mxu0 0.0
    %3507 = vmatprep.subr.mxu0 0.0
    %3508 = vmatpush1.msra.mxu0 0.0
    %3509 = vmatprep.subr.mxu0 0.0
    %3510 = vmatpush1.msra.mxu0 0.0
    %3511 = vmatprep.subr.mxu0 0.0
    %3512 = vmatpush1.msra.mxu0 0.0
    %3513 = vmatprep.subr.mxu0 0.0
    %3514 = vmatpush1.msra.mxu0 0.0
    %3515 = vmatprep.subr.mxu0 0.0
    %3516 = vmatpush1.msra.mxu0 0.0
    %3517 = vmatprep.subr.mxu0 0.0
    %3518 = vmatpush1.msra.mxu0 0.0
    %3519 = vmatprep.subr.mxu0 0.0
    %3520 = vmatpush1.msra.mxu0 0.0
    %3521 = vmatprep.subr.mxu0 0.0
    %3522 = vmatpush1.msra.mxu0 0.0
    %3523 = vmatprep.subr.mxu0 0.0
    %3524 = vmatpush1.msra.mxu0 0.0
    %3525 = vmatprep.subr.mxu0 0.0
    %3526 = vmatpush1.msra.mxu0 0.0
    %3527 = vmatprep.subr.mxu0 0.0
    %3528 = vmatpush1.msra.mxu0 0.0
    %3529 = vmatprep.mubr.f32.mxu0 0.0
    %3530 = vmatmul.mubr.f32.gmra.mrb[0].mxu0 %v3463
    %v3531 = vpop.f32.mrb[0].mxu0
    %v3532 = vadd.f32 %v3460, %v3531
    %v3533 = vpop.f32.mrb[0].mxu0
    %3534 = vdwg.mxu0
    %v3535 = vld [vmem:[%s1621] sm:$0xff]
    %v3536 = vld [vmem:[%s1621 + $0x8] sm:$0xff]
    %v3537 = vld [vmem:[%s1621 + $0x10] sm:$0xff]
    %v3538 = vld [vmem:[%s1621 + $0x18] sm:$0xff]
    %v3539 = vld [vmem:[%s1621 + $0x20] sm:$0xff]
    %v3540 = vld [vmem:[%s1621 + $0x28] sm:$0xff]
    %v3541 = vld [vmem:[%s1621 + $0x30] sm:$0xff]
    %v3542 = vld [vmem:[%s1621 + $0x38] sm:$0xff]
    %v3543 = vrot.slane %v3372, 2
    %v3544 = vsel %vm1476, %v3543, 0
    %3546 = vmatprep.subr.mxu0 0.0
    %3547 = vmatpush1.msra.mxu0 %v3535
    %3548 = vmatprep.subr.mxu0 0.0
    %3549 = vmatpush1.msra.mxu0 %v3536
    %3550 = vmatprep.subr.mxu0 0.0
    %3551 = vmatpush1.msra.mxu0 %v3537
    %3552 = vmatprep.subr.mxu0 0.0
    %3553 = vmatpush1.msra.mxu0 %v3538
    %3554 = vmatprep.subr.mxu0 0.0
    %3555 = vmatpush1.msra.mxu0 %v3539
    %3556 = vmatprep.subr.mxu0 0.0
    %3557 = vmatpush1.msra.mxu0 %v3540
    %3558 = vmatprep.subr.mxu0 0.0
    %3559 = vmatpush1.msra.mxu0 %v3541
    %3560 = vmatprep.subr.mxu0 0.0
    %3561 = vmatpush1.msra.mxu0 %v3542
    %3562 = vmatprep.subr.mxu0 0.0
    %3563 = vmatpush1.msra.mxu0 0.0
    %3564 = vmatprep.subr.mxu0 0.0
    %3565 = vmatpush1.msra.mxu0 0.0
    %3566 = vmatprep.subr.mxu0 0.0
    %3567 = vmatpush1.msra.mxu0 0.0
    %3568 = vmatprep.subr.mxu0 0.0
    %3569 = vmatpush1.msra.mxu0 0.0
    %3570 = vmatprep.subr.mxu0 0.0
    %3571 = vmatpush1.msra.mxu0 0.0
    %3572 = vmatprep.subr.mxu0 0.0
    %3573 = vmatpush1.msra.mxu0 0.0
    %3574 = vmatprep.subr.mxu0 0.0
    %3575 = vmatpush1.msra.mxu0 0.0
    %3576 = vmatprep.subr.mxu0 0.0
    %3577 = vmatpush1.msra.mxu0 0.0
    %3578 = vmatprep.subr.mxu0 0.0
    %3579 = vmatpush1.msra.mxu0 0.0
    %3580 = vmatprep.subr.mxu0 0.0
    %3581 = vmatpush1.msra.mxu0 0.0
    %3582 = vmatprep.subr.mxu0 0.0
    %3583 = vmatpush1.msra.mxu0 0.0
    %3584 = vmatprep.subr.mxu0 0.0
    %3585 = vmatpush1.msra.mxu0 0.0
    %3586 = vmatprep.subr.mxu0 0.0
    %3587 = vmatpush1.msra.mxu0 0.0
    %3588 = vmatprep.subr.mxu0 0.0
    %3589 = vmatpush1.msra.mxu0 0.0
    %3590 = vmatprep.subr.mxu0 0.0
    %3591 = vmatpush1.msra.mxu0 0.0
    %3592 = vmatprep.subr.mxu0 0.0
    %3593 = vmatpush1.msra.mxu0 0.0
    %3594 = vmatprep.subr.mxu0 0.0
    %3595 = vmatpush1.msra.mxu0 0.0
    %3596 = vmatprep.subr.mxu0 0.0
    %3597 = vmatpush1.msra.mxu0 0.0
    %3598 = vmatprep.subr.mxu0 0.0
    %3599 = vmatpush1.msra.mxu0 0.0
    %3600 = vmatprep.subr.mxu0 0.0
    %3601 = vmatpush1.msra.mxu0 0.0
    %3602 = vmatprep.subr.mxu0 0.0
    %3603 = vmatpush1.msra.mxu0 0.0
    %3604 = vmatprep.subr.mxu0 0.0
    %3605 = vmatpush1.msra.mxu0 0.0
    %3606 = vmatprep.subr.mxu0 0.0
    %3607 = vmatpush1.msra.mxu0 0.0
    %3608 = vmatprep.subr.mxu0 0.0
    %3609 = vmatpush1.msra.mxu0 0.0
    %3610 = vmatprep.mubr.f32.mxu0 0.0
    %3611 = vmatmul.mubr.f32.gmra.mrb[0].mxu0 %v3544
    %v3612 = vpop.f32.mrb[0].mxu0
    %v3613 = vadd.f32 0.0, %v3612
    %v3614 = vpop.f32.mrb[0].mxu0
    %3615 = vdwg.mxu0
    %v3616 = vadd.f32 %v3532, %v3613
    %v3617 = vld [vmem:[%s1704] sm:$0xff]
    %v3618 = vld [vmem:[%s1704 + $0x8] sm:$0xff]
    %v3619 = vld [vmem:[%s1704 + $0x10] sm:$0xff]
    %v3620 = vld [vmem:[%s1704 + $0x18] sm:$0xff]
    %v3621 = vld [vmem:[%s1704 + $0x20] sm:$0xff]
    %v3622 = vld [vmem:[%s1704 + $0x28] sm:$0xff]
    %v3623 = vld [vmem:[%s1704 + $0x30] sm:$0xff]
    %v3624 = vld [vmem:[%s1704 + $0x38] sm:$0xff]
    %v3625 = vrot.slane %v3372, 3
    %v3626 = vsel %vm1476, %v3625, 0
    %3628 = vmatprep.subr.mxu0 0.0
    %3629 = vmatpush1.msra.mxu0 %v3617
    %3630 = vmatprep.subr.mxu0 0.0
    %3631 = vmatpush1.msra.mxu0 %v3618
    %3632 = vmatprep.subr.mxu0 0.0
    %3633 = vmatpush1.msra.mxu0 %v3619
    %3634 = vmatprep.subr.mxu0 0.0
    %3635 = vmatpush1.msra.mxu0 %v3620
    %3636 = vmatprep.subr.mxu0 0.0
    %3637 = vmatpush1.msra.mxu0 %v3621
    %3638 = vmatprep.subr.mxu0 0.0
    %3639 = vmatpush1.msra.mxu0 %v3622
    %3640 = vmatprep.subr.mxu0 0.0
    %3641 = vmatpush1.msra.mxu0 %v3623
    %3642 = vmatprep.subr.mxu0 0.0
    %3643 = vmatpush1.msra.mxu0 %v3624
    %3644 = vmatprep.subr.mxu0 0.0
    %3645 = vmatpush1.msra.mxu0 0.0
    %3646 = vmatprep.subr.mxu0 0.0
    %3647 = vmatpush1.msra.mxu0 0.0
    %3648 = vmatprep.subr.mxu0 0.0
    %3649 = vmatpush1.msra.mxu0 0.0
    %3650 = vmatprep.subr.mxu0 0.0
    %3651 = vmatpush1.msra.mxu0 0.0
    %3652 = vmatprep.subr.mxu0 0.0
    %3653 = vmatpush1.msra.mxu0 0.0
    %3654 = vmatprep.subr.mxu0 0.0
    %3655 = vmatpush1.msra.mxu0 0.0
    %3656 = vmatprep.subr.mxu0 0.0
    %3657 = vmatpush1.msra.mxu0 0.0
    %3658 = vmatprep.subr.mxu0 0.0
    %3659 = vmatpush1.msra.mxu0 0.0
    %3660 = vmatprep.subr.mxu0 0.0
    %3661 = vmatpush1.msra.mxu0 0.0
    %3662 = vmatprep.subr.mxu0 0.0
    %3663 = vmatpush1.msra.mxu0 0.0
    %3664 = vmatprep.subr.mxu0 0.0
    %3665 = vmatpush1.msra.mxu0 0.0
    %3666 = vmatprep.subr.mxu0 0.0
    %3667 = vmatpush1.msra.mxu0 0.0
    %3668 = vmatprep.subr.mxu0 0.0
    %3669 = vmatpush1.msra.mxu0 0.0
    %3670 = vmatprep.subr.mxu0 0.0
    %3671 = vmatpush1.msra.mxu0 0.0
    %3672 = vmatprep.subr.mxu0 0.0
    %3673 = vmatpush1.msra.mxu0 0.0
    %3674 = vmatprep.subr.mxu0 0.0
    %3675 = vmatpush1.msra.mxu0 0.0
    %3676 = vmatprep.subr.mxu0 0.0
    %3677 = vmatpush1.msra.mxu0 0.0
    %3678 = vmatprep.subr.mxu0 0.0
    %3679 = vmatpush1.msra.mxu0 0.0
    %3680 = vmatprep.subr.mxu0 0.0
    %3681 = vmatpush1.msra.mxu0 0.0
    %3682 = vmatprep.subr.mxu0 0.0
    %3683 = vmatpush1.msra.mxu0 0.0
    %3684 = vmatprep.subr.mxu0 0.0
    %3685 = vmatpush1.msra.mxu0 0.0
    %3686 = vmatprep.subr.mxu0 0.0
    %3687 = vmatpush1.msra.mxu0 0.0
    %3688 = vmatprep.subr.mxu0 0.0
    %3689 = vmatpush1.msra.mxu0 0.0
    %3690 = vmatprep.subr.mxu0 0.0
    %3691 = vmatpush1.msra.mxu0 0.0
    %3692 = vmatprep.mubr.f32.mxu0 0.0
    %3693 = vmatmul.mubr.f32.gmra.mrb[0].mxu0 %v3626
    %v3694 = vpop.f32.mrb[0].mxu0
    %v3695 = vadd.f32 0.0, %v3694
    %v3696 = vpop.f32.mrb[0].mxu0
    %3697 = vdwg.mxu0
    %v3698 = vadd.f32 %v3616, %v3695
    %v3699 = vld [vmem:[%s6] sm:$0x1]
    %v3700 = vadd.f32 %v3698, %v3699
    %v3701 = vmax.f32 %v3700, 0.0
    %v3702 = vld [vmem:[%s7] sm:$0xff]
    %v3703 = vld [vmem:[%s7 + $0x8] sm:$0xff]
    %v3704 = vld [vmem:[%s7 + $0x10] sm:$0xff]
    %v3705 = vld [vmem:[%s7 + $0x18] sm:$0xff]
    %v3706 = vld [vmem:[%s7 + $0x20] sm:$0xff]
    %v3707 = vld [vmem:[%s7 + $0x28] sm:$0xff]
    %v3708 = vld [vmem:[%s7 + $0x30] sm:$0xff]
    %v3709 = vld [vmem:[%s7 + $0x38] sm:$0xff]
    %v3710 = vld [vmem:[%s7 + $0x40] sm:$0xff]
    %v3711 = vld [vmem:[%s7 + $0x48] sm:$0xff]
    %v3712 = vld [vmem:[%s7 + $0x50] sm:$0xff]
    %v3713 = vld [vmem:[%s7 + $0x58] sm:$0xff]
    %v3714 = vld [vmem:[%s7 + $0x60] sm:$0xff]
    %v3715 = vld [vmem:[%s7 + $0x68] sm:$0xff]
    %v3716 = vld [vmem:[%s7 + $0x70] sm:$0xff]
    %v3717 = vld [vmem:[%s7 + $0x78] sm:$0xff]
    %v3718 = vld [vmem:[%s8] sm:$0x1]
    %3719 = vmatprep.subr.mxu0 0.0
    %3720 = vmatpush1.msra.mxu0 %v3702
    %3721 = vmatprep.subr.mxu0 0.0
    %3722 = vmatpush1.msra.mxu0 %v3703
    %3723 = vmatprep.subr.mxu0 0.0
    %3724 = vmatpush1.msra.mxu0 %v3704
    %3725 = vmatprep.subr.mxu0 0.0
    %3726 = vmatpush1.msra.mxu0 %v3705
    %3727 = vmatprep.subr.mxu0 0.0
    %3728 = vmatpush1.msra.mxu0 %v3706
    %3729 = vmatprep.subr.mxu0 0.0
    %3730 = vmatpush1.msra.mxu0 %v3707
    %3731 = vmatprep.subr.mxu0 0.0
    %3732 = vmatpush1.msra.mxu0 %v3708
    %3733 = vmatprep.subr.mxu0 0.0
    %3734 = vmatpush1.msra.mxu0 %v3709
    %3735 = vmatprep.subr.mxu0 0.0
    %3736 = vmatpush1.msra.mxu0 %v3710
    %3737 = vmatprep.subr.mxu0 0.0
    %3738 = vmatpush1.msra.mxu0 %v3711
    %3739 = vmatprep.subr.mxu0 0.0
    %3740 = vmatpush1.msra.mxu0 %v3712
    %3741 = vmatprep.subr.mxu0 0.0
    %3742 = vmatpush1.msra.mxu0 %v3713
    %3743 = vmatprep.subr.mxu0 0.0
    %3744 = vmatpush1.msra.mxu0 %v3714
    %3745 = vmatprep.subr.mxu0 0.0
    %3746 = vmatpush1.msra.mxu0 %v3715
    %3747 = vmatprep.subr.mxu0 0.0
    %3748 = vmatpush1.msra.mxu0 %v3716
    %3749 = vmatprep.subr.mxu0 0.0
    %3750 = vmatpush1.msra.mxu0 %v3717
    %3751 = vmatprep.subr.mxu0 0.0
    %3752 = vmatpush1.msra.mxu0 0.0
    %3753 = vmatprep.subr.mxu0 0.0
    %3754 = vmatpush1.msra.mxu0 0.0
    %3755 = vmatprep.subr.mxu0 0.0
    %3756 = vmatpush1.msra.mxu0 0.0
    %3757 = vmatprep.subr.mxu0 0.0
    %3758 = vmatpush1.msra.mxu0 0.0
    %3759 = vmatprep.subr.mxu0 0.0
    %3760 = vmatpush1.msra.mxu0 0.0
    %3761 = vmatprep.subr.mxu0 0.0
    %3762 = vmatpush1.msra.mxu0 0.0
    %3763 = vmatprep.subr.mxu0 0.0
    %3764 = vmatpush1.msra.mxu0 0.0
    %3765 = vmatprep.subr.mxu0 0.0
    %3766 = vmatpush1.msra.mxu0 0.0
    %3767 = vmatprep.subr.mxu0 0.0
    %3768 = vmatpush1.msra.mxu0 0.0
    %3769 = vmatprep.subr.mxu0 0.0
    %3770 = vmatpush1.msra.mxu0 0.0
    %3771 = vmatprep.subr.mxu0 0.0
    %3772 = vmatpush1.msra.mxu0 0.0
    %3773 = vmatprep.subr.mxu0 0.0
    %3774 = vmatpush1.msra.mxu0 0.0
    %3775 = vmatprep.subr.mxu0 0.0
    %3776 = vmatpush1.msra.mxu0 0.0
    %3777 = vmatprep.subr.mxu0 0.0
    %3778 = vmatpush1.msra.mxu0 0.0
    %3779 = vmatprep.subr.mxu0 0.0
    %3780 = vmatpush1.msra.mxu0 0.0
    %3781 = vmatprep.subr.mxu0 0.0
    %3782 = vmatpush1.msra.mxu0 0.0
    %3783 = vmatprep.mubr.f32.mxu0 0.0
    %3784 = vmatmul.mubr.f32.gmra.mrb[0].mxu0 %v3701
    %v3785 = vpop.f32.mrb[0].mxu0
    %v3786 = vadd.f32 %v3718, %v3785
    %v3787 = vpop.f32.mrb[0].mxu0
    %3788 = vdwg.mxu0
    %v3789 = vmax.f32 %v3786, 0.0
    %v3790 = vld [vmem:[%s9] sm:$0xff]
    %v3791 = vld [vmem:[%s9 + $0x8] sm:$0xff]
    %v3792 = vld [vmem:[%s9 + $0x10] sm:$0xff]
    %v3793 = vld [vmem:[%s9 + $0x18] sm:$0xff]
    %v3794 = vld [vmem:[%s9 + $0x20] sm:$0xff]
    %v3795 = vld [vmem:[%s9 + $0x28] sm:$0xff]
    %v3796 = vld [vmem:[%s9 + $0x30] sm:$0xff]
    %v3797 = vld [vmem:[%s9 + $0x38] sm:$0xff]
    %v3798 = vld [vmem:[%s9 + $0x40] sm:$0xff]
    %v3799 = vld [vmem:[%s9 + $0x48] sm:$0xff]
    %v3800 = vld [vmem:[%s9 + $0x50] sm:$0xff]
    %v3801 = vld [vmem:[%s9 + $0x58] sm:$0xff]
    %v3802 = vld [vmem:[%s9 + $0x60] sm:$0xff]
    %v3803 = vld [vmem:[%s9 + $0x68] sm:$0xff]
    %v3804 = vld [vmem:[%s9 + $0x70] sm:$0xff]
    %v3805 = vld [vmem:[%s9 + $0x78] sm:$0xff]
    %v3806 = vld [vmem:[%s10] sm:$0x1]
    %3807 = vmatprep.subr.mxu0 0.0
    %3808 = vmatpush1.msra.mxu0 %v3790
    %3809 = vmatprep.subr.mxu0 0.0
    %3810 = vmatpush1.msra.mxu0 %v3791
    %3811 = vmatprep.subr.mxu0 0.0
    %3812 = vmatpush1.msra.mxu0 %v3792
    %3813 = vmatprep.subr.mxu0 0.0
    %3814 = vmatpush1.msra.mxu0 %v3793
    %3815 = vmatprep.subr.mxu0 0.0
    %3816 = vmatpush1.msra.mxu0 %v3794
    %3817 = vmatprep.subr.mxu0 0.0
    %3818 = vmatpush1.msra.mxu0 %v3795
    %3819 = vmatprep.subr.mxu0 0.0
    %3820 = vmatpush1.msra.mxu0 %v3796
    %3821 = vmatprep.subr.mxu0 0.0
    %3822 = vmatpush1.msra.mxu0 %v3797
    %3823 = vmatprep.subr.mxu0 0.0
    %3824 = vmatpush1.msra.mxu0 %v3798
    %3825 = vmatprep.subr.mxu0 0.0
    %3826 = vmatpush1.msra.mxu0 %v3799
    %3827 = vmatprep.subr.mxu0 0.0
    %3828 = vmatpush1.msra.mxu0 %v3800
    %3829 = vmatprep.subr.mxu0 0.0
    %3830 = vmatpush1.msra.mxu0 %v3801
    %3831 = vmatprep.subr.mxu0 0.0
    %3832 = vmatpush1.msra.mxu0 %v3802
    %3833 = vmatprep.subr.mxu0 0.0
    %3834 = vmatpush1.msra.mxu0 %v3803
    %3835 = vmatprep.subr.mxu0 0.0
    %3836 = vmatpush1.msra.mxu0 %v3804
    %3837 = vmatprep.subr.mxu0 0.0
    %3838 = vmatpush1.msra.mxu0 %v3805
    %3839 = vmatprep.subr.mxu0 0.0
    %3840 = vmatpush1.msra.mxu0 0.0
    %3841 = vmatprep.subr.mxu0 0.0
    %3842 = vmatpush1.msra.mxu0 0.0
    %3843 = vmatprep.subr.mxu0 0.0
    %3844 = vmatpush1.msra.mxu0 0.0
    %3845 = vmatprep.subr.mxu0 0.0
    %3846 = vmatpush1.msra.mxu0 0.0
    %3847 = vmatprep.subr.mxu0 0.0
    %3848 = vmatpush1.msra.mxu0 0.0
    %3849 = vmatprep.subr.mxu0 0.0
    %3850 = vmatpush1.msra.mxu0 0.0
    %3851 = vmatprep.subr.mxu0 0.0
    %3852 = vmatpush1.msra.mxu0 0.0
    %3853 = vmatprep.subr.mxu0 0.0
    %3854 = vmatpush1.msra.mxu0 0.0
    %3855 = vmatprep.subr.mxu0 0.0
    %3856 = vmatpush1.msra.mxu0 0.0
    %3857 = vmatprep.subr.mxu0 0.0
    %3858 = vmatpush1.msra.mxu0 0.0
    %3859 = vmatprep.subr.mxu0 0.0
    %3860 = vmatpush1.msra.mxu0 0.0
    %3861 = vmatprep.subr.mxu0 0.0
    %3862 = vmatpush1.msra.mxu0 0.0
    %3863 = vmatprep.subr.mxu0 0.0
    %3864 = vmatpush1.msra.mxu0 0.0
    %3865 = vmatprep.subr.mxu0 0.0
    %3866 = vmatpush1.msra.mxu0 0.0
    %3867 = vmatprep.subr.mxu0 0.0
    %3868 = vmatpush1.msra.mxu0 0.0
    %3869 = vmatprep.subr.mxu0 0.0
    %3870 = vmatpush1.msra.mxu0 0.0
    %3871 = vmatprep.mubr.f32.mxu0 0.0
    %3872 = vmatmul.mubr.f32.gmra.mrb[0].mxu0 %v3789
    %v3873 = vpop.f32.mrb[0].mxu0
    %v3874 = vadd.f32 %v3806, %v3873
    %v3875 = vpop.f32.mrb[0].mxu0
    %3876 = vdwg.mxu0
    %3877 = vst [vmem:[#allocation3 + $0x1] sm:$0x1] %v3874
    // Predicated region
    $region46: #{mnist_net_forward.1} parent=1 // pred_check
      _
    $region47: #{mnist_net_forward.1} parent=1 // pred_check_branch
      %3879 = sbr.rel (0) target = $region49
    $region48: #{mnist_net_forward.1} parent=1 // pred_region
      %s3881 = ssub.s32 32, 32
      %3882 = vsyncadd [#allocation4], %s3881
      %s3884 = sshll.u32 [#allocation3], 4
      %s3885 = int_to_ptr.vmem [resolvable:$true] %s3884
      %3887 = dma.vmem_to_hbm [thread:$0]  %s3885, 32, %s11, [#allocation4]
    $region49: #{mnist_net_forward.1} parent=1 // pred_fallthru
      _
    // Predicated region
    $region50: #{mnist_net_forward.1} parent=1 // pred_check
      _
    $region51: #{mnist_net_forward.1} parent=1 // pred_check_branch
      %3889 = sbr.rel (0) target = $region53
    $region52: #{mnist_net_forward.1} parent=1 // pred_region
      %3890 = dma.done [#allocation4], 32
    $region53: #{mnist_net_forward.1} parent=1 // pred_fallthru
      _
    %3891 = vsyncpa [#allocation4], 1

</llo_original>
